<compile_context>
chip_gen: v7x
topology: tpu7x:2x2x1
jax: 0.10.0
libtpu: 0.0.40
codegen_flags: <defaults>
</compile_context>

<pallas_src>
import functools
import itertools

import jax
import jax.numpy as jnp
import numpy as np
from jax.experimental import pallas as pl
from jax.experimental.pallas import tpu as pltpu

De = 5   # edge-representation size (fixed in the module)
Do = 6   # object-representation size (fixed in the module)


# --------------------------------------------------------------------------
# Pallas kernel: GraphNet forward for one tile of TB batch elements.
#
# Row layouts inside one batch tile (b = 0..TB-1 is the tile-local batch idx):
#   edge_ref : (TB*Nr, 2P)  row j*(N*TB) + n*TB + b = [x[b,n] | x[b,s(n,j)]]
#              with sender slot j = 0..N-2 and s(n,j) = j + (j >= n)
#   xobj_ref : (TB*N, P)    row n*TB + b            = x[b,n]
#   w_ref    : (9, Kmax, Nmax) bf16 packed weights (in, out), zero padded
#   b_ref    : (9, 1, Nmax)    f32  packed biases, zero padded
# Layer slab order: fr1, fr2, fr3, fo1, fo2, fo3, fc1, fc2, fc3.
# --------------------------------------------------------------------------
def _graphnet_kernel(N, P, H, T, TB,
                     edge_ref, xobj_ref, w_ref, b_ref, out_ref):
    f32, bf16 = jnp.float32, jnp.bfloat16
    H2 = H // 2

    def layer(a_bf16, idx, k, n, act=True):
        w = w_ref[idx][:k, :n]                       # (k, n) bf16 MXU operand
        b = b_ref[idx][:, :n]                        # (1, n) f32 bias
        y = jnp.dot(a_bf16, w, preferred_element_type=f32) + b
        return jax.nn.relu(y) if act else y

    # ---- relational (edge) MLP over all TB*Nr edges (batch folded into M) ---
    h = layer(edge_ref[...], 0, 2 * P, H)            # fr1  (TB*Nr, H)
    h = layer(h.astype(bf16), 1, H, H2)              # fr2  (TB*Nr, H2)
    e = layer(h.astype(bf16), 2, H2, De)             # fr3  (TB*Nr, De) f32

    # ---- aggregate edges onto receivers: Ebar[b,n] = sum_j E[b, edge(n,j)].
    # Edge rows are (j major, n, b minor), so this is N-1 static contiguous
    # row-slice adds on the VPU — no matmul, no scratch, linear in TB.
    M = TB * N
    ebar = e[0:M, :]
    for j in range(1, N - 1):
        ebar = ebar + e[j * M:(j + 1) * M, :]        # (TB*N, De)

    # ---- object MLP over all TB*N constituents (rows n*TB + b) --------------
    c = jnp.concatenate([xobj_ref[...], ebar.astype(bf16)], axis=-1)  # (TB*N, P+De)
    c = layer(c, 3, P + De, H)                       # fo1
    c = layer(c.astype(bf16), 4, H, H2)              # fo2
    o = layer(c.astype(bf16), 5, H2, Do)             # fo3  (TB*N, Do) f32

    # ---- classifier: flatten(O) per batch row via lane concat of N static
    # row slices (no VMEM scratch store->load round trip), then fc1/fc2/fc3.
    o_flat = jnp.concatenate([o[n * TB:(n + 1) * TB, :] for n in range(N)],
                             axis=-1)                # (TB, N*Do)
    g = layer(o_flat.astype(bf16), 6, Do * N, H)     # fc1
    g = layer(g.astype(bf16), 7, H, H2)              # fc2
    out_ref[...] = layer(g.astype(bf16), 8, H2, T, act=False)   # (TB, T) f32


# --------------------------------------------------------------------------
# Host-side helpers.
# --------------------------------------------------------------------------
def assign_matrices(N):
    """Receiver / sender one-hot matrices, exactly as in the PyTorch module."""
    Nr = N * (N - 1)
    Rr = np.zeros((N, Nr), np.float32)
    Rs = np.zeros((N, Nr), np.float32)
    pairs = [p for p in itertools.product(range(N), range(N)) if p[0] != p[1]]
    for i, (r, s) in enumerate(pairs):
        Rr[r, i] = 1.0
        Rs[s, i] = 1.0
    return Rr, Rs


def init_params(key, P, N, hidden, n_targets):
    """Deterministic PyTorch-style (out,in) Linear params (uniform +-1/sqrt(in))."""
    H, H2 = hidden, hidden // 2
    shapes = {
        "fr1_w": (H, 2 * P), "fr1_b": (H,),
        "fr2_w": (H2, H),    "fr2_b": (H2,),
        "fr3_w": (De, H2),   "fr3_b": (De,),
        "fo1_w": (H, P + De), "fo1_b": (H,),
        "fo2_w": (H2, H),    "fo2_b": (H2,),
        "fo3_w": (Do, H2),   "fo3_b": (Do,),
        "fc1_w": (H, Do * N), "fc1_b": (H,),
        "fc2_w": (H2, H),    "fc2_b": (H2,),
        "fc3_w": (n_targets, H2), "fc3_b": (n_targets,),
    }
    fan_in = {
        "fr1": 2 * P, "fr2": H, "fr3": H2,
        "fo1": P + De, "fo2": H, "fo3": H2,
        "fc1": Do * N, "fc2": H, "fc3": H2,
    }
    params = {}
    keys = jax.random.split(key, len(shapes))
    for k, (name, shp) in zip(keys, shapes.items()):
        bound = 1.0 / np.sqrt(fan_in[name.split("_")[0]])
        params[name] = jax.random.uniform(k, shp, jnp.float32, -bound, bound)
    return params


def _pack_params(params, N, P, hidden, n_targets):
    """Pack all 9 Linear layers into one bf16 weight slab and one f32 bias slab."""
    H, H2 = hidden, hidden // 2
    layers = [("fr1", 2 * P, H), ("fr2", H, H2), ("fr3", H2, De),
              ("fo1", P + De, H), ("fo2", H, H2), ("fo3", H2, Do),
              ("fc1", Do * N, H), ("fc2", H, H2), ("fc3", H2, n_targets)]
    kmax = max(k for _, k, _ in layers)
    nmax = max(n for _, _, n in layers)
    w_slab = np.zeros((len(layers), kmax, nmax), np.float32)
    b_slab = np.zeros((len(layers), 1, nmax), np.float32)
    for li, (name, k, n) in enumerate(layers):
        w_slab[li, :k, :n] = np.asarray(params[name + "_w"]).T   # (in, out)
        b_slab[li, 0, :n] = np.asarray(params[name + "_b"])
    return jnp.asarray(w_slab, jnp.bfloat16), jnp.asarray(b_slab, jnp.float32)


# --------------------------------------------------------------------------
# pallas_call wrapper.
# --------------------------------------------------------------------------
def graphnet_pallas(x, params, *, N, P, hidden, n_targets, tb=16,
                    vmem_limit_bytes=None):
    assert tb % 8 == 0, "tb must be a multiple of 8 (sublane tiling)"
    bf16 = jnp.bfloat16
    B = x.shape[0]
    Nr = N * (N - 1)

    # Pad batch to a multiple of the per-step batch tile TB.
    B_pad = ((B + tb - 1) // tb) * tb
    if B_pad != B:
        x = jnp.concatenate([x, jnp.zeros((B_pad - B, N, P), x.dtype)], axis=0)
    nt = B_pad // tb
    x = x.astype(bf16)

    # Static receiver/sender index tables: edges regrouped by sender-slot j so
    # the in-kernel E -> Ebar aggregation becomes contiguous slice adds.
    jj, nn = np.meshgrid(np.arange(N - 1), np.arange(N), indexing="ij")  # (N-1, N)
    ss = jj + (jj >= nn)                                                 # sender s(n,j)

    # Edge-MLP input, pre-gathered in the wrapper (pure data movement):
    # per batch tile, row j*(N*tb) + n*tb + b = [x[b, n] | x[b, s(n, j)]].
    edge = jnp.concatenate([x[:, nn, :], x[:, ss, :]], axis=-1)   # (B_pad, N-1, N, 2P)
    edge = edge.reshape(nt, tb, N - 1, N, 2 * P)
    edge = jnp.transpose(edge, (0, 2, 3, 1, 4)).reshape(B_pad * Nr, 2 * P)

    # Object-MLP copy of x in (node-major, batch-minor) row order (no Pp matmul).
    xobj = jnp.transpose(x.reshape(nt, tb, N, P), (0, 2, 1, 3)).reshape(B_pad * N, P)

    w_slab, b_slab = _pack_params(params, N, P, hidden, n_targets)

    kernel = functools.partial(_graphnet_kernel, N, P, hidden, n_targets, tb)
    out = pl.pallas_call(
        kernel,
        out_shape=jax.ShapeDtypeStruct((B_pad, n_targets), jnp.float32),
        grid=(nt,),
        in_specs=[
            pl.BlockSpec((tb * Nr, 2 * P), lambda i: (i, 0)),
            pl.BlockSpec((tb * N, P), lambda i: (i, 0)),
            pl.BlockSpec(w_slab.shape, lambda i: (0, 0, 0)),
            pl.BlockSpec(b_slab.shape, lambda i: (0, 0, 0)),
        ],
        out_specs=pl.BlockSpec((tb, n_targets), lambda i: (i, 0)),
        compiler_params=pltpu.CompilerParams(
            dimension_semantics=("parallel",),     # batch tiles are independent
            vmem_limit_bytes=vmem_limit_bytes),
    )(edge, xobj, w_slab, b_slab)
    return out[:B]


# --------------------------------------------------------------------------
# Pure-JAX reference (mirrors the PyTorch forward op-for-op).
# --------------------------------------------------------------------------
def graphnet_ref(x, Rr, Rs, params, *, N, P, hidden, n_targets):
    B = x.shape[0]
    Nr = N * (N - 1)

    def lin(v, w, b):
        return v @ w.T + b

    xt = jnp.transpose(x, (0, 2, 1))                                  # (B, P, N)
    Orr = jnp.einsum("bpn,nr->bpr", xt, Rr)
    Ors = jnp.einsum("bpn,nr->bpr", xt, Rs)
    Bc = jnp.concatenate([Orr, Ors], axis=1)                          # (B, 2P, Nr)
    Bt = jnp.transpose(Bc, (0, 2, 1)).reshape(-1, 2 * P)
    h = jax.nn.relu(lin(Bt, params["fr1_w"], params["fr1_b"]))
    h = jax.nn.relu(lin(h, params["fr2_w"], params["fr2_b"]))
    E = jax.nn.relu(lin(h, params["fr3_w"], params["fr3_b"])).reshape(B, Nr, De)
    Et = jnp.transpose(E, (0, 2, 1))                                  # (B, De, Nr)
    Ebar = jnp.einsum("bdr,nr->bdn", Et, Rr)                          # (B, De, N)
    C = jnp.concatenate([xt, Ebar], axis=1)                           # (B, P+De, N)
    Ct = jnp.transpose(C, (0, 2, 1)).reshape(-1, P + De)
    c = jax.nn.relu(lin(Ct, params["fo1_w"], params["fo1_b"]))
    c = jax.nn.relu(lin(c, params["fo2_w"], params["fo2_b"]))
    O = jax.nn.relu(lin(c, params["fo3_w"], params["fo3_b"])).reshape(B, N * Do)
    g = jax.nn.relu(lin(O, params["fc1_w"], params["fc1_b"]))
    g = jax.nn.relu(lin(g, params["fc2_w"], params["fc2_b"]))
    return lin(g, params["fc3_w"], params["fc3_b"])


if __name__ == "__main__":
    # Module-consistent small shapes: N=8 constituents, P=4 features, hidden=32,
    # n_targets=2 -> Nr=56.  B=64 with TB=16 gives a 4-step "parallel" grid
    # (>=2 steps per TensorCore on v7x), TB*Nr=896 edge rows and TB*N=128
    # object rows per MXU pass.
    B, N, P, HIDDEN, T = 64, 8, 4, 32, 2
    TB = 16

    key = jax.random.PRNGKey(0)
    kx, kp = jax.random.split(key)
    x = jax.random.normal(kx, (B, N, P), jnp.float32)
    params = init_params(kp, P, N, HIDDEN, T)

    out = graphnet_pallas(x, params, N=N, P=P, hidden=HIDDEN, n_targets=T, tb=TB)
    out = jax.block_until_ready(out)

    # Validate against the f32 reference evaluated on bf16-rounded x / weights
    # (the kernel intentionally feeds the MXU bf16 operands with f32 accumulation
    # and re-rounds activations to bf16 between stages, hence the loose tolerance).
    rnd = lambda a: a.astype(jnp.bfloat16).astype(jnp.float32)
    x_r = rnd(x)
    params_r = {k: (v if k.endswith("_b") else rnd(v)) for k, v in params.items()}
    Rr_np, Rs_np = assign_matrices(N)
    ref = graphnet_ref(x_r, jnp.asarray(Rr_np), jnp.asarray(Rs_np), params_r,
                       N=N, P=P, hidden=HIDDEN, n_targets=T)
    np.testing.assert_allclose(np.asarray(out), np.asarray(ref), rtol=5e-2, atol=5e-2)

    print("KERNEL_OK")
</pallas_src>

<mosaic_0001>
module attributes {stable_mosaic.version = 11 : i64} {
  func.func @_graphnet_kernel(%arg0: i32, %arg1: memref<896x8xbf16, #tpu.memory_space<vmem>>, %arg2: memref<128x4xbf16, #tpu.memory_space<vmem>>, %arg3: memref<9x48x32xbf16, #tpu.memory_space<vmem>>, %arg4: memref<9x1x32xf32, #tpu.memory_space<vmem>>, %arg5: memref<16x2xf32, #tpu.memory_space<vmem>>) attributes {dimension_semantics = [#tpu.dimension_semantics<parallel>], iteration_bounds = array<i64: 4>, scalar_prefetch = 0 : i64, scratch_operands = 0 : i64, tpu.core_type = #tpu.core_type<tc>, window_params = [{transform_indices = @transform_0, window_bounds = array<i64: 896, 8>}, {transform_indices = @transform_1, window_bounds = array<i64: 128, 4>}, {pipeline_mode = #tpu.pipeline_mode<synchronous>, transform_indices = @transform_2, window_bounds = array<i64: 9, 48, 32>}, {pipeline_mode = #tpu.pipeline_mode<synchronous>, transform_indices = @transform_3, window_bounds = array<i64: 9, 1, 32>}, {transform_indices = @transform_4, window_bounds = array<i64: 16, 2>}]} {
    %c0 = arith.constant 0 : index
    %c0_0 = arith.constant 0 : index
    %0 = vector.load %arg1[%c0, %c0_0] : memref<896x8xbf16, #tpu.memory_space<vmem>>, vector<896x8xbf16>
    %c0_1 = arith.constant 0 : index
    %c0_2 = arith.constant 0 : index
    %c0_3 = arith.constant 0 : index
    %1 = vector.load %arg3[%c0_1, %c0_2, %c0_3] : memref<9x48x32xbf16, #tpu.memory_space<vmem>>, vector<1x48x32xbf16>
    %2 = vector.shape_cast %1 : vector<1x48x32xbf16> to vector<48x32xbf16>
    %3 = vector.extract_strided_slice %2 {offsets = [0, 0], sizes = [8, 32], strides = [1, 1]} : vector<48x32xbf16> to vector<8x32xbf16>
    %c0_4 = arith.constant 0 : index
    %c0_5 = arith.constant 0 : index
    %c0_6 = arith.constant 0 : index
    %4 = vector.load %arg4[%c0_4, %c0_5, %c0_6] : memref<9x1x32xf32, #tpu.memory_space<vmem>>, vector<1x1x32xf32>
    %5 = vector.shape_cast %4 : vector<1x1x32xf32> to vector<1x32xf32>
    %cst = arith.constant dense<0.000000e+00> : vector<896x32xf32>
    %6 = tpu.matmul %0, %3, %cst {dimension_numbers = #tpu.dot_dimension_numbers<[1], [0], [0], [1], [0, 0, 1, 1], [], []>} : vector<896x8xbf16>, vector<8x32xbf16>, vector<896x32xf32> -> vector<896x32xf32>
    %7 = vector.broadcast %5 : vector<1x32xf32> to vector<896x32xf32>
    %8 = arith.addf %6, %7 : vector<896x32xf32>
    %cst_7 = arith.constant 0.000000e+00 : f32
    %9 = vector.broadcast %cst_7 : f32 to vector<896x32xf32>
    %10 = arith.maximumf %8, %9 : vector<896x32xf32>
    %11 = arith.truncf %10 : vector<896x32xf32> to vector<896x32xbf16>
    %c1 = arith.constant 1 : index
    %c0_8 = arith.constant 0 : index
    %c0_9 = arith.constant 0 : index
    %12 = vector.load %arg3[%c1, %c0_8, %c0_9] : memref<9x48x32xbf16, #tpu.memory_space<vmem>>, vector<1x48x32xbf16>
    %13 = vector.shape_cast %12 : vector<1x48x32xbf16> to vector<48x32xbf16>
    %14 = vector.extract_strided_slice %13 {offsets = [0, 0], sizes = [32, 16], strides = [1, 1]} : vector<48x32xbf16> to vector<32x16xbf16>
    %c1_10 = arith.constant 1 : index
    %c0_11 = arith.constant 0 : index
    %c0_12 = arith.constant 0 : index
    %15 = vector.load %arg4[%c1_10, %c0_11, %c0_12] : memref<9x1x32xf32, #tpu.memory_space<vmem>>, vector<1x1x32xf32>
    %16 = vector.shape_cast %15 : vector<1x1x32xf32> to vector<1x32xf32>
    %17 = vector.extract_strided_slice %16 {offsets = [0, 0], sizes = [1, 16], strides = [1, 1]} : vector<1x32xf32> to vector<1x16xf32>
    %cst_13 = arith.constant dense<0.000000e+00> : vector<896x16xf32>
    %18 = tpu.matmul %11, %14, %cst_13 {dimension_numbers = #tpu.dot_dimension_numbers<[1], [0], [0], [1], [0, 0, 1, 1], [], []>} : vector<896x32xbf16>, vector<32x16xbf16>, vector<896x16xf32> -> vector<896x16xf32>
    %19 = vector.broadcast %17 : vector<1x16xf32> to vector<896x16xf32>
    %20 = arith.addf %18, %19 : vector<896x16xf32>
    %cst_14 = arith.constant 0.000000e+00 : f32
    %21 = vector.broadcast %cst_14 : f32 to vector<896x16xf32>
    %22 = arith.maximumf %20, %21 : vector<896x16xf32>
    %23 = arith.truncf %22 : vector<896x16xf32> to vector<896x16xbf16>
    %c2 = arith.constant 2 : index
    %c0_15 = arith.constant 0 : index
    %c0_16 = arith.constant 0 : index
    %24 = vector.load %arg3[%c2, %c0_15, %c0_16] : memref<9x48x32xbf16, #tpu.memory_space<vmem>>, vector<1x48x32xbf16>
    %25 = vector.shape_cast %24 : vector<1x48x32xbf16> to vector<48x32xbf16>
    %26 = vector.extract_strided_slice %25 {offsets = [0, 0], sizes = [16, 5], strides = [1, 1]} : vector<48x32xbf16> to vector<16x5xbf16>
    %c2_17 = arith.constant 2 : index
    %c0_18 = arith.constant 0 : index
    %c0_19 = arith.constant 0 : index
    %27 = vector.load %arg4[%c2_17, %c0_18, %c0_19] : memref<9x1x32xf32, #tpu.memory_space<vmem>>, vector<1x1x32xf32>
    %28 = vector.shape_cast %27 : vector<1x1x32xf32> to vector<1x32xf32>
    %29 = vector.extract_strided_slice %28 {offsets = [0, 0], sizes = [1, 5], strides = [1, 1]} : vector<1x32xf32> to vector<1x5xf32>
    %cst_20 = arith.constant dense<0.000000e+00> : vector<896x5xf32>
    %30 = tpu.matmul %23, %26, %cst_20 {dimension_numbers = #tpu.dot_dimension_numbers<[1], [0], [0], [1], [0, 0, 1, 1], [], []>} : vector<896x16xbf16>, vector<16x5xbf16>, vector<896x5xf32> -> vector<896x5xf32>
    %31 = vector.broadcast %29 : vector<1x5xf32> to vector<896x5xf32>
    %32 = arith.addf %30, %31 : vector<896x5xf32>
    %cst_21 = arith.constant 0.000000e+00 : f32
    %33 = vector.broadcast %cst_21 : f32 to vector<896x5xf32>
    %34 = arith.maximumf %32, %33 : vector<896x5xf32>
    %35 = vector.extract_strided_slice %34 {offsets = [0, 0], sizes = [128, 5], strides = [1, 1]} : vector<896x5xf32> to vector<128x5xf32>
    %36 = vector.extract_strided_slice %34 {offsets = [128, 0], sizes = [128, 5], strides = [1, 1]} : vector<896x5xf32> to vector<128x5xf32>
    %37 = arith.addf %35, %36 : vector<128x5xf32>
    %38 = vector.extract_strided_slice %34 {offsets = [256, 0], sizes = [128, 5], strides = [1, 1]} : vector<896x5xf32> to vector<128x5xf32>
    %39 = arith.addf %37, %38 : vector<128x5xf32>
    %40 = vector.extract_strided_slice %34 {offsets = [384, 0], sizes = [128, 5], strides = [1, 1]} : vector<896x5xf32> to vector<128x5xf32>
    %41 = arith.addf %39, %40 : vector<128x5xf32>
    %42 = vector.extract_strided_slice %34 {offsets = [512, 0], sizes = [128, 5], strides = [1, 1]} : vector<896x5xf32> to vector<128x5xf32>
    %43 = arith.addf %41, %42 : vector<128x5xf32>
    %44 = vector.extract_strided_slice %34 {offsets = [640, 0], sizes = [128, 5], strides = [1, 1]} : vector<896x5xf32> to vector<128x5xf32>
    %45 = arith.addf %43, %44 : vector<128x5xf32>
    %46 = vector.extract_strided_slice %34 {offsets = [768, 0], sizes = [128, 5], strides = [1, 1]} : vector<896x5xf32> to vector<128x5xf32>
    %47 = arith.addf %45, %46 : vector<128x5xf32>
    %c0_22 = arith.constant 0 : index
    %c0_23 = arith.constant 0 : index
    %48 = vector.load %arg2[%c0_22, %c0_23] : memref<128x4xbf16, #tpu.memory_space<vmem>>, vector<128x4xbf16>
    %49 = arith.truncf %47 : vector<128x5xf32> to vector<128x5xbf16>
    %50 = tpu.concatenate %48, %49 in 1 : vector<128x4xbf16>, vector<128x5xbf16> -> vector<128x9xbf16>
    %c3 = arith.constant 3 : index
    %c0_24 = arith.constant 0 : index
    %c0_25 = arith.constant 0 : index
    %51 = vector.load %arg3[%c3, %c0_24, %c0_25] : memref<9x48x32xbf16, #tpu.memory_space<vmem>>, vector<1x48x32xbf16>
    %52 = vector.shape_cast %51 : vector<1x48x32xbf16> to vector<48x32xbf16>
    %53 = vector.extract_strided_slice %52 {offsets = [0, 0], sizes = [9, 32], strides = [1, 1]} : vector<48x32xbf16> to vector<9x32xbf16>
    %c3_26 = arith.constant 3 : index
    %c0_27 = arith.constant 0 : index
    %c0_28 = arith.constant 0 : index
    %54 = vector.load %arg4[%c3_26, %c0_27, %c0_28] : memref<9x1x32xf32, #tpu.memory_space<vmem>>, vector<1x1x32xf32>
    %55 = vector.shape_cast %54 : vector<1x1x32xf32> to vector<1x32xf32>
    %cst_29 = arith.constant dense<0.000000e+00> : vector<128x32xf32>
    %56 = tpu.matmul %50, %53, %cst_29 {dimension_numbers = #tpu.dot_dimension_numbers<[1], [0], [0], [1], [0, 0, 1, 1], [], []>} : vector<128x9xbf16>, vector<9x32xbf16>, vector<128x32xf32> -> vector<128x32xf32>
    %57 = vector.broadcast %55 : vector<1x32xf32> to vector<128x32xf32>
    %58 = arith.addf %56, %57 : vector<128x32xf32>
    %cst_30 = arith.constant 0.000000e+00 : f32
    %59 = vector.broadcast %cst_30 : f32 to vector<128x32xf32>
    %60 = arith.maximumf %58, %59 : vector<128x32xf32>
    %61 = arith.truncf %60 : vector<128x32xf32> to vector<128x32xbf16>
    %c4 = arith.constant 4 : index
    %c0_31 = arith.constant 0 : index
    %c0_32 = arith.constant 0 : index
    %62 = vector.load %arg3[%c4, %c0_31, %c0_32] : memref<9x48x32xbf16, #tpu.memory_space<vmem>>, vector<1x48x32xbf16>
    %63 = vector.shape_cast %62 : vector<1x48x32xbf16> to vector<48x32xbf16>
    %64 = vector.extract_strided_slice %63 {offsets = [0, 0], sizes = [32, 16], strides = [1, 1]} : vector<48x32xbf16> to vector<32x16xbf16>
    %c4_33 = arith.constant 4 : index
    %c0_34 = arith.constant 0 : index
    %c0_35 = arith.constant 0 : index
    %65 = vector.load %arg4[%c4_33, %c0_34, %c0_35] : memref<9x1x32xf32, #tpu.memory_space<vmem>>, vector<1x1x32xf32>
    %66 = vector.shape_cast %65 : vector<1x1x32xf32> to vector<1x32xf32>
    %67 = vector.extract_strided_slice %66 {offsets = [0, 0], sizes = [1, 16], strides = [1, 1]} : vector<1x32xf32> to vector<1x16xf32>
    %cst_36 = arith.constant dense<0.000000e+00> : vector<128x16xf32>
    %68 = tpu.matmul %61, %64, %cst_36 {dimension_numbers = #tpu.dot_dimension_numbers<[1], [0], [0], [1], [0, 0, 1, 1], [], []>} : vector<128x32xbf16>, vector<32x16xbf16>, vector<128x16xf32> -> vector<128x16xf32>
    %69 = vector.broadcast %67 : vector<1x16xf32> to vector<128x16xf32>
    %70 = arith.addf %68, %69 : vector<128x16xf32>
    %cst_37 = arith.constant 0.000000e+00 : f32
    %71 = vector.broadcast %cst_37 : f32 to vector<128x16xf32>
    %72 = arith.maximumf %70, %71 : vector<128x16xf32>
    %73 = arith.truncf %72 : vector<128x16xf32> to vector<128x16xbf16>
    %c5 = arith.constant 5 : index
    %c0_38 = arith.constant 0 : index
    %c0_39 = arith.constant 0 : index
    %74 = vector.load %arg3[%c5, %c0_38, %c0_39] : memref<9x48x32xbf16, #tpu.memory_space<vmem>>, vector<1x48x32xbf16>
    %75 = vector.shape_cast %74 : vector<1x48x32xbf16> to vector<48x32xbf16>
    %76 = vector.extract_strided_slice %75 {offsets = [0, 0], sizes = [16, 6], strides = [1, 1]} : vector<48x32xbf16> to vector<16x6xbf16>
    %c5_40 = arith.constant 5 : index
    %c0_41 = arith.constant 0 : index
    %c0_42 = arith.constant 0 : index
    %77 = vector.load %arg4[%c5_40, %c0_41, %c0_42] : memref<9x1x32xf32, #tpu.memory_space<vmem>>, vector<1x1x32xf32>
    %78 = vector.shape_cast %77 : vector<1x1x32xf32> to vector<1x32xf32>
    %79 = vector.extract_strided_slice %78 {offsets = [0, 0], sizes = [1, 6], strides = [1, 1]} : vector<1x32xf32> to vector<1x6xf32>
    %cst_43 = arith.constant dense<0.000000e+00> : vector<128x6xf32>
    %80 = tpu.matmul %73, %76, %cst_43 {dimension_numbers = #tpu.dot_dimension_numbers<[1], [0], [0], [1], [0, 0, 1, 1], [], []>} : vector<128x16xbf16>, vector<16x6xbf16>, vector<128x6xf32> -> vector<128x6xf32>
    %81 = vector.broadcast %79 : vector<1x6xf32> to vector<128x6xf32>
    %82 = arith.addf %80, %81 : vector<128x6xf32>
    %cst_44 = arith.constant 0.000000e+00 : f32
    %83 = vector.broadcast %cst_44 : f32 to vector<128x6xf32>
    %84 = arith.maximumf %82, %83 : vector<128x6xf32>
    %85 = vector.extract_strided_slice %84 {offsets = [0, 0], sizes = [16, 6], strides = [1, 1]} : vector<128x6xf32> to vector<16x6xf32>
    %86 = vector.extract_strided_slice %84 {offsets = [16, 0], sizes = [16, 6], strides = [1, 1]} : vector<128x6xf32> to vector<16x6xf32>
    %87 = vector.extract_strided_slice %84 {offsets = [32, 0], sizes = [16, 6], strides = [1, 1]} : vector<128x6xf32> to vector<16x6xf32>
    %88 = vector.extract_strided_slice %84 {offsets = [48, 0], sizes = [16, 6], strides = [1, 1]} : vector<128x6xf32> to vector<16x6xf32>
    %89 = vector.extract_strided_slice %84 {offsets = [64, 0], sizes = [16, 6], strides = [1, 1]} : vector<128x6xf32> to vector<16x6xf32>
    %90 = vector.extract_strided_slice %84 {offsets = [80, 0], sizes = [16, 6], strides = [1, 1]} : vector<128x6xf32> to vector<16x6xf32>
    %91 = vector.extract_strided_slice %84 {offsets = [96, 0], sizes = [16, 6], strides = [1, 1]} : vector<128x6xf32> to vector<16x6xf32>
    %92 = vector.extract_strided_slice %84 {offsets = [112, 0], sizes = [16, 6], strides = [1, 1]} : vector<128x6xf32> to vector<16x6xf32>
    %93 = tpu.concatenate %85, %86, %87, %88, %89, %90, %91, %92 in 1 : vector<16x6xf32>, vector<16x6xf32>, vector<16x6xf32>, vector<16x6xf32>, vector<16x6xf32>, vector<16x6xf32>, vector<16x6xf32>, vector<16x6xf32> -> vector<16x48xf32>
    %94 = arith.truncf %93 : vector<16x48xf32> to vector<16x48xbf16>
    %c6 = arith.constant 6 : index
    %c0_45 = arith.constant 0 : index
    %c0_46 = arith.constant 0 : index
    %95 = vector.load %arg3[%c6, %c0_45, %c0_46] : memref<9x48x32xbf16, #tpu.memory_space<vmem>>, vector<1x48x32xbf16>
    %96 = vector.shape_cast %95 : vector<1x48x32xbf16> to vector<48x32xbf16>
    %c6_47 = arith.constant 6 : index
    %c0_48 = arith.constant 0 : index
    %c0_49 = arith.constant 0 : index
    %97 = vector.load %arg4[%c6_47, %c0_48, %c0_49] : memref<9x1x32xf32, #tpu.memory_space<vmem>>, vector<1x1x32xf32>
    %98 = vector.shape_cast %97 : vector<1x1x32xf32> to vector<1x32xf32>
    %cst_50 = arith.constant dense<0.000000e+00> : vector<16x32xf32>
    %99 = tpu.matmul %94, %96, %cst_50 {dimension_numbers = #tpu.dot_dimension_numbers<[1], [0], [0], [1], [0, 0, 1, 1], [], []>} : vector<16x48xbf16>, vector<48x32xbf16>, vector<16x32xf32> -> vector<16x32xf32>
    %100 = vector.broadcast %98 : vector<1x32xf32> to vector<16x32xf32>
    %101 = arith.addf %99, %100 : vector<16x32xf32>
    %cst_51 = arith.constant 0.000000e+00 : f32
    %102 = vector.broadcast %cst_51 : f32 to vector<16x32xf32>
    %103 = arith.maximumf %101, %102 : vector<16x32xf32>
    %104 = arith.truncf %103 : vector<16x32xf32> to vector<16x32xbf16>
    %c7 = arith.constant 7 : index
    %c0_52 = arith.constant 0 : index
    %c0_53 = arith.constant 0 : index
    %105 = vector.load %arg3[%c7, %c0_52, %c0_53] : memref<9x48x32xbf16, #tpu.memory_space<vmem>>, vector<1x48x32xbf16>
    %106 = vector.shape_cast %105 : vector<1x48x32xbf16> to vector<48x32xbf16>
    %107 = vector.extract_strided_slice %106 {offsets = [0, 0], sizes = [32, 16], strides = [1, 1]} : vector<48x32xbf16> to vector<32x16xbf16>
    %c7_54 = arith.constant 7 : index
    %c0_55 = arith.constant 0 : index
    %c0_56 = arith.constant 0 : index
    %108 = vector.load %arg4[%c7_54, %c0_55, %c0_56] : memref<9x1x32xf32, #tpu.memory_space<vmem>>, vector<1x1x32xf32>
    %109 = vector.shape_cast %108 : vector<1x1x32xf32> to vector<1x32xf32>
    %110 = vector.extract_strided_slice %109 {offsets = [0, 0], sizes = [1, 16], strides = [1, 1]} : vector<1x32xf32> to vector<1x16xf32>
    %cst_57 = arith.constant dense<0.000000e+00> : vector<16x16xf32>
    %111 = tpu.matmul %104, %107, %cst_57 {dimension_numbers = #tpu.dot_dimension_numbers<[1], [0], [0], [1], [0, 0, 1, 1], [], []>} : vector<16x32xbf16>, vector<32x16xbf16>, vector<16x16xf32> -> vector<16x16xf32>
    %112 = vector.broadcast %110 : vector<1x16xf32> to vector<16x16xf32>
    %113 = arith.addf %111, %112 : vector<16x16xf32>
    %cst_58 = arith.constant 0.000000e+00 : f32
    %114 = vector.broadcast %cst_58 : f32 to vector<16x16xf32>
    %115 = arith.maximumf %113, %114 : vector<16x16xf32>
    %116 = arith.truncf %115 : vector<16x16xf32> to vector<16x16xbf16>
    %c8 = arith.constant 8 : index
    %c0_59 = arith.constant 0 : index
    %c0_60 = arith.constant 0 : index
    %117 = vector.load %arg3[%c8, %c0_59, %c0_60] : memref<9x48x32xbf16, #tpu.memory_space<vmem>>, vector<1x48x32xbf16>
    %118 = vector.shape_cast %117 : vector<1x48x32xbf16> to vector<48x32xbf16>
    %119 = vector.extract_strided_slice %118 {offsets = [0, 0], sizes = [16, 2], strides = [1, 1]} : vector<48x32xbf16> to vector<16x2xbf16>
    %c8_61 = arith.constant 8 : index
    %c0_62 = arith.constant 0 : index
    %c0_63 = arith.constant 0 : index
    %120 = vector.load %arg4[%c8_61, %c0_62, %c0_63] : memref<9x1x32xf32, #tpu.memory_space<vmem>>, vector<1x1x32xf32>
    %121 = vector.shape_cast %120 : vector<1x1x32xf32> to vector<1x32xf32>
    %122 = vector.extract_strided_slice %121 {offsets = [0, 0], sizes = [1, 2], strides = [1, 1]} : vector<1x32xf32> to vector<1x2xf32>
    %cst_64 = arith.constant dense<0.000000e+00> : vector<16x2xf32>
    %123 = tpu.matmul %116, %119, %cst_64 {dimension_numbers = #tpu.dot_dimension_numbers<[1], [0], [0], [1], [0, 0, 1, 1], [], []>} : vector<16x16xbf16>, vector<16x2xbf16>, vector<16x2xf32> -> vector<16x2xf32>
    %124 = vector.broadcast %122 : vector<1x2xf32> to vector<16x2xf32>
    %125 = arith.addf %123, %124 : vector<16x2xf32>
    %c0_65 = arith.constant 0 : index
    %c0_66 = arith.constant 0 : index
    %126 = vector.load %arg5[%c0_65, %c0_66] : memref<16x2xf32, #tpu.memory_space<vmem>>, vector<16x2xf32>
    tpu.vector_store %arg5[%c0_65, %c0_66], %125 {strides = array<i32>} : memref<16x2xf32, #tpu.memory_space<vmem>>, vector<16x2xf32>,
    return
  }
  func.func @transform_0(%arg0: i32) -> (i32, i32) {
    %c0_i32 = arith.constant 0 : i32
    %c0_i32_0 = arith.constant 0 : i32
    return %arg0, %c0_i32 : i32, i32
  }
  func.func @transform_1(%arg0: i32) -> (i32, i32) {
    %c0_i32 = arith.constant 0 : i32
    %c0_i32_0 = arith.constant 0 : i32
    return %arg0, %c0_i32 : i32, i32
  }
  func.func @transform_2(%arg0: i32) -> (i32, i32, i32) {
    %c0_i32 = arith.constant 0 : i32
    %c0_i32_0 = arith.constant 0 : i32
    %c0_i32_1 = arith.constant 0 : i32
    %c0_i32_2 = arith.constant 0 : i32
    return %c0_i32, %c0_i32_0, %c0_i32_1 : i32, i32, i32
  }
  func.func @transform_3(%arg0: i32) -> (i32, i32, i32) {
    %c0_i32 = arith.constant 0 : i32
    %c0_i32_0 = arith.constant 0 : i32
    %c0_i32_1 = arith.constant 0 : i32
    %c0_i32_2 = arith.constant 0 : i32
    return %c0_i32, %c0_i32_0, %c0_i32_1 : i32, i32, i32
  }
  func.func @transform_4(%arg0: i32) -> (i32, i32) {
    %c0_i32 = arith.constant 0 : i32
    %c0_i32_0 = arith.constant 0 : i32
    return %arg0, %c0_i32 : i32, i32
  }
}

</mosaic_0001>

<llo_original>
// kernel: tpu_custom_call.1
$region0: #{tpu_custom_call.1}
  #allocation0 [shape = 'u32[]', space=smem, size = 0x4, offset = 0x4, fixed_abs, tag = 'smem constant byte address 0x4 - core index']
  #allocation1 [shape = 'u32[144,128]{1,0:T(1,128)}', space=vmem, size = 0x12000, scoped, tag = 'internal scratch']
  %s0 = inlined_call_operand.vmem [shape: bf16[3584,8], index: 0, kind: input, shape index: {}]
  %s1 = inlined_call_operand.vmem [shape: bf16[512,4], index: 1, kind: input, shape index: {}]
  %s2 = inlined_call_operand.vmem [shape: bf16[9,48,32], index: 2, kind: input, shape index: {}]
  %s3 = inlined_call_operand.vmem [shape: f32[9,1,32], index: 3, kind: input, shape index: {}]
  %s4 = inlined_call_operand.vmem [shape: f32[64,2], index: 4, kind: output, shape index: {}]
  %s5 = sld [smem:[#allocation0]]
  $region49: #{tpu_custom_call.1} parent=0
    _
  %s7 = ssub.s32 1, %s5
  %s8 = scalar_select 0, %s7, %s5
  loop: start=0, step=1, limit=6
  $region2: #{tpu_custom_call.1} parent=0 // loop_pre_header
    _
  $region3: #{tpu_custom_call.1} parent=0 // loop_header
    %s10 = sphi 0, %s14
    %p11 = scmp.ge.s32.totalorder %s10, 6
    %s20 = sphi 0, %s22
    %s23 = sphi 0, %s20
    %s24 = sphi 0, %s23
    %s40 = sphi 0, %s24
    %s46 = sphi 0, %s48
    %s49 = sphi 0, %s46
    %s50 = sphi 0, %s49
    %s66 = sphi 0, %s50
    %s70 = sphi 0, %s70
    %s72 = sphi 0, %s70
    %s73 = sphi 0, %s72
    %s87 = sphi 0, %s73
    %s91 = sphi 0, %s91
    %s93 = sphi 0, %s91
    %s94 = sphi 0, %s93
    %s108 = sphi 0, %s94
    %s114 = sphi 0, %s116
    %s117 = sphi 0, %s114
    %s118 = sphi 0, %s117
    %s134 = sphi 0, %s118
  $region4: #{tpu_custom_call.1} parent=0 // loop_header_branch
    %13 = sbr.rel (%p11) target = $region8
  $region5: #{tpu_custom_call.1} parent=0 // loop_body
    %s15 = ssub.s32 %s10, 1
    %s16 = ssub.s32 %s10, 2
    %s17 = sadd.s32 %s10, 1
    %s18 = ssub.s32 %s10, %s17
    %p19 = scmp.eq.s32.totalorder %s18, 0
    %s21 = sadd.s32 %s20, 1
    %s22 = scalar_select %p19, %s20, %s21
    %p25 = pneg %p19
    %p26 = scmp.eq.s32.totalorder %s10, 3
    %p27 = por %p25, %p26
    %p28 = scmp.ne.s32.totalorder %s20, %s23
    %p29 = scmp.eq.s32.totalorder %s10, 0
    %p30 = por %p28, %p29
    %p31 = scmp.ne.s32.totalorder %s20, %s23
    %p32 = scmp.eq.s32.totalorder %s15, 3
    %p33 = por %p31, %p32
    %p34 = scmp.ne.s32.totalorder %s23, %s24
    %p35 = scmp.eq.s32.totalorder %s15, 0
    %p36 = por %p34, %p35
    %p37 = scmp.ne.s32.totalorder %s23, %s24
    %p38 = scmp.eq.s32.totalorder %s16, 3
    %p39 = por %p37, %p38
    %p41 = scmp.ne.s32.totalorder %s24, %s40
    %p42 = scmp.eq.s32.totalorder %s16, 0
    %p43 = por %p41, %p42
    %s44 = ssub.s32 %s10, %s17
    %p45 = scmp.eq.s32.totalorder %s44, 0
    %s47 = sadd.s32 %s46, 1
    %s48 = scalar_select %p45, %s46, %s47
    %p51 = pneg %p45
    %p52 = scmp.eq.s32.totalorder %s10, 3
    %p53 = por %p51, %p52
    %p54 = scmp.ne.s32.totalorder %s46, %s49
    %p55 = scmp.eq.s32.totalorder %s10, 0
    %p56 = por %p54, %p55
    %p57 = scmp.ne.s32.totalorder %s46, %s49
    %p58 = scmp.eq.s32.totalorder %s15, 3
    %p59 = por %p57, %p58
    %p60 = scmp.ne.s32.totalorder %s49, %s50
    %p61 = scmp.eq.s32.totalorder %s15, 0
    %p62 = por %p60, %p61
    %p63 = scmp.ne.s32.totalorder %s49, %s50
    %p64 = scmp.eq.s32.totalorder %s16, 3
    %p65 = por %p63, %p64
    %p67 = scmp.ne.s32.totalorder %s50, %s66
    %p68 = scmp.eq.s32.totalorder %s16, 0
    %p69 = por %p67, %p68
    %s71 = sadd.s32 %s70, 1
    %p74 = scmp.eq.s32.totalorder %s10, 3
    %p75 = scmp.ne.s32.totalorder %s70, %s72
    %p76 = scmp.eq.s32.totalorder %s10, 0
    %p77 = por %p75, %p76
    %p78 = scmp.ne.s32.totalorder %s70, %s72
    %p79 = scmp.eq.s32.totalorder %s15, 3
    %p80 = por %p78, %p79
    %p81 = scmp.ne.s32.totalorder %s72, %s73
    %p82 = scmp.eq.s32.totalorder %s15, 0
    %p83 = por %p81, %p82
    %p84 = scmp.ne.s32.totalorder %s72, %s73
    %p85 = scmp.eq.s32.totalorder %s16, 3
    %p86 = por %p84, %p85
    %p88 = scmp.ne.s32.totalorder %s73, %s87
    %p89 = scmp.eq.s32.totalorder %s16, 0
    %p90 = por %p88, %p89
    %s92 = sadd.s32 %s91, 1
    %p95 = scmp.eq.s32.totalorder %s10, 3
    %p96 = scmp.ne.s32.totalorder %s91, %s93
    %p97 = scmp.eq.s32.totalorder %s10, 0
    %p98 = por %p96, %p97
    %p99 = scmp.ne.s32.totalorder %s91, %s93
    %p100 = scmp.eq.s32.totalorder %s15, 3
    %p101 = por %p99, %p100
    %p102 = scmp.ne.s32.totalorder %s93, %s94
    %p103 = scmp.eq.s32.totalorder %s15, 0
    %p104 = por %p102, %p103
    %p105 = scmp.ne.s32.totalorder %s93, %s94
    %p106 = scmp.eq.s32.totalorder %s16, 3
    %p107 = por %p105, %p106
    %p109 = scmp.ne.s32.totalorder %s94, %s108
    %p110 = scmp.eq.s32.totalorder %s16, 0
    %p111 = por %p109, %p110
    %s112 = ssub.s32 %s10, %s17
    %p113 = scmp.eq.s32.totalorder %s112, 0
    %s115 = sadd.s32 %s114, 1
    %s116 = scalar_select %p113, %s114, %s115
    %p119 = pneg %p113
    %p120 = scmp.eq.s32.totalorder %s10, 3
    %p121 = por %p119, %p120
    %p122 = scmp.ne.s32.totalorder %s114, %s117
    %p123 = scmp.eq.s32.totalorder %s10, 0
    %p124 = por %p122, %p123
    %p125 = scmp.ne.s32.totalorder %s114, %s117
    %p126 = scmp.eq.s32.totalorder %s15, 3
    %p127 = por %p125, %p126
    %p128 = scmp.ne.s32.totalorder %s117, %s118
    %p129 = scmp.eq.s32.totalorder %s15, 0
    %p130 = por %p128, %p129
    %p131 = scmp.ne.s32.totalorder %s117, %s118
    %p132 = scmp.eq.s32.totalorder %s16, 3
    %p133 = por %p131, %p132
    %p135 = scmp.ne.s32.totalorder %s118, %s134
    %p136 = scmp.eq.s32.totalorder %s16, 0
    %p137 = por %p135, %p136
    %p138 = scmp.le.s32.totalorder 1, %s10
    %p139 = scmp.lt.s32.totalorder %s10, 5
    %p140 = pnand %p138, %p139
    %p141 = pneg %p140
    // Predicated region
    $region9: #{tpu_custom_call.1} parent=5 // pred_check
      _
    $region10: #{tpu_custom_call.1} parent=5 // pred_check_branch
      %143 = sbr.rel (%p140) target = $region12
    $region11: #{tpu_custom_call.1} parent=5 // pred_region
      %s144 = ssub.s32 %s10, 1
      // Predicated region
      $region13: #{tpu_custom_call.1} parent=11 // pred_check
        %p145 = pneg %p83
      $region14: #{tpu_custom_call.1} parent=11 // pred_check_branch
        %147 = sbr.rel (%p145) target = $region16
      $region15: #{tpu_custom_call.1} parent=11 // pred_region
        _
      $region16: #{tpu_custom_call.1} parent=11 // pred_fallthru
        _
      // Predicated region
      $region17: #{tpu_custom_call.1} parent=11 // pred_check
        %p148 = pneg %p104
      $region18: #{tpu_custom_call.1} parent=11 // pred_check_branch
        %150 = sbr.rel (%p148) target = $region20
      $region19: #{tpu_custom_call.1} parent=11 // pred_region
        _
      $region20: #{tpu_custom_call.1} parent=11 // pred_fallthru
        _
    $region12: #{tpu_custom_call.1} parent=5 // pred_fallthru
      _
    %p151 = scmp.lt.s32.totalorder %s10, 4
    // Predicated region
    $region21: #{tpu_custom_call.1} parent=5 // pred_check
      %p152 = pneg %p151
    $region22: #{tpu_custom_call.1} parent=5 // pred_check_branch
      %154 = sbr.rel (%p152) target = $region24
    $region23: #{tpu_custom_call.1} parent=5 // pred_region
      // Predicated region
      $region25: #{tpu_custom_call.1} parent=23 // pred_check
        %p155 = pneg %p30
      $region26: #{tpu_custom_call.1} parent=23 // pred_check_branch
        %157 = sbr.rel (%p155) target = $region28
      $region27: #{tpu_custom_call.1} parent=23 // pred_region
        %s158 = smul.u32 112, %s10
        %p159 = scmp.lt.s32.totalorder %s158, 447
        %s160 = scalar_select %p159, %s158, 447
        %s161 = smul.addr %s160, 4
        %s162 = scalar_lea.vmem %s0, %s161
        %s163 = smul.u32 112, %s10
      $region28: #{tpu_custom_call.1} parent=23 // pred_fallthru
        _
      // Predicated region
      $region29: #{tpu_custom_call.1} parent=23 // pred_check
        %p164 = pneg %p56
      $region30: #{tpu_custom_call.1} parent=23 // pred_check_branch
        %166 = sbr.rel (%p164) target = $region32
      $region31: #{tpu_custom_call.1} parent=23 // pred_region
        %s167 = smul.u32 16, %s10
        %p168 = scmp.lt.s32.totalorder %s167, 63
        %s169 = scalar_select %p168, %s167, 63
        %s170 = smul.addr %s169, 4
        %s171 = scalar_lea.vmem %s1, %s170
        %s172 = smul.u32 16, %s10
      $region32: #{tpu_custom_call.1} parent=23 // pred_fallthru
        _
    $region24: #{tpu_custom_call.1} parent=5 // pred_fallthru
      _
    %p173 = scmp.le.s32.totalorder 1, %s10
    %p174 = scmp.lt.s32.totalorder %s10, 5
    %p175 = pnand %p173, %p174
    %p176 = pneg %p175
    // Predicated region
    $region33: #{tpu_custom_call.1} parent=5 // pred_check
      _
    $region34: #{tpu_custom_call.1} parent=5 // pred_check_branch
      %178 = sbr.rel (%p175) target = $region36
    $region35: #{tpu_custom_call.1} parent=5 // pred_region
      %s179 = ssub.s32 %s10, 1
      %s180 = smul.u32 112, %s15
      %p181 = scmp.lt.s32.totalorder %s180, 447
      %s182 = scalar_select %p181, %s180, 447
      %s183 = smul.addr %s182, 4
      %s184 = scalar_lea.vmem %s0, %s183
      %p185 = pneg %p36
      %p186 = pneg %p33
      %s187 = smul.u32 16, %s15
      %p188 = scmp.lt.s32.totalorder %s187, 63
      %s189 = scalar_select %p188, %s187, 63
      %s190 = smul.addr %s189, 4
      %s191 = scalar_lea.vmem %s1, %s190
      %p192 = pneg %p62
      %p193 = pneg %p59
      %p194 = pneg %p83
      %p195 = pneg %p80
      %p196 = pneg %p104
      %p197 = pneg %p101
      %p198 = pneg %p130
      %p199 = pneg %p127
      %s200 = smul.u32 2, %s15
      %p201 = scmp.lt.s32.totalorder %s200, 7
      %s202 = scalar_select %p201, %s200, 7
      %s203 = smul.addr %s202, 8
      %s204 = scalar_lea.vmem %s4, %s203
      %s205 = smul.u32 112, %s15
      %p206 = scmp.lt.s32.totalorder %s205, 447
      %s207 = scalar_select %p206, %s205, 447
      %s208 = smul.addr %s207, 4
      %s209 = scalar_lea.vmem %s0, %s208
      %s210 = smul.u32 112, %s15
      %s211 = smul.u32 16, %s15
      %p212 = scmp.lt.s32.totalorder %s211, 63
      %s213 = scalar_select %p212, %s211, 63
      %s214 = smul.addr %s213, 4
      %s215 = scalar_lea.vmem %s1, %s214
      %s216 = smul.u32 16, %s15
      %s217 = smul.u32 2, %s15
      %p218 = scmp.lt.s32.totalorder %s217, 7
      %s219 = scalar_select %p218, %s217, 7
      %s220 = smul.addr %s219, 8
      %s221 = scalar_lea.vmem %s4, %s220
      %s222 = smul.u32 2, %s15
      %v224 = vld [vmem:[%s209] sm:$0xf]
      %v225 = vld [vmem:[%s209 + $0x4] sm:$0xf]
      %v226 = vld [vmem:[%s209 + $0x8] sm:$0xf]
      %v227 = vld [vmem:[%s209 + $0xc] sm:$0xf]
      %v228 = vld [vmem:[%s209 + $0x10] sm:$0xf]
      %v229 = vld [vmem:[%s209 + $0x14] sm:$0xf]
      %v230 = vld [vmem:[%s209 + $0x18] sm:$0xf]
      %v231 = vld [vmem:[%s209 + $0x1c] sm:$0xf]
      %v232 = vld [vmem:[%s209 + $0x20] sm:$0xf]
      %v233 = vld [vmem:[%s209 + $0x24] sm:$0xf]
      %v234 = vld [vmem:[%s209 + $0x28] sm:$0xf]
      %v235 = vld [vmem:[%s209 + $0x2c] sm:$0xf]
      %v236 = vld [vmem:[%s209 + $0x30] sm:$0xf]
      %v237 = vld [vmem:[%s209 + $0x34] sm:$0xf]
      %v238 = vld [vmem:[%s209 + $0x38] sm:$0xf]
      %v239 = vld [vmem:[%s209 + $0x3c] sm:$0xf]
      %v240 = vld [vmem:[%s209 + $0x40] sm:$0xf]
      %v241 = vld [vmem:[%s209 + $0x44] sm:$0xf]
      %v242 = vld [vmem:[%s209 + $0x48] sm:$0xf]
      %v243 = vld [vmem:[%s209 + $0x4c] sm:$0xf]
      %v244 = vld [vmem:[%s209 + $0x50] sm:$0xf]
      %v245 = vld [vmem:[%s209 + $0x54] sm:$0xf]
      %v246 = vld [vmem:[%s209 + $0x58] sm:$0xf]
      %v247 = vld [vmem:[%s209 + $0x5c] sm:$0xf]
      %v248 = vld [vmem:[%s209 + $0x60] sm:$0xf]
      %v249 = vld [vmem:[%s209 + $0x64] sm:$0xf]
      %v250 = vld [vmem:[%s209 + $0x68] sm:$0xf]
      %v251 = vld [vmem:[%s209 + $0x6c] sm:$0xf]
      %v252 = vld [vmem:[%s209 + $0x70] sm:$0xf]
      %v253 = vld [vmem:[%s209 + $0x74] sm:$0xf]
      %v254 = vld [vmem:[%s209 + $0x78] sm:$0xf]
      %v255 = vld [vmem:[%s209 + $0x7c] sm:$0xf]
      %v256 = vld [vmem:[%s209 + $0x80] sm:$0xf]
      %v257 = vld [vmem:[%s209 + $0x84] sm:$0xf]
      %v258 = vld [vmem:[%s209 + $0x88] sm:$0xf]
      %v259 = vld [vmem:[%s209 + $0x8c] sm:$0xf]
      %v260 = vld [vmem:[%s209 + $0x90] sm:$0xf]
      %v261 = vld [vmem:[%s209 + $0x94] sm:$0xf]
      %v262 = vld [vmem:[%s209 + $0x98] sm:$0xf]
      %v263 = vld [vmem:[%s209 + $0x9c] sm:$0xf]
      %v264 = vld [vmem:[%s209 + $0xa0] sm:$0xf]
      %v265 = vld [vmem:[%s209 + $0xa4] sm:$0xf]
      %v266 = vld [vmem:[%s209 + $0xa8] sm:$0xf]
      %v267 = vld [vmem:[%s209 + $0xac] sm:$0xf]
      %v268 = vld [vmem:[%s209 + $0xb0] sm:$0xf]
      %v269 = vld [vmem:[%s209 + $0xb4] sm:$0xf]
      %v270 = vld [vmem:[%s209 + $0xb8] sm:$0xf]
      %v271 = vld [vmem:[%s209 + $0xbc] sm:$0xf]
      %v272 = vld [vmem:[%s209 + $0xc0] sm:$0xf]
      %v273 = vld [vmem:[%s209 + $0xc4] sm:$0xf]
      %v274 = vld [vmem:[%s209 + $0xc8] sm:$0xf]
      %v275 = vld [vmem:[%s209 + $0xcc] sm:$0xf]
      %v276 = vld [vmem:[%s209 + $0xd0] sm:$0xf]
      %v277 = vld [vmem:[%s209 + $0xd4] sm:$0xf]
      %v278 = vld [vmem:[%s209 + $0xd8] sm:$0xf]
      %v279 = vld [vmem:[%s209 + $0xdc] sm:$0xf]
      %v280 = vld [vmem:[%s209 + $0xe0] sm:$0xf]
      %v281 = vld [vmem:[%s209 + $0xe4] sm:$0xf]
      %v282 = vld [vmem:[%s209 + $0xe8] sm:$0xf]
      %v283 = vld [vmem:[%s209 + $0xec] sm:$0xf]
      %v284 = vld [vmem:[%s209 + $0xf0] sm:$0xf]
      %v285 = vld [vmem:[%s209 + $0xf4] sm:$0xf]
      %v286 = vld [vmem:[%s209 + $0xf8] sm:$0xf]
      %v287 = vld [vmem:[%s209 + $0xfc] sm:$0xf]
      %v288 = vld [vmem:[%s209 + $0x100] sm:$0xf]
      %v289 = vld [vmem:[%s209 + $0x104] sm:$0xf]
      %v290 = vld [vmem:[%s209 + $0x108] sm:$0xf]
      %v291 = vld [vmem:[%s209 + $0x10c] sm:$0xf]
      %v292 = vld [vmem:[%s209 + $0x110] sm:$0xf]
      %v293 = vld [vmem:[%s209 + $0x114] sm:$0xf]
      %v294 = vld [vmem:[%s209 + $0x118] sm:$0xf]
      %v295 = vld [vmem:[%s209 + $0x11c] sm:$0xf]
      %v296 = vld [vmem:[%s209 + $0x120] sm:$0xf]
      %v297 = vld [vmem:[%s209 + $0x124] sm:$0xf]
      %v298 = vld [vmem:[%s209 + $0x128] sm:$0xf]
      %v299 = vld [vmem:[%s209 + $0x12c] sm:$0xf]
      %v300 = vld [vmem:[%s209 + $0x130] sm:$0xf]
      %v301 = vld [vmem:[%s209 + $0x134] sm:$0xf]
      %v302 = vld [vmem:[%s209 + $0x138] sm:$0xf]
      %v303 = vld [vmem:[%s209 + $0x13c] sm:$0xf]
      %v304 = vld [vmem:[%s209 + $0x140] sm:$0xf]
      %v305 = vld [vmem:[%s209 + $0x144] sm:$0xf]
      %v306 = vld [vmem:[%s209 + $0x148] sm:$0xf]
      %v307 = vld [vmem:[%s209 + $0x14c] sm:$0xf]
      %v308 = vld [vmem:[%s209 + $0x150] sm:$0xf]
      %v309 = vld [vmem:[%s209 + $0x154] sm:$0xf]
      %v310 = vld [vmem:[%s209 + $0x158] sm:$0xf]
      %v311 = vld [vmem:[%s209 + $0x15c] sm:$0xf]
      %v312 = vld [vmem:[%s209 + $0x160] sm:$0xf]
      %v313 = vld [vmem:[%s209 + $0x164] sm:$0xf]
      %v314 = vld [vmem:[%s209 + $0x168] sm:$0xf]
      %v315 = vld [vmem:[%s209 + $0x16c] sm:$0xf]
      %v316 = vld [vmem:[%s209 + $0x170] sm:$0xf]
      %v317 = vld [vmem:[%s209 + $0x174] sm:$0xf]
      %v318 = vld [vmem:[%s209 + $0x178] sm:$0xf]
      %v319 = vld [vmem:[%s209 + $0x17c] sm:$0xf]
      %v320 = vld [vmem:[%s209 + $0x180] sm:$0xf]
      %v321 = vld [vmem:[%s209 + $0x184] sm:$0xf]
      %v322 = vld [vmem:[%s209 + $0x188] sm:$0xf]
      %v323 = vld [vmem:[%s209 + $0x18c] sm:$0xf]
      %v324 = vld [vmem:[%s209 + $0x190] sm:$0xf]
      %v325 = vld [vmem:[%s209 + $0x194] sm:$0xf]
      %v326 = vld [vmem:[%s209 + $0x198] sm:$0xf]
      %v327 = vld [vmem:[%s209 + $0x19c] sm:$0xf]
      %v328 = vld [vmem:[%s209 + $0x1a0] sm:$0xf]
      %v329 = vld [vmem:[%s209 + $0x1a4] sm:$0xf]
      %v330 = vld [vmem:[%s209 + $0x1a8] sm:$0xf]
      %v331 = vld [vmem:[%s209 + $0x1ac] sm:$0xf]
      %v332 = vld [vmem:[%s209 + $0x1b0] sm:$0xf]
      %v333 = vld [vmem:[%s209 + $0x1b4] sm:$0xf]
      %v334 = vld [vmem:[%s209 + $0x1b8] sm:$0xf]
      %v335 = vld [vmem:[%s209 + $0x1bc] sm:$0xf]
      %v336 = vld [vmem:[%s2] sm:$0xf]
      %v337 = vld [vmem:[%s3] sm:$0x1]
      %v339 = vlaneseq
      %v340 = vshrl.u32 %v339, 7
      %v341 = vsub.s32 0, %v340
      %v342 = vrot.slane %v337, %v341
      %v456 = vunpack.c.l.b16 %v224
      %v457 = vunpack.c.l.b16 %v225
      %v458 = vunpack.c.l.b16 %v226
      %v459 = vunpack.c.l.b16 %v227
      %v460 = vunpack.c.l.b16 %v228
      %v461 = vunpack.c.l.b16 %v229
      %v462 = vunpack.c.l.b16 %v230
      %v463 = vunpack.c.l.b16 %v231
      %v464 = vunpack.c.l.b16 %v232
      %v465 = vunpack.c.l.b16 %v233
      %v466 = vunpack.c.l.b16 %v234
      %v467 = vunpack.c.l.b16 %v235
      %v468 = vunpack.c.l.b16 %v236
      %v469 = vunpack.c.l.b16 %v237
      %v470 = vunpack.c.l.b16 %v238
      %v471 = vunpack.c.l.b16 %v239
      %v472 = vunpack.c.l.b16 %v240
      %v473 = vunpack.c.l.b16 %v241
      %v474 = vunpack.c.l.b16 %v242
      %v475 = vunpack.c.l.b16 %v243
      %v476 = vunpack.c.l.b16 %v244
      %v477 = vunpack.c.l.b16 %v245
      %v478 = vunpack.c.l.b16 %v246
      %v479 = vunpack.c.l.b16 %v247
      %v480 = vunpack.c.l.b16 %v248
      %v481 = vunpack.c.l.b16 %v249
      %v482 = vunpack.c.l.b16 %v250
      %v483 = vunpack.c.l.b16 %v251
      %v484 = vunpack.c.l.b16 %v252
      %v485 = vunpack.c.l.b16 %v253
      %v486 = vunpack.c.l.b16 %v254
      %v487 = vunpack.c.l.b16 %v255
      %v488 = vunpack.c.l.b16 %v256
      %v489 = vunpack.c.l.b16 %v257
      %v490 = vunpack.c.l.b16 %v258
      %v491 = vunpack.c.l.b16 %v259
      %v492 = vunpack.c.l.b16 %v260
      %v493 = vunpack.c.l.b16 %v261
      %v494 = vunpack.c.l.b16 %v262
      %v495 = vunpack.c.l.b16 %v263
      %v496 = vunpack.c.l.b16 %v264
      %v497 = vunpack.c.l.b16 %v265
      %v498 = vunpack.c.l.b16 %v266
      %v499 = vunpack.c.l.b16 %v267
      %v500 = vunpack.c.l.b16 %v268
      %v501 = vunpack.c.l.b16 %v269
      %v502 = vunpack.c.l.b16 %v270
      %v503 = vunpack.c.l.b16 %v271
      %v504 = vunpack.c.l.b16 %v272
      %v505 = vunpack.c.l.b16 %v273
      %v506 = vunpack.c.l.b16 %v274
      %v507 = vunpack.c.l.b16 %v275
      %v508 = vunpack.c.l.b16 %v276
      %v509 = vunpack.c.l.b16 %v277
      %v510 = vunpack.c.l.b16 %v278
      %v511 = vunpack.c.l.b16 %v279
      %v512 = vunpack.c.l.b16 %v280
      %v513 = vunpack.c.l.b16 %v281
      %v514 = vunpack.c.l.b16 %v282
      %v515 = vunpack.c.l.b16 %v283
      %v516 = vunpack.c.l.b16 %v284
      %v517 = vunpack.c.l.b16 %v285
      %v518 = vunpack.c.l.b16 %v286
      %v519 = vunpack.c.l.b16 %v287
      %v520 = vunpack.c.l.b16 %v288
      %v521 = vunpack.c.l.b16 %v289
      %v522 = vunpack.c.l.b16 %v290
      %v523 = vunpack.c.l.b16 %v291
      %v524 = vunpack.c.l.b16 %v292
      %v525 = vunpack.c.l.b16 %v293
      %v526 = vunpack.c.l.b16 %v294
      %v527 = vunpack.c.l.b16 %v295
      %v528 = vunpack.c.l.b16 %v296
      %v529 = vunpack.c.l.b16 %v297
      %v530 = vunpack.c.l.b16 %v298
      %v531 = vunpack.c.l.b16 %v299
      %v532 = vunpack.c.l.b16 %v300
      %v533 = vunpack.c.l.b16 %v301
      %v534 = vunpack.c.l.b16 %v302
      %v535 = vunpack.c.l.b16 %v303
      %v536 = vunpack.c.l.b16 %v304
      %v537 = vunpack.c.l.b16 %v305
      %v538 = vunpack.c.l.b16 %v306
      %v539 = vunpack.c.l.b16 %v307
      %v540 = vunpack.c.l.b16 %v308
      %v541 = vunpack.c.l.b16 %v309
      %v542 = vunpack.c.l.b16 %v310
      %v543 = vunpack.c.l.b16 %v311
      %v544 = vunpack.c.l.b16 %v312
      %v545 = vunpack.c.l.b16 %v313
      %v546 = vunpack.c.l.b16 %v314
      %v547 = vunpack.c.l.b16 %v315
      %v548 = vunpack.c.l.b16 %v316
      %v549 = vunpack.c.l.b16 %v317
      %v550 = vunpack.c.l.b16 %v318
      %v551 = vunpack.c.l.b16 %v319
      %v552 = vunpack.c.l.b16 %v320
      %v553 = vunpack.c.l.b16 %v321
      %v554 = vunpack.c.l.b16 %v322
      %v555 = vunpack.c.l.b16 %v323
      %v556 = vunpack.c.l.b16 %v324
      %v557 = vunpack.c.l.b16 %v325
      %v558 = vunpack.c.l.b16 %v326
      %v559 = vunpack.c.l.b16 %v327
      %v560 = vunpack.c.l.b16 %v328
      %v561 = vunpack.c.l.b16 %v329
      %v562 = vunpack.c.l.b16 %v330
      %v563 = vunpack.c.l.b16 %v331
      %v564 = vunpack.c.l.b16 %v332
      %v565 = vunpack.c.l.b16 %v333
      %v566 = vunpack.c.l.b16 %v334
      %v567 = vunpack.c.l.b16 %v335
      %v568 = vpack.c.b16 %v457, %v456
      %v569 = vpack.c.b16 %v459, %v458
      %v570 = vpack.c.b16 %v461, %v460
      %v571 = vpack.c.b16 %v463, %v462
      %v572 = vpack.c.b16 %v465, %v464
      %v573 = vpack.c.b16 %v467, %v466
      %v574 = vpack.c.b16 %v469, %v468
      %v575 = vpack.c.b16 %v471, %v470
      %v576 = vpack.c.b16 %v473, %v472
      %v577 = vpack.c.b16 %v475, %v474
      %v578 = vpack.c.b16 %v477, %v476
      %v579 = vpack.c.b16 %v479, %v478
      %v580 = vpack.c.b16 %v481, %v480
      %v581 = vpack.c.b16 %v483, %v482
      %v582 = vpack.c.b16 %v485, %v484
      %v583 = vpack.c.b16 %v487, %v486
      %v584 = vpack.c.b16 %v489, %v488
      %v585 = vpack.c.b16 %v491, %v490
      %v586 = vpack.c.b16 %v493, %v492
      %v587 = vpack.c.b16 %v495, %v494
      %v588 = vpack.c.b16 %v497, %v496
      %v589 = vpack.c.b16 %v499, %v498
      %v590 = vpack.c.b16 %v501, %v500
      %v591 = vpack.c.b16 %v503, %v502
      %v592 = vpack.c.b16 %v505, %v504
      %v593 = vpack.c.b16 %v507, %v506
      %v594 = vpack.c.b16 %v509, %v508
      %v595 = vpack.c.b16 %v511, %v510
      %v596 = vpack.c.b16 %v513, %v512
      %v597 = vpack.c.b16 %v515, %v514
      %v598 = vpack.c.b16 %v517, %v516
      %v599 = vpack.c.b16 %v519, %v518
      %v600 = vpack.c.b16 %v521, %v520
      %v601 = vpack.c.b16 %v523, %v522
      %v602 = vpack.c.b16 %v525, %v524
      %v603 = vpack.c.b16 %v527, %v526
      %v604 = vpack.c.b16 %v529, %v528
      %v605 = vpack.c.b16 %v531, %v530
      %v606 = vpack.c.b16 %v533, %v532
      %v607 = vpack.c.b16 %v535, %v534
      %v608 = vpack.c.b16 %v537, %v536
      %v609 = vpack.c.b16 %v539, %v538
      %v610 = vpack.c.b16 %v541, %v540
      %v611 = vpack.c.b16 %v543, %v542
      %v612 = vpack.c.b16 %v545, %v544
      %v613 = vpack.c.b16 %v547, %v546
      %v614 = vpack.c.b16 %v549, %v548
      %v615 = vpack.c.b16 %v551, %v550
      %v616 = vpack.c.b16 %v553, %v552
      %v617 = vpack.c.b16 %v555, %v554
      %v618 = vpack.c.b16 %v557, %v556
      %v619 = vpack.c.b16 %v559, %v558
      %v620 = vpack.c.b16 %v561, %v560
      %v621 = vpack.c.b16 %v563, %v562
      %v622 = vpack.c.b16 %v565, %v564
      %v623 = vpack.c.b16 %v567, %v566
      %vm624 = vcmask 64512
      %v626 = vsel %vm624, %v568, 0
      %v629 = vsel %vm624, %v569, 0
      %v632 = vsel %vm624, %v570, 0
      %v635 = vsel %vm624, %v571, 0
      %v638 = vsel %vm624, %v572, 0
      %v641 = vsel %vm624, %v573, 0
      %v644 = vsel %vm624, %v574, 0
      %v647 = vsel %vm624, %v575, 0
      %v650 = vsel %vm624, %v576, 0
      %v653 = vsel %vm624, %v577, 0
      %v656 = vsel %vm624, %v578, 0
      %v659 = vsel %vm624, %v579, 0
      %v662 = vsel %vm624, %v580, 0
      %v665 = vsel %vm624, %v581, 0
      %v668 = vsel %vm624, %v582, 0
      %v671 = vsel %vm624, %v583, 0
      %v674 = vsel %vm624, %v584, 0
      %v677 = vsel %vm624, %v585, 0
      %v680 = vsel %vm624, %v586, 0
      %v683 = vsel %vm624, %v587, 0
      %v686 = vsel %vm624, %v588, 0
      %v689 = vsel %vm624, %v589, 0
      %v692 = vsel %vm624, %v590, 0
      %v695 = vsel %vm624, %v591, 0
      %v698 = vsel %vm624, %v592, 0
      %v701 = vsel %vm624, %v593, 0
      %v704 = vsel %vm624, %v594, 0
      %v707 = vsel %vm624, %v595, 0
      %v710 = vsel %vm624, %v596, 0
      %v713 = vsel %vm624, %v597, 0
      %v716 = vsel %vm624, %v598, 0
      %v719 = vsel %vm624, %v599, 0
      %v722 = vsel %vm624, %v600, 0
      %v725 = vsel %vm624, %v601, 0
      %v728 = vsel %vm624, %v602, 0
      %v731 = vsel %vm624, %v603, 0
      %v734 = vsel %vm624, %v604, 0
      %v737 = vsel %vm624, %v605, 0
      %v740 = vsel %vm624, %v606, 0
      %v743 = vsel %vm624, %v607, 0
      %v746 = vsel %vm624, %v608, 0
      %v749 = vsel %vm624, %v609, 0
      %v752 = vsel %vm624, %v610, 0
      %v755 = vsel %vm624, %v611, 0
      %v758 = vsel %vm624, %v612, 0
      %v761 = vsel %vm624, %v613, 0
      %v764 = vsel %vm624, %v614, 0
      %v767 = vsel %vm624, %v615, 0
      %v770 = vsel %vm624, %v616, 0
      %v773 = vsel %vm624, %v617, 0
      %v776 = vsel %vm624, %v618, 0
      %v779 = vsel %vm624, %v619, 0
      %v782 = vsel %vm624, %v620, 0
      %v785 = vsel %vm624, %v621, 0
      %v788 = vsel %vm624, %v622, 0
      %v791 = vsel %vm624, %v623, 0
      %vm793 = vcmask 1043456
      %v795 = vsel %vm793, %v336, 0
      %797 = vmatprep.subr.bf16.mxu0 0
      %798 = vmatpush1.bf16.msra.mxu0 %v795
      %799 = vmatprep.subr.bf16.mxu0 0
      %800 = vmatpush1.bf16.msra.mxu0 0
      %801 = vmatprep.subr.bf16.mxu0 0
      %802 = vmatpush1.bf16.msra.mxu0 0
      %803 = vmatprep.subr.bf16.mxu0 0
      %804 = vmatpush1.bf16.msra.mxu0 0
      %805 = vmatprep.subr.bf16.mxu0 0
      %806 = vmatpush1.bf16.msra.mxu0 0
      %807 = vmatprep.subr.bf16.mxu0 0
      %808 = vmatpush1.bf16.msra.mxu0 0
      %809 = vmatprep.subr.bf16.mxu0 0
      %810 = vmatpush1.bf16.msra.mxu0 0
      %811 = vmatprep.subr.bf16.mxu0 0
      %812 = vmatpush1.bf16.msra.mxu0 0
      %813 = vmatprep.subr.bf16.mxu0 0
      %814 = vmatpush1.bf16.msra.mxu0 0
      %815 = vmatprep.subr.bf16.mxu0 0
      %816 = vmatpush1.bf16.msra.mxu0 0
      %817 = vmatprep.subr.bf16.mxu0 0
      %818 = vmatpush1.bf16.msra.mxu0 0
      %819 = vmatprep.subr.bf16.mxu0 0
      %820 = vmatpush1.bf16.msra.mxu0 0
      %821 = vmatprep.subr.bf16.mxu0 0
      %822 = vmatpush1.bf16.msra.mxu0 0
      %823 = vmatprep.subr.bf16.mxu0 0
      %824 = vmatpush1.bf16.msra.mxu0 0
      %825 = vmatprep.subr.bf16.mxu0 0
      %826 = vmatpush1.bf16.msra.mxu0 0
      %827 = vmatprep.subr.bf16.mxu0 0
      %828 = vmatpush1.bf16.msra.mxu0 0
      %829 = vmatprep.mubr.bf16.mxu0 0
      %830 = vmatmul.mubr.bf16.gmra.mrb[0].mxu0 %v626
      %v831 = vpop.f32.mrb[0].mxu0
      %v832 = vadd.f32 %v342, %v831
      %v833 = vpop.f32.mrb[0].mxu0
      %v834 = vpop.f32.mrb[0].mxu0
      %v835 = vadd.f32 %v342, %v834
      %v836 = vpop.f32.mrb[0].mxu0
      %837 = vmatprep.mubr.bf16.mxu0 0
      %838 = vmatmul.mubr.bf16.gmra.mrb[0].mxu0 %v629
      %v839 = vpop.f32.mrb[0].mxu0
      %v840 = vadd.f32 %v342, %v839
      %v841 = vpop.f32.mrb[0].mxu0
      %v842 = vpop.f32.mrb[0].mxu0
      %v843 = vadd.f32 %v342, %v842
      %v844 = vpop.f32.mrb[0].mxu0
      %845 = vmatprep.mubr.bf16.mxu0 0
      %846 = vmatmul.mubr.bf16.gmra.mrb[0].mxu0 %v632
      %v847 = vpop.f32.mrb[0].mxu0
      %v848 = vadd.f32 %v342, %v847
      %v849 = vpop.f32.mrb[0].mxu0
      %v850 = vpop.f32.mrb[0].mxu0
      %v851 = vadd.f32 %v342, %v850
      %v852 = vpop.f32.mrb[0].mxu0
      %853 = vmatprep.mubr.bf16.mxu0 0
      %854 = vmatmul.mubr.bf16.gmra.mrb[0].mxu0 %v635
      %v855 = vpop.f32.mrb[0].mxu0
      %v856 = vadd.f32 %v342, %v855
      %v857 = vpop.f32.mrb[0].mxu0
      %v858 = vpop.f32.mrb[0].mxu0
      %v859 = vadd.f32 %v342, %v858
      %v860 = vpop.f32.mrb[0].mxu0
      %861 = vmatprep.mubr.bf16.mxu0 0
      %862 = vmatmul.mubr.bf16.gmra.mrb[0].mxu0 %v638
      %v863 = vpop.f32.mrb[0].mxu0
      %v864 = vadd.f32 %v342, %v863
      %v865 = vpop.f32.mrb[0].mxu0
      %v866 = vpop.f32.mrb[0].mxu0
      %v867 = vadd.f32 %v342, %v866
      %v868 = vpop.f32.mrb[0].mxu0
      %869 = vmatprep.mubr.bf16.mxu0 0
      %870 = vmatmul.mubr.bf16.gmra.mrb[0].mxu0 %v641
      %v871 = vpop.f32.mrb[0].mxu0
      %v872 = vadd.f32 %v342, %v871
      %v873 = vpop.f32.mrb[0].mxu0
      %v874 = vpop.f32.mrb[0].mxu0
      %v875 = vadd.f32 %v342, %v874
      %v876 = vpop.f32.mrb[0].mxu0
      %877 = vmatprep.mubr.bf16.mxu0 0
      %878 = vmatmul.mubr.bf16.gmra.mrb[0].mxu0 %v644
      %v879 = vpop.f32.mrb[0].mxu0
      %v880 = vadd.f32 %v342, %v879
      %v881 = vpop.f32.mrb[0].mxu0
      %v882 = vpop.f32.mrb[0].mxu0
      %v883 = vadd.f32 %v342, %v882
      %v884 = vpop.f32.mrb[0].mxu0
      %885 = vmatprep.mubr.bf16.mxu0 0
      %886 = vmatmul.mubr.bf16.gmra.mrb[0].mxu0 %v647
      %v887 = vpop.f32.mrb[0].mxu0
      %v888 = vadd.f32 %v342, %v887
      %v889 = vpop.f32.mrb[0].mxu0
      %v890 = vpop.f32.mrb[0].mxu0
      %v891 = vadd.f32 %v342, %v890
      %v892 = vpop.f32.mrb[0].mxu0
      %893 = vmatprep.mubr.bf16.mxu0 0
      %894 = vmatmul.mubr.bf16.gmra.mrb[0].mxu0 %v650
      %v895 = vpop.f32.mrb[0].mxu0
      %v896 = vadd.f32 %v342, %v895
      %v897 = vpop.f32.mrb[0].mxu0
      %v898 = vpop.f32.mrb[0].mxu0
      %v899 = vadd.f32 %v342, %v898
      %v900 = vpop.f32.mrb[0].mxu0
      %901 = vmatprep.mubr.bf16.mxu0 0
      %902 = vmatmul.mubr.bf16.gmra.mrb[0].mxu0 %v653
      %v903 = vpop.f32.mrb[0].mxu0
      %v904 = vadd.f32 %v342, %v903
      %v905 = vpop.f32.mrb[0].mxu0
      %v906 = vpop.f32.mrb[0].mxu0
      %v907 = vadd.f32 %v342, %v906
      %v908 = vpop.f32.mrb[0].mxu0
      %909 = vmatprep.mubr.bf16.mxu0 0
      %910 = vmatmul.mubr.bf16.gmra.mrb[0].mxu0 %v656
      %v911 = vpop.f32.mrb[0].mxu0
      %v912 = vadd.f32 %v342, %v911
      %v913 = vpop.f32.mrb[0].mxu0
      %v914 = vpop.f32.mrb[0].mxu0
      %v915 = vadd.f32 %v342, %v914
      %v916 = vpop.f32.mrb[0].mxu0
      %917 = vmatprep.mubr.bf16.mxu0 0
      %918 = vmatmul.mubr.bf16.gmra.mrb[0].mxu0 %v659
      %v919 = vpop.f32.mrb[0].mxu0
      %v920 = vadd.f32 %v342, %v919
      %v921 = vpop.f32.mrb[0].mxu0
      %v922 = vpop.f32.mrb[0].mxu0
      %v923 = vadd.f32 %v342, %v922
      %v924 = vpop.f32.mrb[0].mxu0
      %925 = vmatprep.mubr.bf16.mxu0 0
      %926 = vmatmul.mubr.bf16.gmra.mrb[0].mxu0 %v662
      %v927 = vpop.f32.mrb[0].mxu0
      %v928 = vadd.f32 %v342, %v927
      %v929 = vpop.f32.mrb[0].mxu0
      %v930 = vpop.f32.mrb[0].mxu0
      %v931 = vadd.f32 %v342, %v930
      %v932 = vpop.f32.mrb[0].mxu0
      %933 = vmatprep.mubr.bf16.mxu0 0
      %934 = vmatmul.mubr.bf16.gmra.mrb[0].mxu0 %v665
      %v935 = vpop.f32.mrb[0].mxu0
      %v936 = vadd.f32 %v342, %v935
      %v937 = vpop.f32.mrb[0].mxu0
      %v938 = vpop.f32.mrb[0].mxu0
      %v939 = vadd.f32 %v342, %v938
      %v940 = vpop.f32.mrb[0].mxu0
      %941 = vmatprep.mubr.bf16.mxu0 0
      %942 = vmatmul.mubr.bf16.gmra.mrb[0].mxu0 %v668
      %v943 = vpop.f32.mrb[0].mxu0
      %v944 = vadd.f32 %v342, %v943
      %v945 = vpop.f32.mrb[0].mxu0
      %v946 = vpop.f32.mrb[0].mxu0
      %v947 = vadd.f32 %v342, %v946
      %v948 = vpop.f32.mrb[0].mxu0
      %949 = vmatprep.mubr.bf16.mxu0 0
      %950 = vmatmul.mubr.bf16.gmra.mrb[0].mxu0 %v671
      %v951 = vpop.f32.mrb[0].mxu0
      %v952 = vadd.f32 %v342, %v951
      %v953 = vpop.f32.mrb[0].mxu0
      %v954 = vpop.f32.mrb[0].mxu0
      %v955 = vadd.f32 %v342, %v954
      %v956 = vpop.f32.mrb[0].mxu0
      %957 = vmatprep.mubr.bf16.mxu0 0
      %958 = vmatmul.mubr.bf16.gmra.mrb[0].mxu0 %v674
      %v959 = vpop.f32.mrb[0].mxu0
      %v960 = vadd.f32 %v342, %v959
      %v961 = vpop.f32.mrb[0].mxu0
      %v962 = vpop.f32.mrb[0].mxu0
      %v963 = vadd.f32 %v342, %v962
      %v964 = vpop.f32.mrb[0].mxu0
      %965 = vmatprep.mubr.bf16.mxu0 0
      %966 = vmatmul.mubr.bf16.gmra.mrb[0].mxu0 %v677
      %v967 = vpop.f32.mrb[0].mxu0
      %v968 = vadd.f32 %v342, %v967
      %v969 = vpop.f32.mrb[0].mxu0
      %v970 = vpop.f32.mrb[0].mxu0
      %v971 = vadd.f32 %v342, %v970
      %v972 = vpop.f32.mrb[0].mxu0
      %973 = vmatprep.mubr.bf16.mxu0 0
      %974 = vmatmul.mubr.bf16.gmra.mrb[0].mxu0 %v680
      %v975 = vpop.f32.mrb[0].mxu0
      %v976 = vadd.f32 %v342, %v975
      %v977 = vpop.f32.mrb[0].mxu0
      %v978 = vpop.f32.mrb[0].mxu0
      %v979 = vadd.f32 %v342, %v978
      %v980 = vpop.f32.mrb[0].mxu0
      %981 = vmatprep.mubr.bf16.mxu0 0
      %982 = vmatmul.mubr.bf16.gmra.mrb[0].mxu0 %v683
      %v983 = vpop.f32.mrb[0].mxu0
      %v984 = vadd.f32 %v342, %v983
      %v985 = vpop.f32.mrb[0].mxu0
      %v986 = vpop.f32.mrb[0].mxu0
      %v987 = vadd.f32 %v342, %v986
      %v988 = vpop.f32.mrb[0].mxu0
      %989 = vmatprep.mubr.bf16.mxu0 0
      %990 = vmatmul.mubr.bf16.gmra.mrb[0].mxu0 %v686
      %v991 = vpop.f32.mrb[0].mxu0
      %v992 = vadd.f32 %v342, %v991
      %v993 = vpop.f32.mrb[0].mxu0
      %v994 = vpop.f32.mrb[0].mxu0
      %v995 = vadd.f32 %v342, %v994
      %v996 = vpop.f32.mrb[0].mxu0
      %997 = vmatprep.mubr.bf16.mxu0 0
      %998 = vmatmul.mubr.bf16.gmra.mrb[0].mxu0 %v689
      %v999 = vpop.f32.mrb[0].mxu0
      %v1000 = vadd.f32 %v342, %v999
      %v1001 = vpop.f32.mrb[0].mxu0
      %v1002 = vpop.f32.mrb[0].mxu0
      %v1003 = vadd.f32 %v342, %v1002
      %v1004 = vpop.f32.mrb[0].mxu0
      %1005 = vmatprep.mubr.bf16.mxu0 0
      %1006 = vmatmul.mubr.bf16.gmra.mrb[0].mxu0 %v692
      %v1007 = vpop.f32.mrb[0].mxu0
      %v1008 = vadd.f32 %v342, %v1007
      %v1009 = vpop.f32.mrb[0].mxu0
      %v1010 = vpop.f32.mrb[0].mxu0
      %v1011 = vadd.f32 %v342, %v1010
      %v1012 = vpop.f32.mrb[0].mxu0
      %1013 = vmatprep.mubr.bf16.mxu0 0
      %1014 = vmatmul.mubr.bf16.gmra.mrb[0].mxu0 %v695
      %v1015 = vpop.f32.mrb[0].mxu0
      %v1016 = vadd.f32 %v342, %v1015
      %v1017 = vpop.f32.mrb[0].mxu0
      %v1018 = vpop.f32.mrb[0].mxu0
      %v1019 = vadd.f32 %v342, %v1018
      %v1020 = vpop.f32.mrb[0].mxu0
      %1021 = vmatprep.mubr.bf16.mxu0 0
      %1022 = vmatmul.mubr.bf16.gmra.mrb[0].mxu0 %v698
      %v1023 = vpop.f32.mrb[0].mxu0
      %v1024 = vadd.f32 %v342, %v1023
      %v1025 = vpop.f32.mrb[0].mxu0
      %v1026 = vpop.f32.mrb[0].mxu0
      %v1027 = vadd.f32 %v342, %v1026
      %v1028 = vpop.f32.mrb[0].mxu0
      %1029 = vmatprep.mubr.bf16.mxu0 0
      %1030 = vmatmul.mubr.bf16.gmra.mrb[0].mxu0 %v701
      %v1031 = vpop.f32.mrb[0].mxu0
      %v1032 = vadd.f32 %v342, %v1031
      %v1033 = vpop.f32.mrb[0].mxu0
      %v1034 = vpop.f32.mrb[0].mxu0
      %v1035 = vadd.f32 %v342, %v1034
      %v1036 = vpop.f32.mrb[0].mxu0
      %1037 = vmatprep.mubr.bf16.mxu0 0
      %1038 = vmatmul.mubr.bf16.gmra.mrb[0].mxu0 %v704
      %v1039 = vpop.f32.mrb[0].mxu0
      %v1040 = vadd.f32 %v342, %v1039
      %v1041 = vpop.f32.mrb[0].mxu0
      %v1042 = vpop.f32.mrb[0].mxu0
      %v1043 = vadd.f32 %v342, %v1042
      %v1044 = vpop.f32.mrb[0].mxu0
      %1045 = vmatprep.mubr.bf16.mxu0 0
      %1046 = vmatmul.mubr.bf16.gmra.mrb[0].mxu0 %v707
      %v1047 = vpop.f32.mrb[0].mxu0
      %v1048 = vadd.f32 %v342, %v1047
      %v1049 = vpop.f32.mrb[0].mxu0
      %v1050 = vpop.f32.mrb[0].mxu0
      %v1051 = vadd.f32 %v342, %v1050
      %v1052 = vpop.f32.mrb[0].mxu0
      %1053 = vmatprep.mubr.bf16.mxu0 0
      %1054 = vmatmul.mubr.bf16.gmra.mrb[0].mxu0 %v710
      %v1055 = vpop.f32.mrb[0].mxu0
      %v1056 = vadd.f32 %v342, %v1055
      %v1057 = vpop.f32.mrb[0].mxu0
      %v1058 = vpop.f32.mrb[0].mxu0
      %v1059 = vadd.f32 %v342, %v1058
      %v1060 = vpop.f32.mrb[0].mxu0
      %1061 = vmatprep.mubr.bf16.mxu0 0
      %1062 = vmatmul.mubr.bf16.gmra.mrb[0].mxu0 %v713
      %v1063 = vpop.f32.mrb[0].mxu0
      %v1064 = vadd.f32 %v342, %v1063
      %v1065 = vpop.f32.mrb[0].mxu0
      %v1066 = vpop.f32.mrb[0].mxu0
      %v1067 = vadd.f32 %v342, %v1066
      %v1068 = vpop.f32.mrb[0].mxu0
      %1069 = vmatprep.mubr.bf16.mxu0 0
      %1070 = vmatmul.mubr.bf16.gmra.mrb[0].mxu0 %v716
      %v1071 = vpop.f32.mrb[0].mxu0
      %v1072 = vadd.f32 %v342, %v1071
      %v1073 = vpop.f32.mrb[0].mxu0
      %v1074 = vpop.f32.mrb[0].mxu0
      %v1075 = vadd.f32 %v342, %v1074
      %v1076 = vpop.f32.mrb[0].mxu0
      %1077 = vmatprep.mubr.bf16.mxu0 0
      %1078 = vmatmul.mubr.bf16.gmra.mrb[0].mxu0 %v719
      %v1079 = vpop.f32.mrb[0].mxu0
      %v1080 = vadd.f32 %v342, %v1079
      %v1081 = vpop.f32.mrb[0].mxu0
      %v1082 = vpop.f32.mrb[0].mxu0
      %v1083 = vadd.f32 %v342, %v1082
      %v1084 = vpop.f32.mrb[0].mxu0
      %1085 = vmatprep.mubr.bf16.mxu0 0
      %1086 = vmatmul.mubr.bf16.gmra.mrb[0].mxu0 %v722
      %v1087 = vpop.f32.mrb[0].mxu0
      %v1088 = vadd.f32 %v342, %v1087
      %v1089 = vpop.f32.mrb[0].mxu0
      %v1090 = vpop.f32.mrb[0].mxu0
      %v1091 = vadd.f32 %v342, %v1090
      %v1092 = vpop.f32.mrb[0].mxu0
      %1093 = vmatprep.mubr.bf16.mxu0 0
      %1094 = vmatmul.mubr.bf16.gmra.mrb[0].mxu0 %v725
      %v1095 = vpop.f32.mrb[0].mxu0
      %v1096 = vadd.f32 %v342, %v1095
      %v1097 = vpop.f32.mrb[0].mxu0
      %v1098 = vpop.f32.mrb[0].mxu0
      %v1099 = vadd.f32 %v342, %v1098
      %v1100 = vpop.f32.mrb[0].mxu0
      %1101 = vmatprep.mubr.bf16.mxu0 0
      %1102 = vmatmul.mubr.bf16.gmra.mrb[0].mxu0 %v728
      %v1103 = vpop.f32.mrb[0].mxu0
      %v1104 = vadd.f32 %v342, %v1103
      %v1105 = vpop.f32.mrb[0].mxu0
      %v1106 = vpop.f32.mrb[0].mxu0
      %v1107 = vadd.f32 %v342, %v1106
      %v1108 = vpop.f32.mrb[0].mxu0
      %1109 = vmatprep.mubr.bf16.mxu0 0
      %1110 = vmatmul.mubr.bf16.gmra.mrb[0].mxu0 %v731
      %v1111 = vpop.f32.mrb[0].mxu0
      %v1112 = vadd.f32 %v342, %v1111
      %v1113 = vpop.f32.mrb[0].mxu0
      %v1114 = vpop.f32.mrb[0].mxu0
      %v1115 = vadd.f32 %v342, %v1114
      %v1116 = vpop.f32.mrb[0].mxu0
      %1117 = vmatprep.mubr.bf16.mxu0 0
      %1118 = vmatmul.mubr.bf16.gmra.mrb[0].mxu0 %v734
      %v1119 = vpop.f32.mrb[0].mxu0
      %v1120 = vadd.f32 %v342, %v1119
      %v1121 = vpop.f32.mrb[0].mxu0
      %v1122 = vpop.f32.mrb[0].mxu0
      %v1123 = vadd.f32 %v342, %v1122
      %v1124 = vpop.f32.mrb[0].mxu0
      %1125 = vmatprep.mubr.bf16.mxu0 0
      %1126 = vmatmul.mubr.bf16.gmra.mrb[0].mxu0 %v737
      %v1127 = vpop.f32.mrb[0].mxu0
      %v1128 = vadd.f32 %v342, %v1127
      %v1129 = vpop.f32.mrb[0].mxu0
      %v1130 = vpop.f32.mrb[0].mxu0
      %v1131 = vadd.f32 %v342, %v1130
      %v1132 = vpop.f32.mrb[0].mxu0
      %1133 = vmatprep.mubr.bf16.mxu0 0
      %1134 = vmatmul.mubr.bf16.gmra.mrb[0].mxu0 %v740
      %v1135 = vpop.f32.mrb[0].mxu0
      %v1136 = vadd.f32 %v342, %v1135
      %v1137 = vpop.f32.mrb[0].mxu0
      %v1138 = vpop.f32.mrb[0].mxu0
      %v1139 = vadd.f32 %v342, %v1138
      %v1140 = vpop.f32.mrb[0].mxu0
      %1141 = vmatprep.mubr.bf16.mxu0 0
      %1142 = vmatmul.mubr.bf16.gmra.mrb[0].mxu0 %v743
      %v1143 = vpop.f32.mrb[0].mxu0
      %v1144 = vadd.f32 %v342, %v1143
      %v1145 = vpop.f32.mrb[0].mxu0
      %v1146 = vpop.f32.mrb[0].mxu0
      %v1147 = vadd.f32 %v342, %v1146
      %v1148 = vpop.f32.mrb[0].mxu0
      %1149 = vmatprep.mubr.bf16.mxu0 0
      %1150 = vmatmul.mubr.bf16.gmra.mrb[0].mxu0 %v746
      %v1151 = vpop.f32.mrb[0].mxu0
      %v1152 = vadd.f32 %v342, %v1151
      %v1153 = vpop.f32.mrb[0].mxu0
      %v1154 = vpop.f32.mrb[0].mxu0
      %v1155 = vadd.f32 %v342, %v1154
      %v1156 = vpop.f32.mrb[0].mxu0
      %1157 = vmatprep.mubr.bf16.mxu0 0
      %1158 = vmatmul.mubr.bf16.gmra.mrb[0].mxu0 %v749
      %v1159 = vpop.f32.mrb[0].mxu0
      %v1160 = vadd.f32 %v342, %v1159
      %v1161 = vpop.f32.mrb[0].mxu0
      %v1162 = vpop.f32.mrb[0].mxu0
      %v1163 = vadd.f32 %v342, %v1162
      %v1164 = vpop.f32.mrb[0].mxu0
      %1165 = vmatprep.mubr.bf16.mxu0 0
      %1166 = vmatmul.mubr.bf16.gmra.mrb[0].mxu0 %v752
      %v1167 = vpop.f32.mrb[0].mxu0
      %v1168 = vadd.f32 %v342, %v1167
      %v1169 = vpop.f32.mrb[0].mxu0
      %v1170 = vpop.f32.mrb[0].mxu0
      %v1171 = vadd.f32 %v342, %v1170
      %v1172 = vpop.f32.mrb[0].mxu0
      %1173 = vmatprep.mubr.bf16.mxu0 0
      %1174 = vmatmul.mubr.bf16.gmra.mrb[0].mxu0 %v755
      %v1175 = vpop.f32.mrb[0].mxu0
      %v1176 = vadd.f32 %v342, %v1175
      %v1177 = vpop.f32.mrb[0].mxu0
      %v1178 = vpop.f32.mrb[0].mxu0
      %v1179 = vadd.f32 %v342, %v1178
      %v1180 = vpop.f32.mrb[0].mxu0
      %1181 = vmatprep.mubr.bf16.mxu0 0
      %1182 = vmatmul.mubr.bf16.gmra.mrb[0].mxu0 %v758
      %v1183 = vpop.f32.mrb[0].mxu0
      %v1184 = vadd.f32 %v342, %v1183
      %v1185 = vpop.f32.mrb[0].mxu0
      %v1186 = vpop.f32.mrb[0].mxu0
      %v1187 = vadd.f32 %v342, %v1186
      %v1188 = vpop.f32.mrb[0].mxu0
      %1189 = vmatprep.mubr.bf16.mxu0 0
      %1190 = vmatmul.mubr.bf16.gmra.mrb[0].mxu0 %v761
      %v1191 = vpop.f32.mrb[0].mxu0
      %v1192 = vadd.f32 %v342, %v1191
      %v1193 = vpop.f32.mrb[0].mxu0
      %v1194 = vpop.f32.mrb[0].mxu0
      %v1195 = vadd.f32 %v342, %v1194
      %v1196 = vpop.f32.mrb[0].mxu0
      %1197 = vmatprep.mubr.bf16.mxu0 0
      %1198 = vmatmul.mubr.bf16.gmra.mrb[0].mxu0 %v764
      %v1199 = vpop.f32.mrb[0].mxu0
      %v1200 = vadd.f32 %v342, %v1199
      %v1201 = vpop.f32.mrb[0].mxu0
      %v1202 = vpop.f32.mrb[0].mxu0
      %v1203 = vadd.f32 %v342, %v1202
      %v1204 = vpop.f32.mrb[0].mxu0
      %1205 = vmatprep.mubr.bf16.mxu0 0
      %1206 = vmatmul.mubr.bf16.gmra.mrb[0].mxu0 %v767
      %v1207 = vpop.f32.mrb[0].mxu0
      %v1208 = vadd.f32 %v342, %v1207
      %v1209 = vpop.f32.mrb[0].mxu0
      %v1210 = vpop.f32.mrb[0].mxu0
      %v1211 = vadd.f32 %v342, %v1210
      %v1212 = vpop.f32.mrb[0].mxu0
      %1213 = vmatprep.mubr.bf16.mxu0 0
      %1214 = vmatmul.mubr.bf16.gmra.mrb[0].mxu0 %v770
      %v1215 = vpop.f32.mrb[0].mxu0
      %v1216 = vadd.f32 %v342, %v1215
      %v1217 = vpop.f32.mrb[0].mxu0
      %v1218 = vpop.f32.mrb[0].mxu0
      %v1219 = vadd.f32 %v342, %v1218
      %v1220 = vpop.f32.mrb[0].mxu0
      %1221 = vmatprep.mubr.bf16.mxu0 0
      %1222 = vmatmul.mubr.bf16.gmra.mrb[0].mxu0 %v773
      %v1223 = vpop.f32.mrb[0].mxu0
      %v1224 = vadd.f32 %v342, %v1223
      %v1225 = vpop.f32.mrb[0].mxu0
      %v1226 = vpop.f32.mrb[0].mxu0
      %v1227 = vadd.f32 %v342, %v1226
      %v1228 = vpop.f32.mrb[0].mxu0
      %1229 = vmatprep.mubr.bf16.mxu0 0
      %1230 = vmatmul.mubr.bf16.gmra.mrb[0].mxu0 %v776
      %v1231 = vpop.f32.mrb[0].mxu0
      %v1232 = vadd.f32 %v342, %v1231
      %v1233 = vpop.f32.mrb[0].mxu0
      %v1234 = vpop.f32.mrb[0].mxu0
      %v1235 = vadd.f32 %v342, %v1234
      %v1236 = vpop.f32.mrb[0].mxu0
      %1237 = vmatprep.mubr.bf16.mxu0 0
      %1238 = vmatmul.mubr.bf16.gmra.mrb[0].mxu0 %v779
      %v1239 = vpop.f32.mrb[0].mxu0
      %v1240 = vadd.f32 %v342, %v1239
      %v1241 = vpop.f32.mrb[0].mxu0
      %v1242 = vpop.f32.mrb[0].mxu0
      %v1243 = vadd.f32 %v342, %v1242
      %v1244 = vpop.f32.mrb[0].mxu0
      %1245 = vmatprep.mubr.bf16.mxu0 0
      %1246 = vmatmul.mubr.bf16.gmra.mrb[0].mxu0 %v782
      %v1247 = vpop.f32.mrb[0].mxu0
      %v1248 = vadd.f32 %v342, %v1247
      %v1249 = vpop.f32.mrb[0].mxu0
      %v1250 = vpop.f32.mrb[0].mxu0
      %v1251 = vadd.f32 %v342, %v1250
      %v1252 = vpop.f32.mrb[0].mxu0
      %1253 = vmatprep.mubr.bf16.mxu0 0
      %1254 = vmatmul.mubr.bf16.gmra.mrb[0].mxu0 %v785
      %v1255 = vpop.f32.mrb[0].mxu0
      %v1256 = vadd.f32 %v342, %v1255
      %v1257 = vpop.f32.mrb[0].mxu0
      %v1258 = vpop.f32.mrb[0].mxu0
      %v1259 = vadd.f32 %v342, %v1258
      %v1260 = vpop.f32.mrb[0].mxu0
      %1261 = vmatprep.mubr.bf16.mxu0 0
      %1262 = vmatmul.mubr.bf16.gmra.mrb[0].mxu0 %v788
      %v1263 = vpop.f32.mrb[0].mxu0
      %v1264 = vadd.f32 %v342, %v1263
      %v1265 = vpop.f32.mrb[0].mxu0
      %v1266 = vpop.f32.mrb[0].mxu0
      %v1267 = vadd.f32 %v342, %v1266
      %v1268 = vpop.f32.mrb[0].mxu0
      %1269 = vmatprep.mubr.bf16.mxu0 0
      %1270 = vmatmul.mubr.bf16.gmra.mrb[0].mxu0 %v791
      %v1271 = vpop.f32.mrb[0].mxu0
      %v1272 = vadd.f32 %v342, %v1271
      %v1273 = vpop.f32.mrb[0].mxu0
      %v1274 = vpop.f32.mrb[0].mxu0
      %v1275 = vadd.f32 %v342, %v1274
      %v1276 = vpop.f32.mrb[0].mxu0
      %1277 = vdwg.mxu0
      %v1278 = vmax.f32 %v832, 0.0
      %v1279 = vmax.f32 %v835, 0.0
      %v1280 = vmax.f32 %v840, 0.0
      %v1281 = vmax.f32 %v843, 0.0
      %v1282 = vmax.f32 %v848, 0.0
      %v1283 = vmax.f32 %v851, 0.0
      %v1284 = vmax.f32 %v856, 0.0
      %v1285 = vmax.f32 %v859, 0.0
      %v1286 = vmax.f32 %v864, 0.0
      %v1287 = vmax.f32 %v867, 0.0
      %v1288 = vmax.f32 %v872, 0.0
      %v1289 = vmax.f32 %v875, 0.0
      %v1290 = vmax.f32 %v880, 0.0
      %v1291 = vmax.f32 %v883, 0.0
      %v1292 = vmax.f32 %v888, 0.0
      %v1293 = vmax.f32 %v891, 0.0
      %v1294 = vmax.f32 %v896, 0.0
      %v1295 = vmax.f32 %v899, 0.0
      %v1296 = vmax.f32 %v904, 0.0
      %v1297 = vmax.f32 %v907, 0.0
      %v1298 = vmax.f32 %v912, 0.0
      %v1299 = vmax.f32 %v915, 0.0
      %v1300 = vmax.f32 %v920, 0.0
      %v1301 = vmax.f32 %v923, 0.0
      %v1302 = vmax.f32 %v928, 0.0
      %v1303 = vmax.f32 %v931, 0.0
      %v1304 = vmax.f32 %v936, 0.0
      %v1305 = vmax.f32 %v939, 0.0
      %v1306 = vmax.f32 %v944, 0.0
      %v1307 = vmax.f32 %v947, 0.0
      %v1308 = vmax.f32 %v952, 0.0
      %v1309 = vmax.f32 %v955, 0.0
      %v1310 = vmax.f32 %v960, 0.0
      %v1311 = vmax.f32 %v963, 0.0
      %v1312 = vmax.f32 %v968, 0.0
      %v1313 = vmax.f32 %v971, 0.0
      %v1314 = vmax.f32 %v976, 0.0
      %v1315 = vmax.f32 %v979, 0.0
      %v1316 = vmax.f32 %v984, 0.0
      %v1317 = vmax.f32 %v987, 0.0
      %v1318 = vmax.f32 %v992, 0.0
      %v1319 = vmax.f32 %v995, 0.0
      %v1320 = vmax.f32 %v1000, 0.0
      %v1321 = vmax.f32 %v1003, 0.0
      %v1322 = vmax.f32 %v1008, 0.0
      %v1323 = vmax.f32 %v1011, 0.0
      %v1324 = vmax.f32 %v1016, 0.0
      %v1325 = vmax.f32 %v1019, 0.0
      %v1326 = vmax.f32 %v1024, 0.0
      %v1327 = vmax.f32 %v1027, 0.0
      %v1328 = vmax.f32 %v1032, 0.0
      %v1329 = vmax.f32 %v1035, 0.0
      %v1330 = vmax.f32 %v1040, 0.0
      %v1331 = vmax.f32 %v1043, 0.0
      %v1332 = vmax.f32 %v1048, 0.0
      %v1333 = vmax.f32 %v1051, 0.0
      %v1334 = vmax.f32 %v1056, 0.0
      %v1335 = vmax.f32 %v1059, 0.0
      %v1336 = vmax.f32 %v1064, 0.0
      %v1337 = vmax.f32 %v1067, 0.0
      %v1338 = vmax.f32 %v1072, 0.0
      %v1339 = vmax.f32 %v1075, 0.0
      %v1340 = vmax.f32 %v1080, 0.0
      %v1341 = vmax.f32 %v1083, 0.0
      %v1342 = vmax.f32 %v1088, 0.0
      %v1343 = vmax.f32 %v1091, 0.0
      %v1344 = vmax.f32 %v1096, 0.0
      %v1345 = vmax.f32 %v1099, 0.0
      %v1346 = vmax.f32 %v1104, 0.0
      %v1347 = vmax.f32 %v1107, 0.0
      %v1348 = vmax.f32 %v1112, 0.0
      %v1349 = vmax.f32 %v1115, 0.0
      %v1350 = vmax.f32 %v1120, 0.0
      %v1351 = vmax.f32 %v1123, 0.0
      %v1352 = vmax.f32 %v1128, 0.0
      %v1353 = vmax.f32 %v1131, 0.0
      %v1354 = vmax.f32 %v1136, 0.0
      %v1355 = vmax.f32 %v1139, 0.0
      %v1356 = vmax.f32 %v1144, 0.0
      %v1357 = vmax.f32 %v1147, 0.0
      %v1358 = vmax.f32 %v1152, 0.0
      %v1359 = vmax.f32 %v1155, 0.0
      %v1360 = vmax.f32 %v1160, 0.0
      %v1361 = vmax.f32 %v1163, 0.0
      %v1362 = vmax.f32 %v1168, 0.0
      %v1363 = vmax.f32 %v1171, 0.0
      %v1364 = vmax.f32 %v1176, 0.0
      %v1365 = vmax.f32 %v1179, 0.0
      %v1366 = vmax.f32 %v1184, 0.0
      %v1367 = vmax.f32 %v1187, 0.0
      %v1368 = vmax.f32 %v1192, 0.0
      %v1369 = vmax.f32 %v1195, 0.0
      %v1370 = vmax.f32 %v1200, 0.0
      %v1371 = vmax.f32 %v1203, 0.0
      %v1372 = vmax.f32 %v1208, 0.0
      %v1373 = vmax.f32 %v1211, 0.0
      %v1374 = vmax.f32 %v1216, 0.0
      %v1375 = vmax.f32 %v1219, 0.0
      %v1376 = vmax.f32 %v1224, 0.0
      %v1377 = vmax.f32 %v1227, 0.0
      %v1378 = vmax.f32 %v1232, 0.0
      %v1379 = vmax.f32 %v1235, 0.0
      %v1380 = vmax.f32 %v1240, 0.0
      %v1381 = vmax.f32 %v1243, 0.0
      %v1382 = vmax.f32 %v1248, 0.0
      %v1383 = vmax.f32 %v1251, 0.0
      %v1384 = vmax.f32 %v1256, 0.0
      %v1385 = vmax.f32 %v1259, 0.0
      %v1386 = vmax.f32 %v1264, 0.0
      %v1387 = vmax.f32 %v1267, 0.0
      %v1388 = vmax.f32 %v1272, 0.0
      %v1389 = vmax.f32 %v1275, 0.0
      %v1390 = vpack.c.bf16 %v1279, %v1278
      %v1391 = vpack.c.bf16 %v1281, %v1280
      %v1392 = vpack.c.bf16 %v1283, %v1282
      %v1393 = vpack.c.bf16 %v1285, %v1284
      %v1394 = vpack.c.bf16 %v1287, %v1286
      %v1395 = vpack.c.bf16 %v1289, %v1288
      %v1396 = vpack.c.bf16 %v1291, %v1290
      %v1397 = vpack.c.bf16 %v1293, %v1292
      %v1398 = vpack.c.bf16 %v1295, %v1294
      %v1399 = vpack.c.bf16 %v1297, %v1296
      %v1400 = vpack.c.bf16 %v1299, %v1298
      %v1401 = vpack.c.bf16 %v1301, %v1300
      %v1402 = vpack.c.bf16 %v1303, %v1302
      %v1403 = vpack.c.bf16 %v1305, %v1304
      %v1404 = vpack.c.bf16 %v1307, %v1306
      %v1405 = vpack.c.bf16 %v1309, %v1308
      %v1406 = vpack.c.bf16 %v1311, %v1310
      %v1407 = vpack.c.bf16 %v1313, %v1312
      %v1408 = vpack.c.bf16 %v1315, %v1314
      %v1409 = vpack.c.bf16 %v1317, %v1316
      %v1410 = vpack.c.bf16 %v1319, %v1318
      %v1411 = vpack.c.bf16 %v1321, %v1320
      %v1412 = vpack.c.bf16 %v1323, %v1322
      %v1413 = vpack.c.bf16 %v1325, %v1324
      %v1414 = vpack.c.bf16 %v1327, %v1326
      %v1415 = vpack.c.bf16 %v1329, %v1328
      %v1416 = vpack.c.bf16 %v1331, %v1330
      %v1417 = vpack.c.bf16 %v1333, %v1332
      %v1418 = vpack.c.bf16 %v1335, %v1334
      %v1419 = vpack.c.bf16 %v1337, %v1336
      %v1420 = vpack.c.bf16 %v1339, %v1338
      %v1421 = vpack.c.bf16 %v1341, %v1340
      %v1422 = vpack.c.bf16 %v1343, %v1342
      %v1423 = vpack.c.bf16 %v1345, %v1344
      %v1424 = vpack.c.bf16 %v1347, %v1346
      %v1425 = vpack.c.bf16 %v1349, %v1348
      %v1426 = vpack.c.bf16 %v1351, %v1350
      %v1427 = vpack.c.bf16 %v1353, %v1352
      %v1428 = vpack.c.bf16 %v1355, %v1354
      %v1429 = vpack.c.bf16 %v1357, %v1356
      %v1430 = vpack.c.bf16 %v1359, %v1358
      %v1431 = vpack.c.bf16 %v1361, %v1360
      %v1432 = vpack.c.bf16 %v1363, %v1362
      %v1433 = vpack.c.bf16 %v1365, %v1364
      %v1434 = vpack.c.bf16 %v1367, %v1366
      %v1435 = vpack.c.bf16 %v1369, %v1368
      %v1436 = vpack.c.bf16 %v1371, %v1370
      %v1437 = vpack.c.bf16 %v1373, %v1372
      %v1438 = vpack.c.bf16 %v1375, %v1374
      %v1439 = vpack.c.bf16 %v1377, %v1376
      %v1440 = vpack.c.bf16 %v1379, %v1378
      %v1441 = vpack.c.bf16 %v1381, %v1380
      %v1442 = vpack.c.bf16 %v1383, %v1382
      %v1443 = vpack.c.bf16 %v1385, %v1384
      %v1444 = vpack.c.bf16 %v1387, %v1386
      %v1445 = vpack.c.bf16 %v1389, %v1388
      %s1446 = scalar_lea.vmem %s2, 24
      %v1447 = vld [vmem:[%s1446] sm:$0xf]
      %v1448 = vld [vmem:[%s1446 + $0x4] sm:$0xf]
      %v1449 = vld [vmem:[%s1446 + $0x8] sm:$0xf]
      %v1450 = vld [vmem:[%s1446 + $0xc] sm:$0xf]
      %s1451 = scalar_lea.vmem %s3, 1
      %v1452 = vld [vmem:[%s1451] sm:$0x1]
      %v1454 = vlaneseq
      %v1455 = vshrl.u32 %v1454, 7
      %v1456 = vsub.s32 0, %v1455
      %v1457 = vrot.slane %v1452, %v1456
      %v1463 = vunpack.c.l.b16 %v1447
      %v1464 = vunpack.c.l.b16 %v1448
      %v1465 = vunpack.c.l.b16 %v1449
      %v1466 = vunpack.c.l.b16 %v1450
      %v1467 = vpack.c.b16 %v1464, %v1463
      %v1468 = vpack.c.b16 %v1466, %v1465
      %vm1471 = vcmask 261120
      %v1473 = vsel %vm1471, %v1390, 0
      %v1476 = vsel %vm1471, %v1391, 0
      %v1479 = vsel %vm1471, %v1392, 0
      %v1482 = vsel %vm1471, %v1393, 0
      %v1485 = vsel %vm1471, %v1394, 0
      %v1488 = vsel %vm1471, %v1395, 0
      %v1491 = vsel %vm1471, %v1396, 0
      %v1494 = vsel %vm1471, %v1397, 0
      %v1497 = vsel %vm1471, %v1398, 0
      %v1500 = vsel %vm1471, %v1399, 0
      %v1503 = vsel %vm1471, %v1400, 0
      %v1506 = vsel %vm1471, %v1401, 0
      %v1509 = vsel %vm1471, %v1402, 0
      %v1512 = vsel %vm1471, %v1403, 0
      %v1515 = vsel %vm1471, %v1404, 0
      %v1518 = vsel %vm1471, %v1405, 0
      %v1521 = vsel %vm1471, %v1406, 0
      %v1524 = vsel %vm1471, %v1407, 0
      %v1527 = vsel %vm1471, %v1408, 0
      %v1530 = vsel %vm1471, %v1409, 0
      %v1533 = vsel %vm1471, %v1410, 0
      %v1536 = vsel %vm1471, %v1411, 0
      %v1539 = vsel %vm1471, %v1412, 0
      %v1542 = vsel %vm1471, %v1413, 0
      %v1545 = vsel %vm1471, %v1414, 0
      %v1548 = vsel %vm1471, %v1415, 0
      %v1551 = vsel %vm1471, %v1416, 0
      %v1554 = vsel %vm1471, %v1417, 0
      %v1557 = vsel %vm1471, %v1418, 0
      %v1560 = vsel %vm1471, %v1419, 0
      %v1563 = vsel %vm1471, %v1420, 0
      %v1566 = vsel %vm1471, %v1421, 0
      %v1569 = vsel %vm1471, %v1422, 0
      %v1572 = vsel %vm1471, %v1423, 0
      %v1575 = vsel %vm1471, %v1424, 0
      %v1578 = vsel %vm1471, %v1425, 0
      %v1581 = vsel %vm1471, %v1426, 0
      %v1584 = vsel %vm1471, %v1427, 0
      %v1587 = vsel %vm1471, %v1428, 0
      %v1590 = vsel %vm1471, %v1429, 0
      %v1593 = vsel %vm1471, %v1430, 0
      %v1596 = vsel %vm1471, %v1431, 0
      %v1599 = vsel %vm1471, %v1432, 0
      %v1602 = vsel %vm1471, %v1433, 0
      %v1605 = vsel %vm1471, %v1434, 0
      %v1608 = vsel %vm1471, %v1435, 0
      %v1611 = vsel %vm1471, %v1436, 0
      %v1614 = vsel %vm1471, %v1437, 0
      %v1617 = vsel %vm1471, %v1438, 0
      %v1620 = vsel %vm1471, %v1439, 0
      %v1623 = vsel %vm1471, %v1440, 0
      %v1626 = vsel %vm1471, %v1441, 0
      %v1629 = vsel %vm1471, %v1442, 0
      %v1632 = vsel %vm1471, %v1443, 0
      %v1635 = vsel %vm1471, %v1444, 0
      %v1638 = vsel %vm1471, %v1445, 0
      %1640 = vmatprep.subr.bf16.mxu0 0
      %1641 = vmatpush1.bf16.msra.mxu0 %v1467
      %1642 = vmatprep.subr.bf16.mxu0 0
      %1643 = vmatpush1.bf16.msra.mxu0 %v1468
      %1644 = vmatprep.subr.bf16.mxu0 0
      %1645 = vmatpush1.bf16.msra.mxu0 0
      %1646 = vmatprep.subr.bf16.mxu0 0
      %1647 = vmatpush1.bf16.msra.mxu0 0
      %1648 = vmatprep.subr.bf16.mxu0 0
      %1649 = vmatpush1.bf16.msra.mxu0 0
      %1650 = vmatprep.subr.bf16.mxu0 0
      %1651 = vmatpush1.bf16.msra.mxu0 0
      %1652 = vmatprep.subr.bf16.mxu0 0
      %1653 = vmatpush1.bf16.msra.mxu0 0
      %1654 = vmatprep.subr.bf16.mxu0 0
      %1655 = vmatpush1.bf16.msra.mxu0 0
      %1656 = vmatprep.subr.bf16.mxu0 0
      %1657 = vmatpush1.bf16.msra.mxu0 0
      %1658 = vmatprep.subr.bf16.mxu0 0
      %1659 = vmatpush1.bf16.msra.mxu0 0
      %1660 = vmatprep.subr.bf16.mxu0 0
      %1661 = vmatpush1.bf16.msra.mxu0 0
      %1662 = vmatprep.subr.bf16.mxu0 0
      %1663 = vmatpush1.bf16.msra.mxu0 0
      %1664 = vmatprep.subr.bf16.mxu0 0
      %1665 = vmatpush1.bf16.msra.mxu0 0
      %1666 = vmatprep.subr.bf16.mxu0 0
      %1667 = vmatpush1.bf16.msra.mxu0 0
      %1668 = vmatprep.subr.bf16.mxu0 0
      %1669 = vmatpush1.bf16.msra.mxu0 0
      %1670 = vmatprep.subr.bf16.mxu0 0
      %1671 = vmatpush1.bf16.msra.mxu0 0
      %1672 = vmatprep.mubr.bf16.mxu0 0
      %1673 = vmatmul.mubr.bf16.gmra.mrb[0].mxu0 %v1473
      %v1674 = vpop.f32.mrb[0].mxu0
      %v1675 = vadd.f32 %v1457, %v1674
      %v1676 = vpop.f32.mrb[0].mxu0
      %v1677 = vpop.f32.mrb[0].mxu0
      %v1678 = vadd.f32 %v1457, %v1677
      %v1679 = vpop.f32.mrb[0].mxu0
      %1680 = vmatprep.mubr.bf16.mxu0 0
      %1681 = vmatmul.mubr.bf16.gmra.mrb[0].mxu0 %v1476
      %v1682 = vpop.f32.mrb[0].mxu0
      %v1683 = vadd.f32 %v1457, %v1682
      %v1684 = vpop.f32.mrb[0].mxu0
      %v1685 = vpop.f32.mrb[0].mxu0
      %v1686 = vadd.f32 %v1457, %v1685
      %v1687 = vpop.f32.mrb[0].mxu0
      %1688 = vmatprep.mubr.bf16.mxu0 0
      %1689 = vmatmul.mubr.bf16.gmra.mrb[0].mxu0 %v1479
      %v1690 = vpop.f32.mrb[0].mxu0
      %v1691 = vadd.f32 %v1457, %v1690
      %v1692 = vpop.f32.mrb[0].mxu0
      %v1693 = vpop.f32.mrb[0].mxu0
      %v1694 = vadd.f32 %v1457, %v1693
      %v1695 = vpop.f32.mrb[0].mxu0
      %1696 = vmatprep.mubr.bf16.mxu0 0
      %1697 = vmatmul.mubr.bf16.gmra.mrb[0].mxu0 %v1482
      %v1698 = vpop.f32.mrb[0].mxu0
      %v1699 = vadd.f32 %v1457, %v1698
      %v1700 = vpop.f32.mrb[0].mxu0
      %v1701 = vpop.f32.mrb[0].mxu0
      %v1702 = vadd.f32 %v1457, %v1701
      %v1703 = vpop.f32.mrb[0].mxu0
      %1704 = vmatprep.mubr.bf16.mxu0 0
      %1705 = vmatmul.mubr.bf16.gmra.mrb[0].mxu0 %v1485
      %v1706 = vpop.f32.mrb[0].mxu0
      %v1707 = vadd.f32 %v1457, %v1706
      %v1708 = vpop.f32.mrb[0].mxu0
      %v1709 = vpop.f32.mrb[0].mxu0
      %v1710 = vadd.f32 %v1457, %v1709
      %v1711 = vpop.f32.mrb[0].mxu0
      %1712 = vmatprep.mubr.bf16.mxu0 0
      %1713 = vmatmul.mubr.bf16.gmra.mrb[0].mxu0 %v1488
      %v1714 = vpop.f32.mrb[0].mxu0
      %v1715 = vadd.f32 %v1457, %v1714
      %v1716 = vpop.f32.mrb[0].mxu0
      %v1717 = vpop.f32.mrb[0].mxu0
      %v1718 = vadd.f32 %v1457, %v1717
      %v1719 = vpop.f32.mrb[0].mxu0
      %1720 = vmatprep.mubr.bf16.mxu0 0
      %1721 = vmatmul.mubr.bf16.gmra.mrb[0].mxu0 %v1491
      %v1722 = vpop.f32.mrb[0].mxu0
      %v1723 = vadd.f32 %v1457, %v1722
      %v1724 = vpop.f32.mrb[0].mxu0
      %v1725 = vpop.f32.mrb[0].mxu0
      %v1726 = vadd.f32 %v1457, %v1725
      %v1727 = vpop.f32.mrb[0].mxu0
      %1728 = vmatprep.mubr.bf16.mxu0 0
      %1729 = vmatmul.mubr.bf16.gmra.mrb[0].mxu0 %v1494
      %v1730 = vpop.f32.mrb[0].mxu0
      %v1731 = vadd.f32 %v1457, %v1730
      %v1732 = vpop.f32.mrb[0].mxu0
      %v1733 = vpop.f32.mrb[0].mxu0
      %v1734 = vadd.f32 %v1457, %v1733
      %v1735 = vpop.f32.mrb[0].mxu0
      %1736 = vmatprep.mubr.bf16.mxu0 0
      %1737 = vmatmul.mubr.bf16.gmra.mrb[0].mxu0 %v1497
      %v1738 = vpop.f32.mrb[0].mxu0
      %v1739 = vadd.f32 %v1457, %v1738
      %v1740 = vpop.f32.mrb[0].mxu0
      %v1741 = vpop.f32.mrb[0].mxu0
      %v1742 = vadd.f32 %v1457, %v1741
      %v1743 = vpop.f32.mrb[0].mxu0
      %1744 = vmatprep.mubr.bf16.mxu0 0
      %1745 = vmatmul.mubr.bf16.gmra.mrb[0].mxu0 %v1500
      %v1746 = vpop.f32.mrb[0].mxu0
      %v1747 = vadd.f32 %v1457, %v1746
      %v1748 = vpop.f32.mrb[0].mxu0
      %v1749 = vpop.f32.mrb[0].mxu0
      %v1750 = vadd.f32 %v1457, %v1749
      %v1751 = vpop.f32.mrb[0].mxu0
      %1752 = vmatprep.mubr.bf16.mxu0 0
      %1753 = vmatmul.mubr.bf16.gmra.mrb[0].mxu0 %v1503
      %v1754 = vpop.f32.mrb[0].mxu0
      %v1755 = vadd.f32 %v1457, %v1754
      %v1756 = vpop.f32.mrb[0].mxu0
      %v1757 = vpop.f32.mrb[0].mxu0
      %v1758 = vadd.f32 %v1457, %v1757
      %v1759 = vpop.f32.mrb[0].mxu0
      %1760 = vmatprep.mubr.bf16.mxu0 0
      %1761 = vmatmul.mubr.bf16.gmra.mrb[0].mxu0 %v1506
      %v1762 = vpop.f32.mrb[0].mxu0
      %v1763 = vadd.f32 %v1457, %v1762
      %v1764 = vpop.f32.mrb[0].mxu0
      %v1765 = vpop.f32.mrb[0].mxu0
      %v1766 = vadd.f32 %v1457, %v1765
      %v1767 = vpop.f32.mrb[0].mxu0
      %1768 = vmatprep.mubr.bf16.mxu0 0
      %1769 = vmatmul.mubr.bf16.gmra.mrb[0].mxu0 %v1509
      %v1770 = vpop.f32.mrb[0].mxu0
      %v1771 = vadd.f32 %v1457, %v1770
      %v1772 = vpop.f32.mrb[0].mxu0
      %v1773 = vpop.f32.mrb[0].mxu0
      %v1774 = vadd.f32 %v1457, %v1773
      %v1775 = vpop.f32.mrb[0].mxu0
      %1776 = vmatprep.mubr.bf16.mxu0 0
      %1777 = vmatmul.mubr.bf16.gmra.mrb[0].mxu0 %v1512
      %v1778 = vpop.f32.mrb[0].mxu0
      %v1779 = vadd.f32 %v1457, %v1778
      %v1780 = vpop.f32.mrb[0].mxu0
      %v1781 = vpop.f32.mrb[0].mxu0
      %v1782 = vadd.f32 %v1457, %v1781
      %v1783 = vpop.f32.mrb[0].mxu0
      %1784 = vmatprep.mubr.bf16.mxu0 0
      %1785 = vmatmul.mubr.bf16.gmra.mrb[0].mxu0 %v1515
      %v1786 = vpop.f32.mrb[0].mxu0
      %v1787 = vadd.f32 %v1457, %v1786
      %v1788 = vpop.f32.mrb[0].mxu0
      %v1789 = vpop.f32.mrb[0].mxu0
      %v1790 = vadd.f32 %v1457, %v1789
      %v1791 = vpop.f32.mrb[0].mxu0
      %1792 = vmatprep.mubr.bf16.mxu0 0
      %1793 = vmatmul.mubr.bf16.gmra.mrb[0].mxu0 %v1518
      %v1794 = vpop.f32.mrb[0].mxu0
      %v1795 = vadd.f32 %v1457, %v1794
      %v1796 = vpop.f32.mrb[0].mxu0
      %v1797 = vpop.f32.mrb[0].mxu0
      %v1798 = vadd.f32 %v1457, %v1797
      %v1799 = vpop.f32.mrb[0].mxu0
      %1800 = vmatprep.mubr.bf16.mxu0 0
      %1801 = vmatmul.mubr.bf16.gmra.mrb[0].mxu0 %v1521
      %v1802 = vpop.f32.mrb[0].mxu0
      %v1803 = vadd.f32 %v1457, %v1802
      %v1804 = vpop.f32.mrb[0].mxu0
      %v1805 = vpop.f32.mrb[0].mxu0
      %v1806 = vadd.f32 %v1457, %v1805
      %v1807 = vpop.f32.mrb[0].mxu0
      %1808 = vmatprep.mubr.bf16.mxu0 0
      %1809 = vmatmul.mubr.bf16.gmra.mrb[0].mxu0 %v1524
      %v1810 = vpop.f32.mrb[0].mxu0
      %v1811 = vadd.f32 %v1457, %v1810
      %v1812 = vpop.f32.mrb[0].mxu0
      %v1813 = vpop.f32.mrb[0].mxu0
      %v1814 = vadd.f32 %v1457, %v1813
      %v1815 = vpop.f32.mrb[0].mxu0
      %1816 = vmatprep.mubr.bf16.mxu0 0
      %1817 = vmatmul.mubr.bf16.gmra.mrb[0].mxu0 %v1527
      %v1818 = vpop.f32.mrb[0].mxu0
      %v1819 = vadd.f32 %v1457, %v1818
      %v1820 = vpop.f32.mrb[0].mxu0
      %v1821 = vpop.f32.mrb[0].mxu0
      %v1822 = vadd.f32 %v1457, %v1821
      %v1823 = vpop.f32.mrb[0].mxu0
      %1824 = vmatprep.mubr.bf16.mxu0 0
      %1825 = vmatmul.mubr.bf16.gmra.mrb[0].mxu0 %v1530
      %v1826 = vpop.f32.mrb[0].mxu0
      %v1827 = vadd.f32 %v1457, %v1826
      %v1828 = vpop.f32.mrb[0].mxu0
      %v1829 = vpop.f32.mrb[0].mxu0
      %v1830 = vadd.f32 %v1457, %v1829
      %v1831 = vpop.f32.mrb[0].mxu0
      %1832 = vmatprep.mubr.bf16.mxu0 0
      %1833 = vmatmul.mubr.bf16.gmra.mrb[0].mxu0 %v1533
      %v1834 = vpop.f32.mrb[0].mxu0
      %v1835 = vadd.f32 %v1457, %v1834
      %v1836 = vpop.f32.mrb[0].mxu0
      %v1837 = vpop.f32.mrb[0].mxu0
      %v1838 = vadd.f32 %v1457, %v1837
      %v1839 = vpop.f32.mrb[0].mxu0
      %1840 = vmatprep.mubr.bf16.mxu0 0
      %1841 = vmatmul.mubr.bf16.gmra.mrb[0].mxu0 %v1536
      %v1842 = vpop.f32.mrb[0].mxu0
      %v1843 = vadd.f32 %v1457, %v1842
      %v1844 = vpop.f32.mrb[0].mxu0
      %v1845 = vpop.f32.mrb[0].mxu0
      %v1846 = vadd.f32 %v1457, %v1845
      %v1847 = vpop.f32.mrb[0].mxu0
      %1848 = vmatprep.mubr.bf16.mxu0 0
      %1849 = vmatmul.mubr.bf16.gmra.mrb[0].mxu0 %v1539
      %v1850 = vpop.f32.mrb[0].mxu0
      %v1851 = vadd.f32 %v1457, %v1850
      %v1852 = vpop.f32.mrb[0].mxu0
      %v1853 = vpop.f32.mrb[0].mxu0
      %v1854 = vadd.f32 %v1457, %v1853
      %v1855 = vpop.f32.mrb[0].mxu0
      %1856 = vmatprep.mubr.bf16.mxu0 0
      %1857 = vmatmul.mubr.bf16.gmra.mrb[0].mxu0 %v1542
      %v1858 = vpop.f32.mrb[0].mxu0
      %v1859 = vadd.f32 %v1457, %v1858
      %v1860 = vpop.f32.mrb[0].mxu0
      %v1861 = vpop.f32.mrb[0].mxu0
      %v1862 = vadd.f32 %v1457, %v1861
      %v1863 = vpop.f32.mrb[0].mxu0
      %1864 = vmatprep.mubr.bf16.mxu0 0
      %1865 = vmatmul.mubr.bf16.gmra.mrb[0].mxu0 %v1545
      %v1866 = vpop.f32.mrb[0].mxu0
      %v1867 = vadd.f32 %v1457, %v1866
      %v1868 = vpop.f32.mrb[0].mxu0
      %v1869 = vpop.f32.mrb[0].mxu0
      %v1870 = vadd.f32 %v1457, %v1869
      %v1871 = vpop.f32.mrb[0].mxu0
      %1872 = vmatprep.mubr.bf16.mxu0 0
      %1873 = vmatmul.mubr.bf16.gmra.mrb[0].mxu0 %v1548
      %v1874 = vpop.f32.mrb[0].mxu0
      %v1875 = vadd.f32 %v1457, %v1874
      %v1876 = vpop.f32.mrb[0].mxu0
      %v1877 = vpop.f32.mrb[0].mxu0
      %v1878 = vadd.f32 %v1457, %v1877
      %v1879 = vpop.f32.mrb[0].mxu0
      %1880 = vmatprep.mubr.bf16.mxu0 0
      %1881 = vmatmul.mubr.bf16.gmra.mrb[0].mxu0 %v1551
      %v1882 = vpop.f32.mrb[0].mxu0
      %v1883 = vadd.f32 %v1457, %v1882
      %v1884 = vpop.f32.mrb[0].mxu0
      %v1885 = vpop.f32.mrb[0].mxu0
      %v1886 = vadd.f32 %v1457, %v1885
      %v1887 = vpop.f32.mrb[0].mxu0
      %1888 = vmatprep.mubr.bf16.mxu0 0
      %1889 = vmatmul.mubr.bf16.gmra.mrb[0].mxu0 %v1554
      %v1890 = vpop.f32.mrb[0].mxu0
      %v1891 = vadd.f32 %v1457, %v1890
      %v1892 = vpop.f32.mrb[0].mxu0
      %v1893 = vpop.f32.mrb[0].mxu0
      %v1894 = vadd.f32 %v1457, %v1893
      %v1895 = vpop.f32.mrb[0].mxu0
      %1896 = vmatprep.mubr.bf16.mxu0 0
      %1897 = vmatmul.mubr.bf16.gmra.mrb[0].mxu0 %v1557
      %v1898 = vpop.f32.mrb[0].mxu0
      %v1899 = vadd.f32 %v1457, %v1898
      %v1900 = vpop.f32.mrb[0].mxu0
      %v1901 = vpop.f32.mrb[0].mxu0
      %v1902 = vadd.f32 %v1457, %v1901
      %v1903 = vpop.f32.mrb[0].mxu0
      %1904 = vmatprep.mubr.bf16.mxu0 0
      %1905 = vmatmul.mubr.bf16.gmra.mrb[0].mxu0 %v1560
      %v1906 = vpop.f32.mrb[0].mxu0
      %v1907 = vadd.f32 %v1457, %v1906
      %v1908 = vpop.f32.mrb[0].mxu0
      %v1909 = vpop.f32.mrb[0].mxu0
      %v1910 = vadd.f32 %v1457, %v1909
      %v1911 = vpop.f32.mrb[0].mxu0
      %1912 = vmatprep.mubr.bf16.mxu0 0
      %1913 = vmatmul.mubr.bf16.gmra.mrb[0].mxu0 %v1563
      %v1914 = vpop.f32.mrb[0].mxu0
      %v1915 = vadd.f32 %v1457, %v1914
      %v1916 = vpop.f32.mrb[0].mxu0
      %v1917 = vpop.f32.mrb[0].mxu0
      %v1918 = vadd.f32 %v1457, %v1917
      %v1919 = vpop.f32.mrb[0].mxu0
      %1920 = vmatprep.mubr.bf16.mxu0 0
      %1921 = vmatmul.mubr.bf16.gmra.mrb[0].mxu0 %v1566
      %v1922 = vpop.f32.mrb[0].mxu0
      %v1923 = vadd.f32 %v1457, %v1922
      %v1924 = vpop.f32.mrb[0].mxu0
      %v1925 = vpop.f32.mrb[0].mxu0
      %v1926 = vadd.f32 %v1457, %v1925
      %v1927 = vpop.f32.mrb[0].mxu0
      %1928 = vmatprep.mubr.bf16.mxu0 0
      %1929 = vmatmul.mubr.bf16.gmra.mrb[0].mxu0 %v1569
      %v1930 = vpop.f32.mrb[0].mxu0
      %v1931 = vadd.f32 %v1457, %v1930
      %v1932 = vpop.f32.mrb[0].mxu0
      %v1933 = vpop.f32.mrb[0].mxu0
      %v1934 = vadd.f32 %v1457, %v1933
      %v1935 = vpop.f32.mrb[0].mxu0
      %1936 = vmatprep.mubr.bf16.mxu0 0
      %1937 = vmatmul.mubr.bf16.gmra.mrb[0].mxu0 %v1572
      %v1938 = vpop.f32.mrb[0].mxu0
      %v1939 = vadd.f32 %v1457, %v1938
      %v1940 = vpop.f32.mrb[0].mxu0
      %v1941 = vpop.f32.mrb[0].mxu0
      %v1942 = vadd.f32 %v1457, %v1941
      %v1943 = vpop.f32.mrb[0].mxu0
      %1944 = vmatprep.mubr.bf16.mxu0 0
      %1945 = vmatmul.mubr.bf16.gmra.mrb[0].mxu0 %v1575
      %v1946 = vpop.f32.mrb[0].mxu0
      %v1947 = vadd.f32 %v1457, %v1946
      %v1948 = vpop.f32.mrb[0].mxu0
      %v1949 = vpop.f32.mrb[0].mxu0
      %v1950 = vadd.f32 %v1457, %v1949
      %v1951 = vpop.f32.mrb[0].mxu0
      %1952 = vmatprep.mubr.bf16.mxu0 0
      %1953 = vmatmul.mubr.bf16.gmra.mrb[0].mxu0 %v1578
      %v1954 = vpop.f32.mrb[0].mxu0
      %v1955 = vadd.f32 %v1457, %v1954
      %v1956 = vpop.f32.mrb[0].mxu0
      %v1957 = vpop.f32.mrb[0].mxu0
      %v1958 = vadd.f32 %v1457, %v1957
      %v1959 = vpop.f32.mrb[0].mxu0
      %1960 = vmatprep.mubr.bf16.mxu0 0
      %1961 = vmatmul.mubr.bf16.gmra.mrb[0].mxu0 %v1581
      %v1962 = vpop.f32.mrb[0].mxu0
      %v1963 = vadd.f32 %v1457, %v1962
      %v1964 = vpop.f32.mrb[0].mxu0
      %v1965 = vpop.f32.mrb[0].mxu0
      %v1966 = vadd.f32 %v1457, %v1965
      %v1967 = vpop.f32.mrb[0].mxu0
      %1968 = vmatprep.mubr.bf16.mxu0 0
      %1969 = vmatmul.mubr.bf16.gmra.mrb[0].mxu0 %v1584
      %v1970 = vpop.f32.mrb[0].mxu0
      %v1971 = vadd.f32 %v1457, %v1970
      %v1972 = vpop.f32.mrb[0].mxu0
      %v1973 = vpop.f32.mrb[0].mxu0
      %v1974 = vadd.f32 %v1457, %v1973
      %v1975 = vpop.f32.mrb[0].mxu0
      %1976 = vmatprep.mubr.bf16.mxu0 0
      %1977 = vmatmul.mubr.bf16.gmra.mrb[0].mxu0 %v1587
      %v1978 = vpop.f32.mrb[0].mxu0
      %v1979 = vadd.f32 %v1457, %v1978
      %v1980 = vpop.f32.mrb[0].mxu0
      %v1981 = vpop.f32.mrb[0].mxu0
      %v1982 = vadd.f32 %v1457, %v1981
      %v1983 = vpop.f32.mrb[0].mxu0
      %1984 = vmatprep.mubr.bf16.mxu0 0
      %1985 = vmatmul.mubr.bf16.gmra.mrb[0].mxu0 %v1590
      %v1986 = vpop.f32.mrb[0].mxu0
      %v1987 = vadd.f32 %v1457, %v1986
      %v1988 = vpop.f32.mrb[0].mxu0
      %v1989 = vpop.f32.mrb[0].mxu0
      %v1990 = vadd.f32 %v1457, %v1989
      %v1991 = vpop.f32.mrb[0].mxu0
      %1992 = vmatprep.mubr.bf16.mxu0 0
      %1993 = vmatmul.mubr.bf16.gmra.mrb[0].mxu0 %v1593
      %v1994 = vpop.f32.mrb[0].mxu0
      %v1995 = vadd.f32 %v1457, %v1994
      %v1996 = vpop.f32.mrb[0].mxu0
      %v1997 = vpop.f32.mrb[0].mxu0
      %v1998 = vadd.f32 %v1457, %v1997
      %v1999 = vpop.f32.mrb[0].mxu0
      %2000 = vmatprep.mubr.bf16.mxu0 0
      %2001 = vmatmul.mubr.bf16.gmra.mrb[0].mxu0 %v1596
      %v2002 = vpop.f32.mrb[0].mxu0
      %v2003 = vadd.f32 %v1457, %v2002
      %v2004 = vpop.f32.mrb[0].mxu0
      %v2005 = vpop.f32.mrb[0].mxu0
      %v2006 = vadd.f32 %v1457, %v2005
      %v2007 = vpop.f32.mrb[0].mxu0
      %2008 = vmatprep.mubr.bf16.mxu0 0
      %2009 = vmatmul.mubr.bf16.gmra.mrb[0].mxu0 %v1599
      %v2010 = vpop.f32.mrb[0].mxu0
      %v2011 = vadd.f32 %v1457, %v2010
      %v2012 = vpop.f32.mrb[0].mxu0
      %v2013 = vpop.f32.mrb[0].mxu0
      %v2014 = vadd.f32 %v1457, %v2013
      %v2015 = vpop.f32.mrb[0].mxu0
      %2016 = vmatprep.mubr.bf16.mxu0 0
      %2017 = vmatmul.mubr.bf16.gmra.mrb[0].mxu0 %v1602
      %v2018 = vpop.f32.mrb[0].mxu0
      %v2019 = vadd.f32 %v1457, %v2018
      %v2020 = vpop.f32.mrb[0].mxu0
      %v2021 = vpop.f32.mrb[0].mxu0
      %v2022 = vadd.f32 %v1457, %v2021
      %v2023 = vpop.f32.mrb[0].mxu0
      %2024 = vmatprep.mubr.bf16.mxu0 0
      %2025 = vmatmul.mubr.bf16.gmra.mrb[0].mxu0 %v1605
      %v2026 = vpop.f32.mrb[0].mxu0
      %v2027 = vadd.f32 %v1457, %v2026
      %v2028 = vpop.f32.mrb[0].mxu0
      %v2029 = vpop.f32.mrb[0].mxu0
      %v2030 = vadd.f32 %v1457, %v2029
      %v2031 = vpop.f32.mrb[0].mxu0
      %2032 = vmatprep.mubr.bf16.mxu0 0
      %2033 = vmatmul.mubr.bf16.gmra.mrb[0].mxu0 %v1608
      %v2034 = vpop.f32.mrb[0].mxu0
      %v2035 = vadd.f32 %v1457, %v2034
      %v2036 = vpop.f32.mrb[0].mxu0
      %v2037 = vpop.f32.mrb[0].mxu0
      %v2038 = vadd.f32 %v1457, %v2037
      %v2039 = vpop.f32.mrb[0].mxu0
      %2040 = vmatprep.mubr.bf16.mxu0 0
      %2041 = vmatmul.mubr.bf16.gmra.mrb[0].mxu0 %v1611
      %v2042 = vpop.f32.mrb[0].mxu0
      %v2043 = vadd.f32 %v1457, %v2042
      %v2044 = vpop.f32.mrb[0].mxu0
      %v2045 = vpop.f32.mrb[0].mxu0
      %v2046 = vadd.f32 %v1457, %v2045
      %v2047 = vpop.f32.mrb[0].mxu0
      %2048 = vmatprep.mubr.bf16.mxu0 0
      %2049 = vmatmul.mubr.bf16.gmra.mrb[0].mxu0 %v1614
      %v2050 = vpop.f32.mrb[0].mxu0
      %v2051 = vadd.f32 %v1457, %v2050
      %v2052 = vpop.f32.mrb[0].mxu0
      %v2053 = vpop.f32.mrb[0].mxu0
      %v2054 = vadd.f32 %v1457, %v2053
      %v2055 = vpop.f32.mrb[0].mxu0
      %2056 = vmatprep.mubr.bf16.mxu0 0
      %2057 = vmatmul.mubr.bf16.gmra.mrb[0].mxu0 %v1617
      %v2058 = vpop.f32.mrb[0].mxu0
      %v2059 = vadd.f32 %v1457, %v2058
      %v2060 = vpop.f32.mrb[0].mxu0
      %v2061 = vpop.f32.mrb[0].mxu0
      %v2062 = vadd.f32 %v1457, %v2061
      %v2063 = vpop.f32.mrb[0].mxu0
      %2064 = vmatprep.mubr.bf16.mxu0 0
      %2065 = vmatmul.mubr.bf16.gmra.mrb[0].mxu0 %v1620
      %v2066 = vpop.f32.mrb[0].mxu0
      %v2067 = vadd.f32 %v1457, %v2066
      %v2068 = vpop.f32.mrb[0].mxu0
      %v2069 = vpop.f32.mrb[0].mxu0
      %v2070 = vadd.f32 %v1457, %v2069
      %v2071 = vpop.f32.mrb[0].mxu0
      %2072 = vmatprep.mubr.bf16.mxu0 0
      %2073 = vmatmul.mubr.bf16.gmra.mrb[0].mxu0 %v1623
      %v2074 = vpop.f32.mrb[0].mxu0
      %v2075 = vadd.f32 %v1457, %v2074
      %v2076 = vpop.f32.mrb[0].mxu0
      %v2077 = vpop.f32.mrb[0].mxu0
      %v2078 = vadd.f32 %v1457, %v2077
      %v2079 = vpop.f32.mrb[0].mxu0
      %2080 = vmatprep.mubr.bf16.mxu0 0
      %2081 = vmatmul.mubr.bf16.gmra.mrb[0].mxu0 %v1626
      %v2082 = vpop.f32.mrb[0].mxu0
      %v2083 = vadd.f32 %v1457, %v2082
      %v2084 = vpop.f32.mrb[0].mxu0
      %v2085 = vpop.f32.mrb[0].mxu0
      %v2086 = vadd.f32 %v1457, %v2085
      %v2087 = vpop.f32.mrb[0].mxu0
      %2088 = vmatprep.mubr.bf16.mxu0 0
      %2089 = vmatmul.mubr.bf16.gmra.mrb[0].mxu0 %v1629
      %v2090 = vpop.f32.mrb[0].mxu0
      %v2091 = vadd.f32 %v1457, %v2090
      %v2092 = vpop.f32.mrb[0].mxu0
      %v2093 = vpop.f32.mrb[0].mxu0
      %v2094 = vadd.f32 %v1457, %v2093
      %v2095 = vpop.f32.mrb[0].mxu0
      %2096 = vmatprep.mubr.bf16.mxu0 0
      %2097 = vmatmul.mubr.bf16.gmra.mrb[0].mxu0 %v1632
      %v2098 = vpop.f32.mrb[0].mxu0
      %v2099 = vadd.f32 %v1457, %v2098
      %v2100 = vpop.f32.mrb[0].mxu0
      %v2101 = vpop.f32.mrb[0].mxu0
      %v2102 = vadd.f32 %v1457, %v2101
      %v2103 = vpop.f32.mrb[0].mxu0
      %2104 = vmatprep.mubr.bf16.mxu0 0
      %2105 = vmatmul.mubr.bf16.gmra.mrb[0].mxu0 %v1635
      %v2106 = vpop.f32.mrb[0].mxu0
      %v2107 = vadd.f32 %v1457, %v2106
      %v2108 = vpop.f32.mrb[0].mxu0
      %v2109 = vpop.f32.mrb[0].mxu0
      %v2110 = vadd.f32 %v1457, %v2109
      %v2111 = vpop.f32.mrb[0].mxu0
      %2112 = vmatprep.mubr.bf16.mxu0 0
      %2113 = vmatmul.mubr.bf16.gmra.mrb[0].mxu0 %v1638
      %v2114 = vpop.f32.mrb[0].mxu0
      %v2115 = vadd.f32 %v1457, %v2114
      %v2116 = vpop.f32.mrb[0].mxu0
      %v2117 = vpop.f32.mrb[0].mxu0
      %v2118 = vadd.f32 %v1457, %v2117
      %v2119 = vpop.f32.mrb[0].mxu0
      %2120 = vdwg.mxu0
      %v2121 = vmax.f32 %v1675, 0.0
      %v2122 = vmax.f32 %v1678, 0.0
      %v2123 = vmax.f32 %v1683, 0.0
      %v2124 = vmax.f32 %v1686, 0.0
      %v2125 = vmax.f32 %v1691, 0.0
      %v2126 = vmax.f32 %v1694, 0.0
      %v2127 = vmax.f32 %v1699, 0.0
      %v2128 = vmax.f32 %v1702, 0.0
      %v2129 = vmax.f32 %v1707, 0.0
      %v2130 = vmax.f32 %v1710, 0.0
      %v2131 = vmax.f32 %v1715, 0.0
      %v2132 = vmax.f32 %v1718, 0.0
      %v2133 = vmax.f32 %v1723, 0.0
      %v2134 = vmax.f32 %v1726, 0.0
      %v2135 = vmax.f32 %v1731, 0.0
      %v2136 = vmax.f32 %v1734, 0.0
      %v2137 = vmax.f32 %v1739, 0.0
      %v2138 = vmax.f32 %v1742, 0.0
      %v2139 = vmax.f32 %v1747, 0.0
      %v2140 = vmax.f32 %v1750, 0.0
      %v2141 = vmax.f32 %v1755, 0.0
      %v2142 = vmax.f32 %v1758, 0.0
      %v2143 = vmax.f32 %v1763, 0.0
      %v2144 = vmax.f32 %v1766, 0.0
      %v2145 = vmax.f32 %v1771, 0.0
      %v2146 = vmax.f32 %v1774, 0.0
      %v2147 = vmax.f32 %v1779, 0.0
      %v2148 = vmax.f32 %v1782, 0.0
      %v2149 = vmax.f32 %v1787, 0.0
      %v2150 = vmax.f32 %v1790, 0.0
      %v2151 = vmax.f32 %v1795, 0.0
      %v2152 = vmax.f32 %v1798, 0.0
      %v2153 = vmax.f32 %v1803, 0.0
      %v2154 = vmax.f32 %v1806, 0.0
      %v2155 = vmax.f32 %v1811, 0.0
      %v2156 = vmax.f32 %v1814, 0.0
      %v2157 = vmax.f32 %v1819, 0.0
      %v2158 = vmax.f32 %v1822, 0.0
      %v2159 = vmax.f32 %v1827, 0.0
      %v2160 = vmax.f32 %v1830, 0.0
      %v2161 = vmax.f32 %v1835, 0.0
      %v2162 = vmax.f32 %v1838, 0.0
      %v2163 = vmax.f32 %v1843, 0.0
      %v2164 = vmax.f32 %v1846, 0.0
      %v2165 = vmax.f32 %v1851, 0.0
      %v2166 = vmax.f32 %v1854, 0.0
      %v2167 = vmax.f32 %v1859, 0.0
      %v2168 = vmax.f32 %v1862, 0.0
      %v2169 = vmax.f32 %v1867, 0.0
      %v2170 = vmax.f32 %v1870, 0.0
      %v2171 = vmax.f32 %v1875, 0.0
      %v2172 = vmax.f32 %v1878, 0.0
      %v2173 = vmax.f32 %v1883, 0.0
      %v2174 = vmax.f32 %v1886, 0.0
      %v2175 = vmax.f32 %v1891, 0.0
      %v2176 = vmax.f32 %v1894, 0.0
      %v2177 = vmax.f32 %v1899, 0.0
      %v2178 = vmax.f32 %v1902, 0.0
      %v2179 = vmax.f32 %v1907, 0.0
      %v2180 = vmax.f32 %v1910, 0.0
      %v2181 = vmax.f32 %v1915, 0.0
      %v2182 = vmax.f32 %v1918, 0.0
      %v2183 = vmax.f32 %v1923, 0.0
      %v2184 = vmax.f32 %v1926, 0.0
      %v2185 = vmax.f32 %v1931, 0.0
      %v2186 = vmax.f32 %v1934, 0.0
      %v2187 = vmax.f32 %v1939, 0.0
      %v2188 = vmax.f32 %v1942, 0.0
      %v2189 = vmax.f32 %v1947, 0.0
      %v2190 = vmax.f32 %v1950, 0.0
      %v2191 = vmax.f32 %v1955, 0.0
      %v2192 = vmax.f32 %v1958, 0.0
      %v2193 = vmax.f32 %v1963, 0.0
      %v2194 = vmax.f32 %v1966, 0.0
      %v2195 = vmax.f32 %v1971, 0.0
      %v2196 = vmax.f32 %v1974, 0.0
      %v2197 = vmax.f32 %v1979, 0.0
      %v2198 = vmax.f32 %v1982, 0.0
      %v2199 = vmax.f32 %v1987, 0.0
      %v2200 = vmax.f32 %v1990, 0.0
      %v2201 = vmax.f32 %v1995, 0.0
      %v2202 = vmax.f32 %v1998, 0.0
      %v2203 = vmax.f32 %v2003, 0.0
      %v2204 = vmax.f32 %v2006, 0.0
      %v2205 = vmax.f32 %v2011, 0.0
      %v2206 = vmax.f32 %v2014, 0.0
      %v2207 = vmax.f32 %v2019, 0.0
      %v2208 = vmax.f32 %v2022, 0.0
      %v2209 = vmax.f32 %v2027, 0.0
      %v2210 = vmax.f32 %v2030, 0.0
      %v2211 = vmax.f32 %v2035, 0.0
      %v2212 = vmax.f32 %v2038, 0.0
      %v2213 = vmax.f32 %v2043, 0.0
      %v2214 = vmax.f32 %v2046, 0.0
      %v2215 = vmax.f32 %v2051, 0.0
      %v2216 = vmax.f32 %v2054, 0.0
      %v2217 = vmax.f32 %v2059, 0.0
      %v2218 = vmax.f32 %v2062, 0.0
      %v2219 = vmax.f32 %v2067, 0.0
      %v2220 = vmax.f32 %v2070, 0.0
      %v2221 = vmax.f32 %v2075, 0.0
      %v2222 = vmax.f32 %v2078, 0.0
      %v2223 = vmax.f32 %v2083, 0.0
      %v2224 = vmax.f32 %v2086, 0.0
      %v2225 = vmax.f32 %v2091, 0.0
      %v2226 = vmax.f32 %v2094, 0.0
      %v2227 = vmax.f32 %v2099, 0.0
      %v2228 = vmax.f32 %v2102, 0.0
      %v2229 = vmax.f32 %v2107, 0.0
      %v2230 = vmax.f32 %v2110, 0.0
      %v2231 = vmax.f32 %v2115, 0.0
      %v2232 = vmax.f32 %v2118, 0.0
      %v2233 = vpack.c.bf16 %v2122, %v2121
      %v2234 = vpack.c.bf16 %v2124, %v2123
      %v2235 = vpack.c.bf16 %v2126, %v2125
      %v2236 = vpack.c.bf16 %v2128, %v2127
      %v2237 = vpack.c.bf16 %v2130, %v2129
      %v2238 = vpack.c.bf16 %v2132, %v2131
      %v2239 = vpack.c.bf16 %v2134, %v2133
      %v2240 = vpack.c.bf16 %v2136, %v2135
      %v2241 = vpack.c.bf16 %v2138, %v2137
      %v2242 = vpack.c.bf16 %v2140, %v2139
      %v2243 = vpack.c.bf16 %v2142, %v2141
      %v2244 = vpack.c.bf16 %v2144, %v2143
      %v2245 = vpack.c.bf16 %v2146, %v2145
      %v2246 = vpack.c.bf16 %v2148, %v2147
      %v2247 = vpack.c.bf16 %v2150, %v2149
      %v2248 = vpack.c.bf16 %v2152, %v2151
      %v2249 = vpack.c.bf16 %v2154, %v2153
      %v2250 = vpack.c.bf16 %v2156, %v2155
      %v2251 = vpack.c.bf16 %v2158, %v2157
      %v2252 = vpack.c.bf16 %v2160, %v2159
      %v2253 = vpack.c.bf16 %v2162, %v2161
      %v2254 = vpack.c.bf16 %v2164, %v2163
      %v2255 = vpack.c.bf16 %v2166, %v2165
      %v2256 = vpack.c.bf16 %v2168, %v2167
      %v2257 = vpack.c.bf16 %v2170, %v2169
      %v2258 = vpack.c.bf16 %v2172, %v2171
      %v2259 = vpack.c.bf16 %v2174, %v2173
      %v2260 = vpack.c.bf16 %v2176, %v2175
      %v2261 = vpack.c.bf16 %v2178, %v2177
      %v2262 = vpack.c.bf16 %v2180, %v2179
      %v2263 = vpack.c.bf16 %v2182, %v2181
      %v2264 = vpack.c.bf16 %v2184, %v2183
      %v2265 = vpack.c.bf16 %v2186, %v2185
      %v2266 = vpack.c.bf16 %v2188, %v2187
      %v2267 = vpack.c.bf16 %v2190, %v2189
      %v2268 = vpack.c.bf16 %v2192, %v2191
      %v2269 = vpack.c.bf16 %v2194, %v2193
      %v2270 = vpack.c.bf16 %v2196, %v2195
      %v2271 = vpack.c.bf16 %v2198, %v2197
      %v2272 = vpack.c.bf16 %v2200, %v2199
      %v2273 = vpack.c.bf16 %v2202, %v2201
      %v2274 = vpack.c.bf16 %v2204, %v2203
      %v2275 = vpack.c.bf16 %v2206, %v2205
      %v2276 = vpack.c.bf16 %v2208, %v2207
      %v2277 = vpack.c.bf16 %v2210, %v2209
      %v2278 = vpack.c.bf16 %v2212, %v2211
      %v2279 = vpack.c.bf16 %v2214, %v2213
      %v2280 = vpack.c.bf16 %v2216, %v2215
      %v2281 = vpack.c.bf16 %v2218, %v2217
      %v2282 = vpack.c.bf16 %v2220, %v2219
      %v2283 = vpack.c.bf16 %v2222, %v2221
      %v2284 = vpack.c.bf16 %v2224, %v2223
      %v2285 = vpack.c.bf16 %v2226, %v2225
      %v2286 = vpack.c.bf16 %v2228, %v2227
      %v2287 = vpack.c.bf16 %v2230, %v2229
      %v2288 = vpack.c.bf16 %v2232, %v2231
      %s2289 = scalar_lea.vmem %s2, 48
      %v2290 = vld [vmem:[%s2289] sm:$0xf]
      %v2291 = vld [vmem:[%s2289 + $0x4] sm:$0xf]
      %s2292 = scalar_lea.vmem %s3, 2
      %v2293 = vld [vmem:[%s2292] sm:$0x1]
      %v2295 = vlaneseq
      %v2296 = vshrl.u32 %v2295, 7
      %v2297 = vsub.s32 0, %v2296
      %v2298 = vrot.slane %v2293, %v2297
      %v2302 = vunpack.c.l.b16 %v2290
      %v2303 = vunpack.c.l.b16 %v2291
      %v2304 = vpack.c.b16 %v2303, %v2302
      %vm2306 = vcmask 130048
      %v2308 = vsel %vm2306, %v2233, 0
      %v2311 = vsel %vm2306, %v2234, 0
      %v2314 = vsel %vm2306, %v2235, 0
      %v2317 = vsel %vm2306, %v2236, 0
      %v2320 = vsel %vm2306, %v2237, 0
      %v2323 = vsel %vm2306, %v2238, 0
      %v2326 = vsel %vm2306, %v2239, 0
      %v2329 = vsel %vm2306, %v2240, 0
      %v2332 = vsel %vm2306, %v2241, 0
      %v2335 = vsel %vm2306, %v2242, 0
      %v2338 = vsel %vm2306, %v2243, 0
      %v2341 = vsel %vm2306, %v2244, 0
      %v2344 = vsel %vm2306, %v2245, 0
      %v2347 = vsel %vm2306, %v2246, 0
      %v2350 = vsel %vm2306, %v2247, 0
      %v2353 = vsel %vm2306, %v2248, 0
      %v2356 = vsel %vm2306, %v2249, 0
      %v2359 = vsel %vm2306, %v2250, 0
      %v2362 = vsel %vm2306, %v2251, 0
      %v2365 = vsel %vm2306, %v2252, 0
      %v2368 = vsel %vm2306, %v2253, 0
      %v2371 = vsel %vm2306, %v2254, 0
      %v2374 = vsel %vm2306, %v2255, 0
      %v2377 = vsel %vm2306, %v2256, 0
      %v2380 = vsel %vm2306, %v2257, 0
      %v2383 = vsel %vm2306, %v2258, 0
      %v2386 = vsel %vm2306, %v2259, 0
      %v2389 = vsel %vm2306, %v2260, 0
      %v2392 = vsel %vm2306, %v2261, 0
      %v2395 = vsel %vm2306, %v2262, 0
      %v2398 = vsel %vm2306, %v2263, 0
      %v2401 = vsel %vm2306, %v2264, 0
      %v2404 = vsel %vm2306, %v2265, 0
      %v2407 = vsel %vm2306, %v2266, 0
      %v2410 = vsel %vm2306, %v2267, 0
      %v2413 = vsel %vm2306, %v2268, 0
      %v2416 = vsel %vm2306, %v2269, 0
      %v2419 = vsel %vm2306, %v2270, 0
      %v2422 = vsel %vm2306, %v2271, 0
      %v2425 = vsel %vm2306, %v2272, 0
      %v2428 = vsel %vm2306, %v2273, 0
      %v2431 = vsel %vm2306, %v2274, 0
      %v2434 = vsel %vm2306, %v2275, 0
      %v2437 = vsel %vm2306, %v2276, 0
      %v2440 = vsel %vm2306, %v2277, 0
      %v2443 = vsel %vm2306, %v2278, 0
      %v2446 = vsel %vm2306, %v2279, 0
      %v2449 = vsel %vm2306, %v2280, 0
      %v2452 = vsel %vm2306, %v2281, 0
      %v2455 = vsel %vm2306, %v2282, 0
      %v2458 = vsel %vm2306, %v2283, 0
      %v2461 = vsel %vm2306, %v2284, 0
      %v2464 = vsel %vm2306, %v2285, 0
      %v2467 = vsel %vm2306, %v2286, 0
      %v2470 = vsel %vm2306, %v2287, 0
      %v2473 = vsel %vm2306, %v2288, 0
      %2475 = vmatprep.subr.bf16.mxu0 0
      %2476 = vmatpush1.bf16.msra.mxu0 %v2304
      %2477 = vmatprep.subr.bf16.mxu0 0
      %2478 = vmatpush1.bf16.msra.mxu0 0
      %2479 = vmatprep.subr.bf16.mxu0 0
      %2480 = vmatpush1.bf16.msra.mxu0 0
      %2481 = vmatprep.subr.bf16.mxu0 0
      %2482 = vmatpush1.bf16.msra.mxu0 0
      %2483 = vmatprep.subr.bf16.mxu0 0
      %2484 = vmatpush1.bf16.msra.mxu0 0
      %2485 = vmatprep.subr.bf16.mxu0 0
      %2486 = vmatpush1.bf16.msra.mxu0 0
      %2487 = vmatprep.subr.bf16.mxu0 0
      %2488 = vmatpush1.bf16.msra.mxu0 0
      %2489 = vmatprep.subr.bf16.mxu0 0
      %2490 = vmatpush1.bf16.msra.mxu0 0
      %2491 = vmatprep.subr.bf16.mxu0 0
      %2492 = vmatpush1.bf16.msra.mxu0 0
      %2493 = vmatprep.subr.bf16.mxu0 0
      %2494 = vmatpush1.bf16.msra.mxu0 0
      %2495 = vmatprep.subr.bf16.mxu0 0
      %2496 = vmatpush1.bf16.msra.mxu0 0
      %2497 = vmatprep.subr.bf16.mxu0 0
      %2498 = vmatpush1.bf16.msra.mxu0 0
      %2499 = vmatprep.subr.bf16.mxu0 0
      %2500 = vmatpush1.bf16.msra.mxu0 0
      %2501 = vmatprep.subr.bf16.mxu0 0
      %2502 = vmatpush1.bf16.msra.mxu0 0
      %2503 = vmatprep.subr.bf16.mxu0 0
      %2504 = vmatpush1.bf16.msra.mxu0 0
      %2505 = vmatprep.subr.bf16.mxu0 0
      %2506 = vmatpush1.bf16.msra.mxu0 0
      %2507 = vmatprep.mubr.bf16.mxu0 0
      %2508 = vmatmul.mubr.bf16.gmra.mrb[0].mxu0 %v2308
      %v2509 = vpop.f32.mrb[0].mxu0
      %v2510 = vadd.f32 %v2298, %v2509
      %v2511 = vpop.f32.mrb[0].mxu0
      %v2512 = vpop.f32.mrb[0].mxu0
      %v2513 = vadd.f32 %v2298, %v2512
      %v2514 = vpop.f32.mrb[0].mxu0
      %2515 = vmatprep.mubr.bf16.mxu0 0
      %2516 = vmatmul.mubr.bf16.gmra.mrb[0].mxu0 %v2311
      %v2517 = vpop.f32.mrb[0].mxu0
      %v2518 = vadd.f32 %v2298, %v2517
      %v2519 = vpop.f32.mrb[0].mxu0
      %v2520 = vpop.f32.mrb[0].mxu0
      %v2521 = vadd.f32 %v2298, %v2520
      %v2522 = vpop.f32.mrb[0].mxu0
      %2523 = vmatprep.mubr.bf16.mxu0 0
      %2524 = vmatmul.mubr.bf16.gmra.mrb[0].mxu0 %v2314
      %v2525 = vpop.f32.mrb[0].mxu0
      %v2526 = vadd.f32 %v2298, %v2525
      %v2527 = vpop.f32.mrb[0].mxu0
      %v2528 = vpop.f32.mrb[0].mxu0
      %v2529 = vadd.f32 %v2298, %v2528
      %v2530 = vpop.f32.mrb[0].mxu0
      %2531 = vmatprep.mubr.bf16.mxu0 0
      %2532 = vmatmul.mubr.bf16.gmra.mrb[0].mxu0 %v2317
      %v2533 = vpop.f32.mrb[0].mxu0
      %v2534 = vadd.f32 %v2298, %v2533
      %v2535 = vpop.f32.mrb[0].mxu0
      %v2536 = vpop.f32.mrb[0].mxu0
      %v2537 = vadd.f32 %v2298, %v2536
      %v2538 = vpop.f32.mrb[0].mxu0
      %2539 = vmatprep.mubr.bf16.mxu0 0
      %2540 = vmatmul.mubr.bf16.gmra.mrb[0].mxu0 %v2320
      %v2541 = vpop.f32.mrb[0].mxu0
      %v2542 = vadd.f32 %v2298, %v2541
      %v2543 = vpop.f32.mrb[0].mxu0
      %v2544 = vpop.f32.mrb[0].mxu0
      %v2545 = vadd.f32 %v2298, %v2544
      %v2546 = vpop.f32.mrb[0].mxu0
      %2547 = vmatprep.mubr.bf16.mxu0 0
      %2548 = vmatmul.mubr.bf16.gmra.mrb[0].mxu0 %v2323
      %v2549 = vpop.f32.mrb[0].mxu0
      %v2550 = vadd.f32 %v2298, %v2549
      %v2551 = vpop.f32.mrb[0].mxu0
      %v2552 = vpop.f32.mrb[0].mxu0
      %v2553 = vadd.f32 %v2298, %v2552
      %v2554 = vpop.f32.mrb[0].mxu0
      %2555 = vmatprep.mubr.bf16.mxu0 0
      %2556 = vmatmul.mubr.bf16.gmra.mrb[0].mxu0 %v2326
      %v2557 = vpop.f32.mrb[0].mxu0
      %v2558 = vadd.f32 %v2298, %v2557
      %v2559 = vpop.f32.mrb[0].mxu0
      %v2560 = vpop.f32.mrb[0].mxu0
      %v2561 = vadd.f32 %v2298, %v2560
      %v2562 = vpop.f32.mrb[0].mxu0
      %2563 = vmatprep.mubr.bf16.mxu0 0
      %2564 = vmatmul.mubr.bf16.gmra.mrb[0].mxu0 %v2329
      %v2565 = vpop.f32.mrb[0].mxu0
      %v2566 = vadd.f32 %v2298, %v2565
      %v2567 = vpop.f32.mrb[0].mxu0
      %v2568 = vpop.f32.mrb[0].mxu0
      %v2569 = vadd.f32 %v2298, %v2568
      %v2570 = vpop.f32.mrb[0].mxu0
      %2571 = vmatprep.mubr.bf16.mxu0 0
      %2572 = vmatmul.mubr.bf16.gmra.mrb[0].mxu0 %v2332
      %v2573 = vpop.f32.mrb[0].mxu0
      %v2574 = vadd.f32 %v2298, %v2573
      %v2575 = vpop.f32.mrb[0].mxu0
      %v2576 = vpop.f32.mrb[0].mxu0
      %v2577 = vadd.f32 %v2298, %v2576
      %v2578 = vpop.f32.mrb[0].mxu0
      %2579 = vmatprep.mubr.bf16.mxu0 0
      %2580 = vmatmul.mubr.bf16.gmra.mrb[0].mxu0 %v2335
      %v2581 = vpop.f32.mrb[0].mxu0
      %v2582 = vadd.f32 %v2298, %v2581
      %v2583 = vpop.f32.mrb[0].mxu0
      %v2584 = vpop.f32.mrb[0].mxu0
      %v2585 = vadd.f32 %v2298, %v2584
      %v2586 = vpop.f32.mrb[0].mxu0
      %2587 = vmatprep.mubr.bf16.mxu0 0
      %2588 = vmatmul.mubr.bf16.gmra.mrb[0].mxu0 %v2338
      %v2589 = vpop.f32.mrb[0].mxu0
      %v2590 = vadd.f32 %v2298, %v2589
      %v2591 = vpop.f32.mrb[0].mxu0
      %v2592 = vpop.f32.mrb[0].mxu0
      %v2593 = vadd.f32 %v2298, %v2592
      %v2594 = vpop.f32.mrb[0].mxu0
      %2595 = vmatprep.mubr.bf16.mxu0 0
      %2596 = vmatmul.mubr.bf16.gmra.mrb[0].mxu0 %v2341
      %v2597 = vpop.f32.mrb[0].mxu0
      %v2598 = vadd.f32 %v2298, %v2597
      %v2599 = vpop.f32.mrb[0].mxu0
      %v2600 = vpop.f32.mrb[0].mxu0
      %v2601 = vadd.f32 %v2298, %v2600
      %v2602 = vpop.f32.mrb[0].mxu0
      %2603 = vmatprep.mubr.bf16.mxu0 0
      %2604 = vmatmul.mubr.bf16.gmra.mrb[0].mxu0 %v2344
      %v2605 = vpop.f32.mrb[0].mxu0
      %v2606 = vadd.f32 %v2298, %v2605
      %v2607 = vpop.f32.mrb[0].mxu0
      %v2608 = vpop.f32.mrb[0].mxu0
      %v2609 = vadd.f32 %v2298, %v2608
      %v2610 = vpop.f32.mrb[0].mxu0
      %2611 = vmatprep.mubr.bf16.mxu0 0
      %2612 = vmatmul.mubr.bf16.gmra.mrb[0].mxu0 %v2347
      %v2613 = vpop.f32.mrb[0].mxu0
      %v2614 = vadd.f32 %v2298, %v2613
      %v2615 = vpop.f32.mrb[0].mxu0
      %v2616 = vpop.f32.mrb[0].mxu0
      %v2617 = vadd.f32 %v2298, %v2616
      %v2618 = vpop.f32.mrb[0].mxu0
      %2619 = vmatprep.mubr.bf16.mxu0 0
      %2620 = vmatmul.mubr.bf16.gmra.mrb[0].mxu0 %v2350
      %v2621 = vpop.f32.mrb[0].mxu0
      %v2622 = vadd.f32 %v2298, %v2621
      %v2623 = vpop.f32.mrb[0].mxu0
      %v2624 = vpop.f32.mrb[0].mxu0
      %v2625 = vadd.f32 %v2298, %v2624
      %v2626 = vpop.f32.mrb[0].mxu0
      %2627 = vmatprep.mubr.bf16.mxu0 0
      %2628 = vmatmul.mubr.bf16.gmra.mrb[0].mxu0 %v2353
      %v2629 = vpop.f32.mrb[0].mxu0
      %v2630 = vadd.f32 %v2298, %v2629
      %v2631 = vpop.f32.mrb[0].mxu0
      %v2632 = vpop.f32.mrb[0].mxu0
      %v2633 = vadd.f32 %v2298, %v2632
      %v2634 = vpop.f32.mrb[0].mxu0
      %2635 = vmatprep.mubr.bf16.mxu0 0
      %2636 = vmatmul.mubr.bf16.gmra.mrb[0].mxu0 %v2356
      %v2637 = vpop.f32.mrb[0].mxu0
      %v2638 = vadd.f32 %v2298, %v2637
      %v2639 = vpop.f32.mrb[0].mxu0
      %v2640 = vpop.f32.mrb[0].mxu0
      %v2641 = vadd.f32 %v2298, %v2640
      %v2642 = vpop.f32.mrb[0].mxu0
      %2643 = vmatprep.mubr.bf16.mxu0 0
      %2644 = vmatmul.mubr.bf16.gmra.mrb[0].mxu0 %v2359
      %v2645 = vpop.f32.mrb[0].mxu0
      %v2646 = vadd.f32 %v2298, %v2645
      %v2647 = vpop.f32.mrb[0].mxu0
      %v2648 = vpop.f32.mrb[0].mxu0
      %v2649 = vadd.f32 %v2298, %v2648
      %v2650 = vpop.f32.mrb[0].mxu0
      %2651 = vmatprep.mubr.bf16.mxu0 0
      %2652 = vmatmul.mubr.bf16.gmra.mrb[0].mxu0 %v2362
      %v2653 = vpop.f32.mrb[0].mxu0
      %v2654 = vadd.f32 %v2298, %v2653
      %v2655 = vpop.f32.mrb[0].mxu0
      %v2656 = vpop.f32.mrb[0].mxu0
      %v2657 = vadd.f32 %v2298, %v2656
      %v2658 = vpop.f32.mrb[0].mxu0
      %2659 = vmatprep.mubr.bf16.mxu0 0
      %2660 = vmatmul.mubr.bf16.gmra.mrb[0].mxu0 %v2365
      %v2661 = vpop.f32.mrb[0].mxu0
      %v2662 = vadd.f32 %v2298, %v2661
      %v2663 = vpop.f32.mrb[0].mxu0
      %v2664 = vpop.f32.mrb[0].mxu0
      %v2665 = vadd.f32 %v2298, %v2664
      %v2666 = vpop.f32.mrb[0].mxu0
      %2667 = vmatprep.mubr.bf16.mxu0 0
      %2668 = vmatmul.mubr.bf16.gmra.mrb[0].mxu0 %v2368
      %v2669 = vpop.f32.mrb[0].mxu0
      %v2670 = vadd.f32 %v2298, %v2669
      %v2671 = vpop.f32.mrb[0].mxu0
      %v2672 = vpop.f32.mrb[0].mxu0
      %v2673 = vadd.f32 %v2298, %v2672
      %v2674 = vpop.f32.mrb[0].mxu0
      %2675 = vmatprep.mubr.bf16.mxu0 0
      %2676 = vmatmul.mubr.bf16.gmra.mrb[0].mxu0 %v2371
      %v2677 = vpop.f32.mrb[0].mxu0
      %v2678 = vadd.f32 %v2298, %v2677
      %v2679 = vpop.f32.mrb[0].mxu0
      %v2680 = vpop.f32.mrb[0].mxu0
      %v2681 = vadd.f32 %v2298, %v2680
      %v2682 = vpop.f32.mrb[0].mxu0
      %2683 = vmatprep.mubr.bf16.mxu0 0
      %2684 = vmatmul.mubr.bf16.gmra.mrb[0].mxu0 %v2374
      %v2685 = vpop.f32.mrb[0].mxu0
      %v2686 = vadd.f32 %v2298, %v2685
      %v2687 = vpop.f32.mrb[0].mxu0
      %v2688 = vpop.f32.mrb[0].mxu0
      %v2689 = vadd.f32 %v2298, %v2688
      %v2690 = vpop.f32.mrb[0].mxu0
      %2691 = vmatprep.mubr.bf16.mxu0 0
      %2692 = vmatmul.mubr.bf16.gmra.mrb[0].mxu0 %v2377
      %v2693 = vpop.f32.mrb[0].mxu0
      %v2694 = vadd.f32 %v2298, %v2693
      %v2695 = vpop.f32.mrb[0].mxu0
      %v2696 = vpop.f32.mrb[0].mxu0
      %v2697 = vadd.f32 %v2298, %v2696
      %v2698 = vpop.f32.mrb[0].mxu0
      %2699 = vmatprep.mubr.bf16.mxu0 0
      %2700 = vmatmul.mubr.bf16.gmra.mrb[0].mxu0 %v2380
      %v2701 = vpop.f32.mrb[0].mxu0
      %v2702 = vadd.f32 %v2298, %v2701
      %v2703 = vpop.f32.mrb[0].mxu0
      %v2704 = vpop.f32.mrb[0].mxu0
      %v2705 = vadd.f32 %v2298, %v2704
      %v2706 = vpop.f32.mrb[0].mxu0
      %2707 = vmatprep.mubr.bf16.mxu0 0
      %2708 = vmatmul.mubr.bf16.gmra.mrb[0].mxu0 %v2383
      %v2709 = vpop.f32.mrb[0].mxu0
      %v2710 = vadd.f32 %v2298, %v2709
      %v2711 = vpop.f32.mrb[0].mxu0
      %v2712 = vpop.f32.mrb[0].mxu0
      %v2713 = vadd.f32 %v2298, %v2712
      %v2714 = vpop.f32.mrb[0].mxu0
      %2715 = vmatprep.mubr.bf16.mxu0 0
      %2716 = vmatmul.mubr.bf16.gmra.mrb[0].mxu0 %v2386
      %v2717 = vpop.f32.mrb[0].mxu0
      %v2718 = vadd.f32 %v2298, %v2717
      %v2719 = vpop.f32.mrb[0].mxu0
      %v2720 = vpop.f32.mrb[0].mxu0
      %v2721 = vadd.f32 %v2298, %v2720
      %v2722 = vpop.f32.mrb[0].mxu0
      %2723 = vmatprep.mubr.bf16.mxu0 0
      %2724 = vmatmul.mubr.bf16.gmra.mrb[0].mxu0 %v2389
      %v2725 = vpop.f32.mrb[0].mxu0
      %v2726 = vadd.f32 %v2298, %v2725
      %v2727 = vpop.f32.mrb[0].mxu0
      %v2728 = vpop.f32.mrb[0].mxu0
      %v2729 = vadd.f32 %v2298, %v2728
      %v2730 = vpop.f32.mrb[0].mxu0
      %2731 = vmatprep.mubr.bf16.mxu0 0
      %2732 = vmatmul.mubr.bf16.gmra.mrb[0].mxu0 %v2392
      %v2733 = vpop.f32.mrb[0].mxu0
      %v2734 = vadd.f32 %v2298, %v2733
      %v2735 = vpop.f32.mrb[0].mxu0
      %v2736 = vpop.f32.mrb[0].mxu0
      %v2737 = vadd.f32 %v2298, %v2736
      %v2738 = vpop.f32.mrb[0].mxu0
      %2739 = vmatprep.mubr.bf16.mxu0 0
      %2740 = vmatmul.mubr.bf16.gmra.mrb[0].mxu0 %v2395
      %v2741 = vpop.f32.mrb[0].mxu0
      %v2742 = vadd.f32 %v2298, %v2741
      %v2743 = vpop.f32.mrb[0].mxu0
      %v2744 = vpop.f32.mrb[0].mxu0
      %v2745 = vadd.f32 %v2298, %v2744
      %v2746 = vpop.f32.mrb[0].mxu0
      %2747 = vmatprep.mubr.bf16.mxu0 0
      %2748 = vmatmul.mubr.bf16.gmra.mrb[0].mxu0 %v2398
      %v2749 = vpop.f32.mrb[0].mxu0
      %v2750 = vadd.f32 %v2298, %v2749
      %v2751 = vpop.f32.mrb[0].mxu0
      %v2752 = vpop.f32.mrb[0].mxu0
      %v2753 = vadd.f32 %v2298, %v2752
      %v2754 = vpop.f32.mrb[0].mxu0
      %2755 = vmatprep.mubr.bf16.mxu0 0
      %2756 = vmatmul.mubr.bf16.gmra.mrb[0].mxu0 %v2401
      %v2757 = vpop.f32.mrb[0].mxu0
      %v2758 = vadd.f32 %v2298, %v2757
      %v2759 = vpop.f32.mrb[0].mxu0
      %v2760 = vpop.f32.mrb[0].mxu0
      %v2761 = vadd.f32 %v2298, %v2760
      %v2762 = vpop.f32.mrb[0].mxu0
      %2763 = vmatprep.mubr.bf16.mxu0 0
      %2764 = vmatmul.mubr.bf16.gmra.mrb[0].mxu0 %v2404
      %v2765 = vpop.f32.mrb[0].mxu0
      %v2766 = vadd.f32 %v2298, %v2765
      %v2767 = vpop.f32.mrb[0].mxu0
      %v2768 = vpop.f32.mrb[0].mxu0
      %v2769 = vadd.f32 %v2298, %v2768
      %v2770 = vpop.f32.mrb[0].mxu0
      %2771 = vmatprep.mubr.bf16.mxu0 0
      %2772 = vmatmul.mubr.bf16.gmra.mrb[0].mxu0 %v2407
      %v2773 = vpop.f32.mrb[0].mxu0
      %v2774 = vadd.f32 %v2298, %v2773
      %v2775 = vpop.f32.mrb[0].mxu0
      %v2776 = vpop.f32.mrb[0].mxu0
      %v2777 = vadd.f32 %v2298, %v2776
      %v2778 = vpop.f32.mrb[0].mxu0
      %2779 = vmatprep.mubr.bf16.mxu0 0
      %2780 = vmatmul.mubr.bf16.gmra.mrb[0].mxu0 %v2410
      %v2781 = vpop.f32.mrb[0].mxu0
      %v2782 = vadd.f32 %v2298, %v2781
      %v2783 = vpop.f32.mrb[0].mxu0
      %v2784 = vpop.f32.mrb[0].mxu0
      %v2785 = vadd.f32 %v2298, %v2784
      %v2786 = vpop.f32.mrb[0].mxu0
      %2787 = vmatprep.mubr.bf16.mxu0 0
      %2788 = vmatmul.mubr.bf16.gmra.mrb[0].mxu0 %v2413
      %v2789 = vpop.f32.mrb[0].mxu0
      %v2790 = vadd.f32 %v2298, %v2789
      %v2791 = vpop.f32.mrb[0].mxu0
      %v2792 = vpop.f32.mrb[0].mxu0
      %v2793 = vadd.f32 %v2298, %v2792
      %v2794 = vpop.f32.mrb[0].mxu0
      %2795 = vmatprep.mubr.bf16.mxu0 0
      %2796 = vmatmul.mubr.bf16.gmra.mrb[0].mxu0 %v2416
      %v2797 = vpop.f32.mrb[0].mxu0
      %v2798 = vadd.f32 %v2298, %v2797
      %v2799 = vpop.f32.mrb[0].mxu0
      %v2800 = vpop.f32.mrb[0].mxu0
      %v2801 = vadd.f32 %v2298, %v2800
      %v2802 = vpop.f32.mrb[0].mxu0
      %2803 = vmatprep.mubr.bf16.mxu0 0
      %2804 = vmatmul.mubr.bf16.gmra.mrb[0].mxu0 %v2419
      %v2805 = vpop.f32.mrb[0].mxu0
      %v2806 = vadd.f32 %v2298, %v2805
      %v2807 = vpop.f32.mrb[0].mxu0
      %v2808 = vpop.f32.mrb[0].mxu0
      %v2809 = vadd.f32 %v2298, %v2808
      %v2810 = vpop.f32.mrb[0].mxu0
      %2811 = vmatprep.mubr.bf16.mxu0 0
      %2812 = vmatmul.mubr.bf16.gmra.mrb[0].mxu0 %v2422
      %v2813 = vpop.f32.mrb[0].mxu0
      %v2814 = vadd.f32 %v2298, %v2813
      %v2815 = vpop.f32.mrb[0].mxu0
      %v2816 = vpop.f32.mrb[0].mxu0
      %v2817 = vadd.f32 %v2298, %v2816
      %v2818 = vpop.f32.mrb[0].mxu0
      %2819 = vmatprep.mubr.bf16.mxu0 0
      %2820 = vmatmul.mubr.bf16.gmra.mrb[0].mxu0 %v2425
      %v2821 = vpop.f32.mrb[0].mxu0
      %v2822 = vadd.f32 %v2298, %v2821
      %v2823 = vpop.f32.mrb[0].mxu0
      %v2824 = vpop.f32.mrb[0].mxu0
      %v2825 = vadd.f32 %v2298, %v2824
      %v2826 = vpop.f32.mrb[0].mxu0
      %2827 = vmatprep.mubr.bf16.mxu0 0
      %2828 = vmatmul.mubr.bf16.gmra.mrb[0].mxu0 %v2428
      %v2829 = vpop.f32.mrb[0].mxu0
      %v2830 = vadd.f32 %v2298, %v2829
      %v2831 = vpop.f32.mrb[0].mxu0
      %v2832 = vpop.f32.mrb[0].mxu0
      %v2833 = vadd.f32 %v2298, %v2832
      %v2834 = vpop.f32.mrb[0].mxu0
      %2835 = vmatprep.mubr.bf16.mxu0 0
      %2836 = vmatmul.mubr.bf16.gmra.mrb[0].mxu0 %v2431
      %v2837 = vpop.f32.mrb[0].mxu0
      %v2838 = vadd.f32 %v2298, %v2837
      %v2839 = vpop.f32.mrb[0].mxu0
      %v2840 = vpop.f32.mrb[0].mxu0
      %v2841 = vadd.f32 %v2298, %v2840
      %v2842 = vpop.f32.mrb[0].mxu0
      %2843 = vmatprep.mubr.bf16.mxu0 0
      %2844 = vmatmul.mubr.bf16.gmra.mrb[0].mxu0 %v2434
      %v2845 = vpop.f32.mrb[0].mxu0
      %v2846 = vadd.f32 %v2298, %v2845
      %v2847 = vpop.f32.mrb[0].mxu0
      %v2848 = vpop.f32.mrb[0].mxu0
      %v2849 = vadd.f32 %v2298, %v2848
      %v2850 = vpop.f32.mrb[0].mxu0
      %2851 = vmatprep.mubr.bf16.mxu0 0
      %2852 = vmatmul.mubr.bf16.gmra.mrb[0].mxu0 %v2437
      %v2853 = vpop.f32.mrb[0].mxu0
      %v2854 = vadd.f32 %v2298, %v2853
      %v2855 = vpop.f32.mrb[0].mxu0
      %v2856 = vpop.f32.mrb[0].mxu0
      %v2857 = vadd.f32 %v2298, %v2856
      %v2858 = vpop.f32.mrb[0].mxu0
      %2859 = vmatprep.mubr.bf16.mxu0 0
      %2860 = vmatmul.mubr.bf16.gmra.mrb[0].mxu0 %v2440
      %v2861 = vpop.f32.mrb[0].mxu0
      %v2862 = vadd.f32 %v2298, %v2861
      %v2863 = vpop.f32.mrb[0].mxu0
      %v2864 = vpop.f32.mrb[0].mxu0
      %v2865 = vadd.f32 %v2298, %v2864
      %v2866 = vpop.f32.mrb[0].mxu0
      %2867 = vmatprep.mubr.bf16.mxu0 0
      %2868 = vmatmul.mubr.bf16.gmra.mrb[0].mxu0 %v2443
      %v2869 = vpop.f32.mrb[0].mxu0
      %v2870 = vadd.f32 %v2298, %v2869
      %v2871 = vpop.f32.mrb[0].mxu0
      %v2872 = vpop.f32.mrb[0].mxu0
      %v2873 = vadd.f32 %v2298, %v2872
      %v2874 = vpop.f32.mrb[0].mxu0
      %2875 = vmatprep.mubr.bf16.mxu0 0
      %2876 = vmatmul.mubr.bf16.gmra.mrb[0].mxu0 %v2446
      %v2877 = vpop.f32.mrb[0].mxu0
      %v2878 = vadd.f32 %v2298, %v2877
      %v2879 = vpop.f32.mrb[0].mxu0
      %v2880 = vpop.f32.mrb[0].mxu0
      %v2881 = vadd.f32 %v2298, %v2880
      %v2882 = vpop.f32.mrb[0].mxu0
      %2883 = vmatprep.mubr.bf16.mxu0 0
      %2884 = vmatmul.mubr.bf16.gmra.mrb[0].mxu0 %v2449
      %v2885 = vpop.f32.mrb[0].mxu0
      %v2886 = vadd.f32 %v2298, %v2885
      %v2887 = vpop.f32.mrb[0].mxu0
      %v2888 = vpop.f32.mrb[0].mxu0
      %v2889 = vadd.f32 %v2298, %v2888
      %v2890 = vpop.f32.mrb[0].mxu0
      %2891 = vmatprep.mubr.bf16.mxu0 0
      %2892 = vmatmul.mubr.bf16.gmra.mrb[0].mxu0 %v2452
      %v2893 = vpop.f32.mrb[0].mxu0
      %v2894 = vadd.f32 %v2298, %v2893
      %v2895 = vpop.f32.mrb[0].mxu0
      %v2896 = vpop.f32.mrb[0].mxu0
      %v2897 = vadd.f32 %v2298, %v2896
      %v2898 = vpop.f32.mrb[0].mxu0
      %2899 = vmatprep.mubr.bf16.mxu0 0
      %2900 = vmatmul.mubr.bf16.gmra.mrb[0].mxu0 %v2455
      %v2901 = vpop.f32.mrb[0].mxu0
      %v2902 = vadd.f32 %v2298, %v2901
      %v2903 = vpop.f32.mrb[0].mxu0
      %v2904 = vpop.f32.mrb[0].mxu0
      %v2905 = vadd.f32 %v2298, %v2904
      %v2906 = vpop.f32.mrb[0].mxu0
      %2907 = vmatprep.mubr.bf16.mxu0 0
      %2908 = vmatmul.mubr.bf16.gmra.mrb[0].mxu0 %v2458
      %v2909 = vpop.f32.mrb[0].mxu0
      %v2910 = vadd.f32 %v2298, %v2909
      %v2911 = vpop.f32.mrb[0].mxu0
      %v2912 = vpop.f32.mrb[0].mxu0
      %v2913 = vadd.f32 %v2298, %v2912
      %v2914 = vpop.f32.mrb[0].mxu0
      %2915 = vmatprep.mubr.bf16.mxu0 0
      %2916 = vmatmul.mubr.bf16.gmra.mrb[0].mxu0 %v2461
      %v2917 = vpop.f32.mrb[0].mxu0
      %v2918 = vadd.f32 %v2298, %v2917
      %v2919 = vpop.f32.mrb[0].mxu0
      %v2920 = vpop.f32.mrb[0].mxu0
      %v2921 = vadd.f32 %v2298, %v2920
      %v2922 = vpop.f32.mrb[0].mxu0
      %2923 = vmatprep.mubr.bf16.mxu0 0
      %2924 = vmatmul.mubr.bf16.gmra.mrb[0].mxu0 %v2464
      %v2925 = vpop.f32.mrb[0].mxu0
      %v2926 = vadd.f32 %v2298, %v2925
      %v2927 = vpop.f32.mrb[0].mxu0
      %v2928 = vpop.f32.mrb[0].mxu0
      %v2929 = vadd.f32 %v2298, %v2928
      %v2930 = vpop.f32.mrb[0].mxu0
      %2931 = vmatprep.mubr.bf16.mxu0 0
      %2932 = vmatmul.mubr.bf16.gmra.mrb[0].mxu0 %v2467
      %v2933 = vpop.f32.mrb[0].mxu0
      %v2934 = vadd.f32 %v2298, %v2933
      %v2935 = vpop.f32.mrb[0].mxu0
      %v2936 = vpop.f32.mrb[0].mxu0
      %v2937 = vadd.f32 %v2298, %v2936
      %v2938 = vpop.f32.mrb[0].mxu0
      %2939 = vmatprep.mubr.bf16.mxu0 0
      %2940 = vmatmul.mubr.bf16.gmra.mrb[0].mxu0 %v2470
      %v2941 = vpop.f32.mrb[0].mxu0
      %v2942 = vadd.f32 %v2298, %v2941
      %v2943 = vpop.f32.mrb[0].mxu0
      %v2944 = vpop.f32.mrb[0].mxu0
      %v2945 = vadd.f32 %v2298, %v2944
      %v2946 = vpop.f32.mrb[0].mxu0
      %2947 = vmatprep.mubr.bf16.mxu0 0
      %2948 = vmatmul.mubr.bf16.gmra.mrb[0].mxu0 %v2473
      %v2949 = vpop.f32.mrb[0].mxu0
      %v2950 = vadd.f32 %v2298, %v2949
      %v2951 = vpop.f32.mrb[0].mxu0
      %v2952 = vpop.f32.mrb[0].mxu0
      %v2953 = vadd.f32 %v2298, %v2952
      %v2954 = vpop.f32.mrb[0].mxu0
      %2955 = vdwg.mxu0
      %v2956 = vmax.f32 %v2510, 0.0
      %v2957 = vmax.f32 %v2513, 0.0
      %v2958 = vmax.f32 %v2518, 0.0
      %v2959 = vmax.f32 %v2521, 0.0
      %v2960 = vmax.f32 %v2526, 0.0
      %v2961 = vmax.f32 %v2529, 0.0
      %v2962 = vmax.f32 %v2534, 0.0
      %v2963 = vmax.f32 %v2537, 0.0
      %v2964 = vmax.f32 %v2542, 0.0
      %v2965 = vmax.f32 %v2545, 0.0
      %v2966 = vmax.f32 %v2550, 0.0
      %v2967 = vmax.f32 %v2553, 0.0
      %v2968 = vmax.f32 %v2558, 0.0
      %v2969 = vmax.f32 %v2561, 0.0
      %v2970 = vmax.f32 %v2566, 0.0
      %v2971 = vmax.f32 %v2569, 0.0
      %v2972 = vmax.f32 %v2574, 0.0
      %v2973 = vmax.f32 %v2577, 0.0
      %v2974 = vmax.f32 %v2582, 0.0
      %v2975 = vmax.f32 %v2585, 0.0
      %v2976 = vmax.f32 %v2590, 0.0
      %v2977 = vmax.f32 %v2593, 0.0
      %v2978 = vmax.f32 %v2598, 0.0
      %v2979 = vmax.f32 %v2601, 0.0
      %v2980 = vmax.f32 %v2606, 0.0
      %v2981 = vmax.f32 %v2609, 0.0
      %v2982 = vmax.f32 %v2614, 0.0
      %v2983 = vmax.f32 %v2617, 0.0
      %v2984 = vmax.f32 %v2622, 0.0
      %v2985 = vmax.f32 %v2625, 0.0
      %v2986 = vmax.f32 %v2630, 0.0
      %v2987 = vmax.f32 %v2633, 0.0
      %v2988 = vmax.f32 %v2638, 0.0
      %v2989 = vmax.f32 %v2641, 0.0
      %v2990 = vmax.f32 %v2646, 0.0
      %v2991 = vmax.f32 %v2649, 0.0
      %v2992 = vmax.f32 %v2654, 0.0
      %v2993 = vmax.f32 %v2657, 0.0
      %v2994 = vmax.f32 %v2662, 0.0
      %v2995 = vmax.f32 %v2665, 0.0
      %v2996 = vmax.f32 %v2670, 0.0
      %v2997 = vmax.f32 %v2673, 0.0
      %v2998 = vmax.f32 %v2678, 0.0
      %v2999 = vmax.f32 %v2681, 0.0
      %v3000 = vmax.f32 %v2686, 0.0
      %v3001 = vmax.f32 %v2689, 0.0
      %v3002 = vmax.f32 %v2694, 0.0
      %v3003 = vmax.f32 %v2697, 0.0
      %v3004 = vmax.f32 %v2702, 0.0
      %v3005 = vmax.f32 %v2705, 0.0
      %v3006 = vmax.f32 %v2710, 0.0
      %v3007 = vmax.f32 %v2713, 0.0
      %v3008 = vmax.f32 %v2718, 0.0
      %v3009 = vmax.f32 %v2721, 0.0
      %v3010 = vmax.f32 %v2726, 0.0
      %v3011 = vmax.f32 %v2729, 0.0
      %v3012 = vmax.f32 %v2734, 0.0
      %v3013 = vmax.f32 %v2737, 0.0
      %v3014 = vmax.f32 %v2742, 0.0
      %v3015 = vmax.f32 %v2745, 0.0
      %v3016 = vmax.f32 %v2750, 0.0
      %v3017 = vmax.f32 %v2753, 0.0
      %v3018 = vmax.f32 %v2758, 0.0
      %v3019 = vmax.f32 %v2761, 0.0
      %v3020 = vmax.f32 %v2766, 0.0
      %v3021 = vmax.f32 %v2769, 0.0
      %v3022 = vmax.f32 %v2774, 0.0
      %v3023 = vmax.f32 %v2777, 0.0
      %v3024 = vmax.f32 %v2782, 0.0
      %v3025 = vmax.f32 %v2785, 0.0
      %v3026 = vmax.f32 %v2790, 0.0
      %v3027 = vmax.f32 %v2793, 0.0
      %v3028 = vmax.f32 %v2798, 0.0
      %v3029 = vmax.f32 %v2801, 0.0
      %v3030 = vmax.f32 %v2806, 0.0
      %v3031 = vmax.f32 %v2809, 0.0
      %v3032 = vmax.f32 %v2814, 0.0
      %v3033 = vmax.f32 %v2817, 0.0
      %v3034 = vmax.f32 %v2822, 0.0
      %v3035 = vmax.f32 %v2825, 0.0
      %v3036 = vmax.f32 %v2830, 0.0
      %v3037 = vmax.f32 %v2833, 0.0
      %v3038 = vmax.f32 %v2838, 0.0
      %v3039 = vmax.f32 %v2841, 0.0
      %v3040 = vmax.f32 %v2846, 0.0
      %v3041 = vmax.f32 %v2849, 0.0
      %v3042 = vmax.f32 %v2854, 0.0
      %v3043 = vmax.f32 %v2857, 0.0
      %v3044 = vmax.f32 %v2862, 0.0
      %v3045 = vmax.f32 %v2865, 0.0
      %v3046 = vmax.f32 %v2870, 0.0
      %v3047 = vmax.f32 %v2873, 0.0
      %v3048 = vmax.f32 %v2878, 0.0
      %v3049 = vmax.f32 %v2881, 0.0
      %v3050 = vmax.f32 %v2886, 0.0
      %v3051 = vmax.f32 %v2889, 0.0
      %v3052 = vmax.f32 %v2894, 0.0
      %v3053 = vmax.f32 %v2897, 0.0
      %v3054 = vmax.f32 %v2902, 0.0
      %v3055 = vmax.f32 %v2905, 0.0
      %v3056 = vmax.f32 %v2910, 0.0
      %v3057 = vmax.f32 %v2913, 0.0
      %v3058 = vmax.f32 %v2918, 0.0
      %v3059 = vmax.f32 %v2921, 0.0
      %v3060 = vmax.f32 %v2926, 0.0
      %v3061 = vmax.f32 %v2929, 0.0
      %v3062 = vmax.f32 %v2934, 0.0
      %v3063 = vmax.f32 %v2937, 0.0
      %v3064 = vmax.f32 %v2942, 0.0
      %v3065 = vmax.f32 %v2945, 0.0
      %v3066 = vmax.f32 %v2950, 0.0
      %v3067 = vmax.f32 %v2953, 0.0
      %v3068 = vadd.f32 %v2956, %v2972
      %v3069 = vadd.f32 %v2957, %v2973
      %v3070 = vadd.f32 %v2958, %v2974
      %v3071 = vadd.f32 %v2959, %v2975
      %v3072 = vadd.f32 %v2960, %v2976
      %v3073 = vadd.f32 %v2961, %v2977
      %v3074 = vadd.f32 %v2962, %v2978
      %v3075 = vadd.f32 %v2963, %v2979
      %v3076 = vadd.f32 %v2964, %v2980
      %v3077 = vadd.f32 %v2965, %v2981
      %v3078 = vadd.f32 %v2966, %v2982
      %v3079 = vadd.f32 %v2967, %v2983
      %v3080 = vadd.f32 %v2968, %v2984
      %v3081 = vadd.f32 %v2969, %v2985
      %v3082 = vadd.f32 %v2970, %v2986
      %v3083 = vadd.f32 %v2971, %v2987
      %v3084 = vadd.f32 %v3068, %v2988
      %v3085 = vadd.f32 %v3069, %v2989
      %v3086 = vadd.f32 %v3070, %v2990
      %v3087 = vadd.f32 %v3071, %v2991
      %v3088 = vadd.f32 %v3072, %v2992
      %v3089 = vadd.f32 %v3073, %v2993
      %v3090 = vadd.f32 %v3074, %v2994
      %v3091 = vadd.f32 %v3075, %v2995
      %v3092 = vadd.f32 %v3076, %v2996
      %v3093 = vadd.f32 %v3077, %v2997
      %v3094 = vadd.f32 %v3078, %v2998
      %v3095 = vadd.f32 %v3079, %v2999
      %v3096 = vadd.f32 %v3080, %v3000
      %v3097 = vadd.f32 %v3081, %v3001
      %v3098 = vadd.f32 %v3082, %v3002
      %v3099 = vadd.f32 %v3083, %v3003
      %v3100 = vadd.f32 %v3084, %v3004
      %v3101 = vadd.f32 %v3085, %v3005
      %v3102 = vadd.f32 %v3086, %v3006
      %v3103 = vadd.f32 %v3087, %v3007
      %v3104 = vadd.f32 %v3088, %v3008
      %v3105 = vadd.f32 %v3089, %v3009
      %v3106 = vadd.f32 %v3090, %v3010
      %v3107 = vadd.f32 %v3091, %v3011
      %v3108 = vadd.f32 %v3092, %v3012
      %v3109 = vadd.f32 %v3093, %v3013
      %v3110 = vadd.f32 %v3094, %v3014
      %v3111 = vadd.f32 %v3095, %v3015
      %v3112 = vadd.f32 %v3096, %v3016
      %v3113 = vadd.f32 %v3097, %v3017
      %v3114 = vadd.f32 %v3098, %v3018
      %v3115 = vadd.f32 %v3099, %v3019
      %v3116 = vadd.f32 %v3100, %v3020
      %v3117 = vadd.f32 %v3101, %v3021
      %v3118 = vadd.f32 %v3102, %v3022
      %v3119 = vadd.f32 %v3103, %v3023
      %v3120 = vadd.f32 %v3104, %v3024
      %v3121 = vadd.f32 %v3105, %v3025
      %v3122 = vadd.f32 %v3106, %v3026
      %v3123 = vadd.f32 %v3107, %v3027
      %v3124 = vadd.f32 %v3108, %v3028
      %v3125 = vadd.f32 %v3109, %v3029
      %v3126 = vadd.f32 %v3110, %v3030
      %v3127 = vadd.f32 %v3111, %v3031
      %v3128 = vadd.f32 %v3112, %v3032
      %v3129 = vadd.f32 %v3113, %v3033
      %v3130 = vadd.f32 %v3114, %v3034
      %v3131 = vadd.f32 %v3115, %v3035
      %v3132 = vadd.f32 %v3116, %v3036
      %v3133 = vadd.f32 %v3117, %v3037
      %v3134 = vadd.f32 %v3118, %v3038
      %v3135 = vadd.f32 %v3119, %v3039
      %v3136 = vadd.f32 %v3120, %v3040
      %v3137 = vadd.f32 %v3121, %v3041
      %v3138 = vadd.f32 %v3122, %v3042
      %v3139 = vadd.f32 %v3123, %v3043
      %v3140 = vadd.f32 %v3124, %v3044
      %v3141 = vadd.f32 %v3125, %v3045
      %v3142 = vadd.f32 %v3126, %v3046
      %v3143 = vadd.f32 %v3127, %v3047
      %v3144 = vadd.f32 %v3128, %v3048
      %v3145 = vadd.f32 %v3129, %v3049
      %v3146 = vadd.f32 %v3130, %v3050
      %v3147 = vadd.f32 %v3131, %v3051
      %v3148 = vadd.f32 %v3132, %v3052
      %v3149 = vadd.f32 %v3133, %v3053
      %v3150 = vadd.f32 %v3134, %v3054
      %v3151 = vadd.f32 %v3135, %v3055
      %v3152 = vadd.f32 %v3136, %v3056
      %v3153 = vadd.f32 %v3137, %v3057
      %v3154 = vadd.f32 %v3138, %v3058
      %v3155 = vadd.f32 %v3139, %v3059
      %v3156 = vadd.f32 %v3140, %v3060
      %v3157 = vadd.f32 %v3141, %v3061
      %v3158 = vadd.f32 %v3142, %v3062
      %v3159 = vadd.f32 %v3143, %v3063
      %v3160 = vadd.f32 %v3144, %v3064
      %v3161 = vadd.f32 %v3145, %v3065
      %v3162 = vadd.f32 %v3146, %v3066
      %v3163 = vadd.f32 %v3147, %v3067
      %v3164 = vld [vmem:[%s215] sm:$0xf]
      %v3165 = vld [vmem:[%s215 + $0x4] sm:$0xf]
      %v3166 = vld [vmem:[%s215 + $0x8] sm:$0xf]
      %v3167 = vld [vmem:[%s215 + $0xc] sm:$0xf]
      %v3168 = vld [vmem:[%s215 + $0x10] sm:$0xf]
      %v3169 = vld [vmem:[%s215 + $0x14] sm:$0xf]
      %v3170 = vld [vmem:[%s215 + $0x18] sm:$0xf]
      %v3171 = vld [vmem:[%s215 + $0x1c] sm:$0xf]
      %v3172 = vld [vmem:[%s215 + $0x20] sm:$0xf]
      %v3173 = vld [vmem:[%s215 + $0x24] sm:$0xf]
      %v3174 = vld [vmem:[%s215 + $0x28] sm:$0xf]
      %v3175 = vld [vmem:[%s215 + $0x2c] sm:$0xf]
      %v3176 = vld [vmem:[%s215 + $0x30] sm:$0xf]
      %v3177 = vld [vmem:[%s215 + $0x34] sm:$0xf]
      %v3178 = vld [vmem:[%s215 + $0x38] sm:$0xf]
      %v3179 = vld [vmem:[%s215 + $0x3c] sm:$0xf]
      %v3180 = vpack.c.bf16 %v3149, %v3148
      %v3181 = vpack.c.bf16 %v3151, %v3150
      %v3182 = vpack.c.bf16 %v3153, %v3152
      %v3183 = vpack.c.bf16 %v3155, %v3154
      %v3184 = vpack.c.bf16 %v3157, %v3156
      %v3185 = vpack.c.bf16 %v3159, %v3158
      %v3186 = vpack.c.bf16 %v3161, %v3160
      %v3187 = vpack.c.bf16 %v3163, %v3162
      %v3204 = vunpack.c.l.b16 %v3164
      %v3205 = vunpack.c.l.b16 %v3165
      %v3206 = vunpack.c.l.b16 %v3166
      %v3207 = vunpack.c.l.b16 %v3167
      %v3208 = vunpack.c.l.b16 %v3168
      %v3209 = vunpack.c.l.b16 %v3169
      %v3210 = vunpack.c.l.b16 %v3170
      %v3211 = vunpack.c.l.b16 %v3171
      %v3212 = vunpack.c.l.b16 %v3172
      %v3213 = vunpack.c.l.b16 %v3173
      %v3214 = vunpack.c.l.b16 %v3174
      %v3215 = vunpack.c.l.b16 %v3175
      %v3216 = vunpack.c.l.b16 %v3176
      %v3217 = vunpack.c.l.b16 %v3177
      %v3218 = vunpack.c.l.b16 %v3178
      %v3219 = vunpack.c.l.b16 %v3179
      %v3220 = vpack.c.b16 %v3205, %v3204
      %v3221 = vpack.c.b16 %v3207, %v3206
      %v3222 = vpack.c.b16 %v3209, %v3208
      %v3223 = vpack.c.b16 %v3211, %v3210
      %v3224 = vpack.c.b16 %v3213, %v3212
      %v3225 = vpack.c.b16 %v3215, %v3214
      %v3226 = vpack.c.b16 %v3217, %v3216
      %v3227 = vpack.c.b16 %v3219, %v3218
      %3236 = vrot.lane.b32.xlu0 %v3180, 4
      %v3237 = vpop.permute.xlu0 %3236
      %3238 = vrot.lane.b32.xlu0 %v3181, 4
      %v3239 = vpop.permute.xlu0 %3238
      %3240 = vrot.lane.b32.xlu0 %v3182, 4
      %v3241 = vpop.permute.xlu0 %3240
      %3242 = vrot.lane.b32.xlu0 %v3183, 4
      %v3243 = vpop.permute.xlu0 %3242
      %3244 = vrot.lane.b32.xlu0 %v3184, 4
      %v3245 = vpop.permute.xlu0 %3244
      %3246 = vrot.lane.b32.xlu0 %v3185, 4
      %v3247 = vpop.permute.xlu0 %3246
      %3248 = vrot.lane.b32.xlu0 %v3186, 4
      %v3249 = vpop.permute.xlu0 %3248
      %3250 = vrot.lane.b32.xlu0 %v3187, 4
      %v3251 = vpop.permute.xlu0 %3250
      %vm3252 = vcmask 31744
      %v3255 = vsel %vm3252, %v3220, %v3237
      %v3258 = vsel %vm3252, %v3221, %v3239
      %v3261 = vsel %vm3252, %v3222, %v3241
      %v3264 = vsel %vm3252, %v3223, %v3243
      %v3267 = vsel %vm3252, %v3224, %v3245
      %v3270 = vsel %vm3252, %v3225, %v3247
      %v3273 = vsel %vm3252, %v3226, %v3249
      %v3276 = vsel %vm3252, %v3227, %v3251
      %s3277 = scalar_lea.vmem %s2, 72
      %v3278 = vld [vmem:[%s3277] sm:$0xf]
      %v3279 = vld [vmem:[%s3277 + $0x4] sm:$0xf]
      %s3280 = scalar_lea.vmem %s3, 3
      %v3281 = vld [vmem:[%s3280] sm:$0x1]
      %v3283 = vlaneseq
      %v3284 = vshrl.u32 %v3283, 7
      %v3285 = vsub.s32 0, %v3284
      %v3286 = vrot.slane %v3281, %v3285
      %v3290 = vunpack.c.l.b16 %v3278
      %v3291 = vunpack.c.l.b16 %v3279
      %v3292 = vpack.c.b16 %v3291, %v3290
      %vm3293 = vcmask 72704
      %v3294 = vsel %vm3293, %v3255, 0
      %v3296 = vsel %vm3293, %v3258, 0
      %v3298 = vsel %vm3293, %v3261, 0
      %v3300 = vsel %vm3293, %v3264, 0
      %v3302 = vsel %vm3293, %v3267, 0
      %v3304 = vsel %vm3293, %v3270, 0
      %v3306 = vsel %vm3293, %v3273, 0
      %v3308 = vsel %vm3293, %v3276, 0
      %vm3310 = vcmask 1044480
      %v3311 = vsel %vm793, 4294967295, 65535
      %v3312 = vsel %vm3310, %v3311, 0
      %v3314 = vand.u32 %v3292, %v3312
      %3316 = vmatprep.subr.bf16.mxu0 0
      %3317 = vmatpush1.bf16.msra.mxu0 %v3314
      %3318 = vmatprep.subr.bf16.mxu0 0
      %3319 = vmatpush1.bf16.msra.mxu0 0
      %3320 = vmatprep.subr.bf16.mxu0 0
      %3321 = vmatpush1.bf16.msra.mxu0 0
      %3322 = vmatprep.subr.bf16.mxu0 0
      %3323 = vmatpush1.bf16.msra.mxu0 0
      %3324 = vmatprep.subr.bf16.mxu0 0
      %3325 = vmatpush1.bf16.msra.mxu0 0
      %3326 = vmatprep.subr.bf16.mxu0 0
      %3327 = vmatpush1.bf16.msra.mxu0 0
      %3328 = vmatprep.subr.bf16.mxu0 0
      %3329 = vmatpush1.bf16.msra.mxu0 0
      %3330 = vmatprep.subr.bf16.mxu0 0
      %3331 = vmatpush1.bf16.msra.mxu0 0
      %3332 = vmatprep.subr.bf16.mxu0 0
      %3333 = vmatpush1.bf16.msra.mxu0 0
      %3334 = vmatprep.subr.bf16.mxu0 0
      %3335 = vmatpush1.bf16.msra.mxu0 0
      %3336 = vmatprep.subr.bf16.mxu0 0
      %3337 = vmatpush1.bf16.msra.mxu0 0
      %3338 = vmatprep.subr.bf16.mxu0 0
      %3339 = vmatpush1.bf16.msra.mxu0 0
      %3340 = vmatprep.subr.bf16.mxu0 0
      %3341 = vmatpush1.bf16.msra.mxu0 0
      %3342 = vmatprep.subr.bf16.mxu0 0
      %3343 = vmatpush1.bf16.msra.mxu0 0
      %3344 = vmatprep.subr.bf16.mxu0 0
      %3345 = vmatpush1.bf16.msra.mxu0 0
      %3346 = vmatprep.subr.bf16.mxu0 0
      %3347 = vmatpush1.bf16.msra.mxu0 0
      %3348 = vmatprep.mubr.bf16.mxu0 0
      %3349 = vmatmul.mubr.bf16.gmra.mrb[0].mxu0 %v3294
      %v3350 = vpop.f32.mrb[0].mxu0
      %v3351 = vadd.f32 %v3286, %v3350
      %v3352 = vpop.f32.mrb[0].mxu0
      %v3353 = vpop.f32.mrb[0].mxu0
      %v3354 = vadd.f32 %v3286, %v3353
      %v3355 = vpop.f32.mrb[0].mxu0
      %3356 = vmatprep.mubr.bf16.mxu0 0
      %3357 = vmatmul.mubr.bf16.gmra.mrb[0].mxu0 %v3296
      %v3358 = vpop.f32.mrb[0].mxu0
      %v3359 = vadd.f32 %v3286, %v3358
      %v3360 = vpop.f32.mrb[0].mxu0
      %v3361 = vpop.f32.mrb[0].mxu0
      %v3362 = vadd.f32 %v3286, %v3361
      %v3363 = vpop.f32.mrb[0].mxu0
      %3364 = vmatprep.mubr.bf16.mxu0 0
      %3365 = vmatmul.mubr.bf16.gmra.mrb[0].mxu0 %v3298
      %v3366 = vpop.f32.mrb[0].mxu0
      %v3367 = vadd.f32 %v3286, %v3366
      %v3368 = vpop.f32.mrb[0].mxu0
      %v3369 = vpop.f32.mrb[0].mxu0
      %v3370 = vadd.f32 %v3286, %v3369
      %v3371 = vpop.f32.mrb[0].mxu0
      %3372 = vmatprep.mubr.bf16.mxu0 0
      %3373 = vmatmul.mubr.bf16.gmra.mrb[0].mxu0 %v3300
      %v3374 = vpop.f32.mrb[0].mxu0
      %v3375 = vadd.f32 %v3286, %v3374
      %v3376 = vpop.f32.mrb[0].mxu0
      %v3377 = vpop.f32.mrb[0].mxu0
      %v3378 = vadd.f32 %v3286, %v3377
      %v3379 = vpop.f32.mrb[0].mxu0
      %3380 = vmatprep.mubr.bf16.mxu0 0
      %3381 = vmatmul.mubr.bf16.gmra.mrb[0].mxu0 %v3302
      %v3382 = vpop.f32.mrb[0].mxu0
      %v3383 = vadd.f32 %v3286, %v3382
      %v3384 = vpop.f32.mrb[0].mxu0
      %v3385 = vpop.f32.mrb[0].mxu0
      %v3386 = vadd.f32 %v3286, %v3385
      %v3387 = vpop.f32.mrb[0].mxu0
      %3388 = vmatprep.mubr.bf16.mxu0 0
      %3389 = vmatmul.mubr.bf16.gmra.mrb[0].mxu0 %v3304
      %v3390 = vpop.f32.mrb[0].mxu0
      %v3391 = vadd.f32 %v3286, %v3390
      %v3392 = vpop.f32.mrb[0].mxu0
      %v3393 = vpop.f32.mrb[0].mxu0
      %v3394 = vadd.f32 %v3286, %v3393
      %v3395 = vpop.f32.mrb[0].mxu0
      %3396 = vmatprep.mubr.bf16.mxu0 0
      %3397 = vmatmul.mubr.bf16.gmra.mrb[0].mxu0 %v3306
      %v3398 = vpop.f32.mrb[0].mxu0
      %v3399 = vadd.f32 %v3286, %v3398
      %v3400 = vpop.f32.mrb[0].mxu0
      %v3401 = vpop.f32.mrb[0].mxu0
      %v3402 = vadd.f32 %v3286, %v3401
      %v3403 = vpop.f32.mrb[0].mxu0
      %3404 = vmatprep.mubr.bf16.mxu0 0
      %3405 = vmatmul.mubr.bf16.gmra.mrb[0].mxu0 %v3308
      %v3406 = vpop.f32.mrb[0].mxu0
      %v3407 = vadd.f32 %v3286, %v3406
      %v3408 = vpop.f32.mrb[0].mxu0
      %v3409 = vpop.f32.mrb[0].mxu0
      %v3410 = vadd.f32 %v3286, %v3409
      %v3411 = vpop.f32.mrb[0].mxu0
      %3412 = vdwg.mxu0
      %v3413 = vmax.f32 %v3351, 0.0
      %v3414 = vmax.f32 %v3354, 0.0
      %v3415 = vmax.f32 %v3359, 0.0
      %v3416 = vmax.f32 %v3362, 0.0
      %v3417 = vmax.f32 %v3367, 0.0
      %v3418 = vmax.f32 %v3370, 0.0
      %v3419 = vmax.f32 %v3375, 0.0
      %v3420 = vmax.f32 %v3378, 0.0
      %v3421 = vmax.f32 %v3383, 0.0
      %v3422 = vmax.f32 %v3386, 0.0
      %v3423 = vmax.f32 %v3391, 0.0
      %v3424 = vmax.f32 %v3394, 0.0
      %v3425 = vmax.f32 %v3399, 0.0
      %v3426 = vmax.f32 %v3402, 0.0
      %v3427 = vmax.f32 %v3407, 0.0
      %v3428 = vmax.f32 %v3410, 0.0
      %v3429 = vpack.c.bf16 %v3414, %v3413
      %v3430 = vpack.c.bf16 %v3416, %v3415
      %v3431 = vpack.c.bf16 %v3418, %v3417
      %v3432 = vpack.c.bf16 %v3420, %v3419
      %v3433 = vpack.c.bf16 %v3422, %v3421
      %v3434 = vpack.c.bf16 %v3424, %v3423
      %v3435 = vpack.c.bf16 %v3426, %v3425
      %v3436 = vpack.c.bf16 %v3428, %v3427
      %s3437 = scalar_lea.vmem %s2, 96
      %v3438 = vld [vmem:[%s3437] sm:$0xf]
      %v3439 = vld [vmem:[%s3437 + $0x4] sm:$0xf]
      %v3440 = vld [vmem:[%s3437 + $0x8] sm:$0xf]
      %v3441 = vld [vmem:[%s3437 + $0xc] sm:$0xf]
      %s3442 = scalar_lea.vmem %s3, 4
      %v3443 = vld [vmem:[%s3442] sm:$0x1]
      %v3445 = vlaneseq
      %v3446 = vshrl.u32 %v3445, 7
      %v3447 = vsub.s32 0, %v3446
      %v3448 = vrot.slane %v3443, %v3447
      %v3454 = vunpack.c.l.b16 %v3438
      %v3455 = vunpack.c.l.b16 %v3439
      %v3456 = vunpack.c.l.b16 %v3440
      %v3457 = vunpack.c.l.b16 %v3441
      %v3458 = vpack.c.b16 %v3455, %v3454
      %v3459 = vpack.c.b16 %v3457, %v3456
      %v3463 = vsel %vm1471, %v3429, 0
      %v3466 = vsel %vm1471, %v3430, 0
      %v3469 = vsel %vm1471, %v3431, 0
      %v3472 = vsel %vm1471, %v3432, 0
      %v3475 = vsel %vm1471, %v3433, 0
      %v3478 = vsel %vm1471, %v3434, 0
      %v3481 = vsel %vm1471, %v3435, 0
      %v3484 = vsel %vm1471, %v3436, 0
      %3486 = vmatprep.subr.bf16.mxu0 0
      %3487 = vmatpush1.bf16.msra.mxu0 %v3458
      %3488 = vmatprep.subr.bf16.mxu0 0
      %3489 = vmatpush1.bf16.msra.mxu0 %v3459
      %3490 = vmatprep.subr.bf16.mxu0 0
      %3491 = vmatpush1.bf16.msra.mxu0 0
      %3492 = vmatprep.subr.bf16.mxu0 0
      %3493 = vmatpush1.bf16.msra.mxu0 0
      %3494 = vmatprep.subr.bf16.mxu0 0
      %3495 = vmatpush1.bf16.msra.mxu0 0
      %3496 = vmatprep.subr.bf16.mxu0 0
      %3497 = vmatpush1.bf16.msra.mxu0 0
      %3498 = vmatprep.subr.bf16.mxu0 0
      %3499 = vmatpush1.bf16.msra.mxu0 0
      %3500 = vmatprep.subr.bf16.mxu0 0
      %3501 = vmatpush1.bf16.msra.mxu0 0
      %3502 = vmatprep.subr.bf16.mxu0 0
      %3503 = vmatpush1.bf16.msra.mxu0 0
      %3504 = vmatprep.subr.bf16.mxu0 0
      %3505 = vmatpush1.bf16.msra.mxu0 0
      %3506 = vmatprep.subr.bf16.mxu0 0
      %3507 = vmatpush1.bf16.msra.mxu0 0
      %3508 = vmatprep.subr.bf16.mxu0 0
      %3509 = vmatpush1.bf16.msra.mxu0 0
      %3510 = vmatprep.subr.bf16.mxu0 0
      %3511 = vmatpush1.bf16.msra.mxu0 0
      %3512 = vmatprep.subr.bf16.mxu0 0
      %3513 = vmatpush1.bf16.msra.mxu0 0
      %3514 = vmatprep.subr.bf16.mxu0 0
      %3515 = vmatpush1.bf16.msra.mxu0 0
      %3516 = vmatprep.subr.bf16.mxu0 0
      %3517 = vmatpush1.bf16.msra.mxu0 0
      %3518 = vmatprep.mubr.bf16.mxu0 0
      %3519 = vmatmul.mubr.bf16.gmra.mrb[0].mxu0 %v3463
      %v3520 = vpop.f32.mrb[0].mxu0
      %v3521 = vadd.f32 %v3448, %v3520
      %v3522 = vpop.f32.mrb[0].mxu0
      %v3523 = vpop.f32.mrb[0].mxu0
      %v3524 = vadd.f32 %v3448, %v3523
      %v3525 = vpop.f32.mrb[0].mxu0
      %3526 = vmatprep.mubr.bf16.mxu0 0
      %3527 = vmatmul.mubr.bf16.gmra.mrb[0].mxu0 %v3466
      %v3528 = vpop.f32.mrb[0].mxu0
      %v3529 = vadd.f32 %v3448, %v3528
      %v3530 = vpop.f32.mrb[0].mxu0
      %v3531 = vpop.f32.mrb[0].mxu0
      %v3532 = vadd.f32 %v3448, %v3531
      %v3533 = vpop.f32.mrb[0].mxu0
      %3534 = vmatprep.mubr.bf16.mxu0 0
      %3535 = vmatmul.mubr.bf16.gmra.mrb[0].mxu0 %v3469
      %v3536 = vpop.f32.mrb[0].mxu0
      %v3537 = vadd.f32 %v3448, %v3536
      %v3538 = vpop.f32.mrb[0].mxu0
      %v3539 = vpop.f32.mrb[0].mxu0
      %v3540 = vadd.f32 %v3448, %v3539
      %v3541 = vpop.f32.mrb[0].mxu0
      %3542 = vmatprep.mubr.bf16.mxu0 0
      %3543 = vmatmul.mubr.bf16.gmra.mrb[0].mxu0 %v3472
      %v3544 = vpop.f32.mrb[0].mxu0
      %v3545 = vadd.f32 %v3448, %v3544
      %v3546 = vpop.f32.mrb[0].mxu0
      %v3547 = vpop.f32.mrb[0].mxu0
      %v3548 = vadd.f32 %v3448, %v3547
      %v3549 = vpop.f32.mrb[0].mxu0
      %3550 = vmatprep.mubr.bf16.mxu0 0
      %3551 = vmatmul.mubr.bf16.gmra.mrb[0].mxu0 %v3475
      %v3552 = vpop.f32.mrb[0].mxu0
      %v3553 = vadd.f32 %v3448, %v3552
      %v3554 = vpop.f32.mrb[0].mxu0
      %v3555 = vpop.f32.mrb[0].mxu0
      %v3556 = vadd.f32 %v3448, %v3555
      %v3557 = vpop.f32.mrb[0].mxu0
      %3558 = vmatprep.mubr.bf16.mxu0 0
      %3559 = vmatmul.mubr.bf16.gmra.mrb[0].mxu0 %v3478
      %v3560 = vpop.f32.mrb[0].mxu0
      %v3561 = vadd.f32 %v3448, %v3560
      %v3562 = vpop.f32.mrb[0].mxu0
      %v3563 = vpop.f32.mrb[0].mxu0
      %v3564 = vadd.f32 %v3448, %v3563
      %v3565 = vpop.f32.mrb[0].mxu0
      %3566 = vmatprep.mubr.bf16.mxu0 0
      %3567 = vmatmul.mubr.bf16.gmra.mrb[0].mxu0 %v3481
      %v3568 = vpop.f32.mrb[0].mxu0
      %v3569 = vadd.f32 %v3448, %v3568
      %v3570 = vpop.f32.mrb[0].mxu0
      %v3571 = vpop.f32.mrb[0].mxu0
      %v3572 = vadd.f32 %v3448, %v3571
      %v3573 = vpop.f32.mrb[0].mxu0
      %3574 = vmatprep.mubr.bf16.mxu0 0
      %3575 = vmatmul.mubr.bf16.gmra.mrb[0].mxu0 %v3484
      %v3576 = vpop.f32.mrb[0].mxu0
      %v3577 = vadd.f32 %v3448, %v3576
      %v3578 = vpop.f32.mrb[0].mxu0
      %v3579 = vpop.f32.mrb[0].mxu0
      %v3580 = vadd.f32 %v3448, %v3579
      %v3581 = vpop.f32.mrb[0].mxu0
      %3582 = vdwg.mxu0
      %v3583 = vmax.f32 %v3521, 0.0
      %v3584 = vmax.f32 %v3524, 0.0
      %v3585 = vmax.f32 %v3529, 0.0
      %v3586 = vmax.f32 %v3532, 0.0
      %v3587 = vmax.f32 %v3537, 0.0
      %v3588 = vmax.f32 %v3540, 0.0
      %v3589 = vmax.f32 %v3545, 0.0
      %v3590 = vmax.f32 %v3548, 0.0
      %v3591 = vmax.f32 %v3553, 0.0
      %v3592 = vmax.f32 %v3556, 0.0
      %v3593 = vmax.f32 %v3561, 0.0
      %v3594 = vmax.f32 %v3564, 0.0
      %v3595 = vmax.f32 %v3569, 0.0
      %v3596 = vmax.f32 %v3572, 0.0
      %v3597 = vmax.f32 %v3577, 0.0
      %v3598 = vmax.f32 %v3580, 0.0
      %v3599 = vpack.c.bf16 %v3584, %v3583
      %v3600 = vpack.c.bf16 %v3586, %v3585
      %v3601 = vpack.c.bf16 %v3588, %v3587
      %v3602 = vpack.c.bf16 %v3590, %v3589
      %v3603 = vpack.c.bf16 %v3592, %v3591
      %v3604 = vpack.c.bf16 %v3594, %v3593
      %v3605 = vpack.c.bf16 %v3596, %v3595
      %v3606 = vpack.c.bf16 %v3598, %v3597
      %s3607 = scalar_lea.vmem %s2, 120
      %v3608 = vld [vmem:[%s3607] sm:$0xf]
      %v3609 = vld [vmem:[%s3607 + $0x4] sm:$0xf]
      %s3610 = scalar_lea.vmem %s3, 5
      %v3611 = vld [vmem:[%s3610] sm:$0x1]
      %v3613 = vlaneseq
      %v3614 = vshrl.u32 %v3613, 7
      %v3615 = vsub.s32 0, %v3614
      %v3616 = vrot.slane %v3611, %v3615
      %v3620 = vunpack.c.l.b16 %v3608
      %v3621 = vunpack.c.l.b16 %v3609
      %v3622 = vpack.c.b16 %v3621, %v3620
      %v3625 = vsel %vm2306, %v3599, 0
      %v3628 = vsel %vm2306, %v3600, 0
      %v3631 = vsel %vm2306, %v3601, 0
      %v3634 = vsel %vm2306, %v3602, 0
      %v3637 = vsel %vm2306, %v3603, 0
      %v3640 = vsel %vm2306, %v3604, 0
      %v3643 = vsel %vm2306, %v3605, 0
      %v3646 = vsel %vm2306, %v3606, 0
      %3648 = vmatprep.subr.bf16.mxu0 0
      %3649 = vmatpush1.bf16.msra.mxu0 %v3622
      %3650 = vmatprep.subr.bf16.mxu0 0
      %3651 = vmatpush1.bf16.msra.mxu0 0
      %3652 = vmatprep.subr.bf16.mxu0 0
      %3653 = vmatpush1.bf16.msra.mxu0 0
      %3654 = vmatprep.subr.bf16.mxu0 0
      %3655 = vmatpush1.bf16.msra.mxu0 0
      %3656 = vmatprep.subr.bf16.mxu0 0
      %3657 = vmatpush1.bf16.msra.mxu0 0
      %3658 = vmatprep.subr.bf16.mxu0 0
      %3659 = vmatpush1.bf16.msra.mxu0 0
      %3660 = vmatprep.subr.bf16.mxu0 0
      %3661 = vmatpush1.bf16.msra.mxu0 0
      %3662 = vmatprep.subr.bf16.mxu0 0
      %3663 = vmatpush1.bf16.msra.mxu0 0
      %3664 = vmatprep.subr.bf16.mxu0 0
      %3665 = vmatpush1.bf16.msra.mxu0 0
      %3666 = vmatprep.subr.bf16.mxu0 0
      %3667 = vmatpush1.bf16.msra.mxu0 0
      %3668 = vmatprep.subr.bf16.mxu0 0
      %3669 = vmatpush1.bf16.msra.mxu0 0
      %3670 = vmatprep.subr.bf16.mxu0 0
      %3671 = vmatpush1.bf16.msra.mxu0 0
      %3672 = vmatprep.subr.bf16.mxu0 0
      %3673 = vmatpush1.bf16.msra.mxu0 0
      %3674 = vmatprep.subr.bf16.mxu0 0
      %3675 = vmatpush1.bf16.msra.mxu0 0
      %3676 = vmatprep.subr.bf16.mxu0 0
      %3677 = vmatpush1.bf16.msra.mxu0 0
      %3678 = vmatprep.subr.bf16.mxu0 0
      %3679 = vmatpush1.bf16.msra.mxu0 0
      %3680 = vmatprep.mubr.bf16.mxu0 0
      %3681 = vmatmul.mubr.bf16.gmra.mrb[0].mxu0 %v3625
      %v3682 = vpop.f32.mrb[0].mxu0
      %v3683 = vadd.f32 %v3616, %v3682
      %v3684 = vpop.f32.mrb[0].mxu0
      %v3685 = vpop.f32.mrb[0].mxu0
      %v3686 = vadd.f32 %v3616, %v3685
      %v3687 = vpop.f32.mrb[0].mxu0
      %3688 = vmatprep.mubr.bf16.mxu0 0
      %3689 = vmatmul.mubr.bf16.gmra.mrb[0].mxu0 %v3628
      %v3690 = vpop.f32.mrb[0].mxu0
      %v3691 = vadd.f32 %v3616, %v3690
      %v3692 = vpop.f32.mrb[0].mxu0
      %v3693 = vpop.f32.mrb[0].mxu0
      %v3694 = vadd.f32 %v3616, %v3693
      %v3695 = vpop.f32.mrb[0].mxu0
      %3696 = vmatprep.mubr.bf16.mxu0 0
      %3697 = vmatmul.mubr.bf16.gmra.mrb[0].mxu0 %v3631
      %v3698 = vpop.f32.mrb[0].mxu0
      %v3699 = vadd.f32 %v3616, %v3698
      %v3700 = vpop.f32.mrb[0].mxu0
      %v3701 = vpop.f32.mrb[0].mxu0
      %v3702 = vadd.f32 %v3616, %v3701
      %v3703 = vpop.f32.mrb[0].mxu0
      %3704 = vmatprep.mubr.bf16.mxu0 0
      %3705 = vmatmul.mubr.bf16.gmra.mrb[0].mxu0 %v3634
      %v3706 = vpop.f32.mrb[0].mxu0
      %v3707 = vadd.f32 %v3616, %v3706
      %v3708 = vpop.f32.mrb[0].mxu0
      %v3709 = vpop.f32.mrb[0].mxu0
      %v3710 = vadd.f32 %v3616, %v3709
      %v3711 = vpop.f32.mrb[0].mxu0
      %3712 = vmatprep.mubr.bf16.mxu0 0
      %3713 = vmatmul.mubr.bf16.gmra.mrb[0].mxu0 %v3637
      %v3714 = vpop.f32.mrb[0].mxu0
      %v3715 = vadd.f32 %v3616, %v3714
      %v3716 = vpop.f32.mrb[0].mxu0
      %v3717 = vpop.f32.mrb[0].mxu0
      %v3718 = vadd.f32 %v3616, %v3717
      %v3719 = vpop.f32.mrb[0].mxu0
      %3720 = vmatprep.mubr.bf16.mxu0 0
      %3721 = vmatmul.mubr.bf16.gmra.mrb[0].mxu0 %v3640
      %v3722 = vpop.f32.mrb[0].mxu0
      %v3723 = vadd.f32 %v3616, %v3722
      %v3724 = vpop.f32.mrb[0].mxu0
      %v3725 = vpop.f32.mrb[0].mxu0
      %v3726 = vadd.f32 %v3616, %v3725
      %v3727 = vpop.f32.mrb[0].mxu0
      %3728 = vmatprep.mubr.bf16.mxu0 0
      %3729 = vmatmul.mubr.bf16.gmra.mrb[0].mxu0 %v3643
      %v3730 = vpop.f32.mrb[0].mxu0
      %v3731 = vadd.f32 %v3616, %v3730
      %v3732 = vpop.f32.mrb[0].mxu0
      %v3733 = vpop.f32.mrb[0].mxu0
      %v3734 = vadd.f32 %v3616, %v3733
      %v3735 = vpop.f32.mrb[0].mxu0
      %3736 = vmatprep.mubr.bf16.mxu0 0
      %3737 = vmatmul.mubr.bf16.gmra.mrb[0].mxu0 %v3646
      %v3738 = vpop.f32.mrb[0].mxu0
      %v3739 = vadd.f32 %v3616, %v3738
      %v3740 = vpop.f32.mrb[0].mxu0
      %v3741 = vpop.f32.mrb[0].mxu0
      %v3742 = vadd.f32 %v3616, %v3741
      %v3743 = vpop.f32.mrb[0].mxu0
      %3744 = vdwg.mxu0
      %v3745 = vmax.f32 %v3683, 0.0
      %v3746 = vmax.f32 %v3686, 0.0
      %v3747 = vmax.f32 %v3691, 0.0
      %v3748 = vmax.f32 %v3694, 0.0
      %v3749 = vmax.f32 %v3699, 0.0
      %v3750 = vmax.f32 %v3702, 0.0
      %v3751 = vmax.f32 %v3707, 0.0
      %v3752 = vmax.f32 %v3710, 0.0
      %v3753 = vmax.f32 %v3715, 0.0
      %v3754 = vmax.f32 %v3718, 0.0
      %v3755 = vmax.f32 %v3723, 0.0
      %v3756 = vmax.f32 %v3726, 0.0
      %v3757 = vmax.f32 %v3731, 0.0
      %v3758 = vmax.f32 %v3734, 0.0
      %v3759 = vmax.f32 %v3739, 0.0
      %v3760 = vmax.f32 %v3742, 0.0
      %3763 = vrot.lane.b32.xlu0 %v3747, 6
      %v3764 = vpop.permute.xlu0 %3763
      %3765 = vrot.lane.b32.xlu0 %v3748, 6
      %v3766 = vpop.permute.xlu0 %3765
      %3771 = vrot.lane.b32.xlu0 %v3749, 12
      %v3772 = vpop.permute.xlu0 %3771
      %3773 = vrot.lane.b32.xlu0 %v3750, 12
      %v3774 = vpop.permute.xlu0 %3773
      %3779 = vrot.lane.b32.xlu0 %v3751, 18
      %v3780 = vpop.permute.xlu0 %3779
      %3781 = vrot.lane.b32.xlu0 %v3752, 18
      %v3782 = vpop.permute.xlu0 %3781
      %3787 = vrot.lane.b32.xlu0 %v3753, 24
      %v3788 = vpop.permute.xlu0 %3787
      %3789 = vrot.lane.b32.xlu0 %v3754, 24
      %v3790 = vpop.permute.xlu0 %3789
      %3795 = vrot.lane.b32.xlu0 %v3755, 30
      %v3796 = vpop.permute.xlu0 %3795
      %3797 = vrot.lane.b32.xlu0 %v3756, 30
      %v3798 = vpop.permute.xlu0 %3797
      %3803 = vrot.lane.b32.xlu0 %v3757, 36
      %v3804 = vpop.permute.xlu0 %3803
      %3805 = vrot.lane.b32.xlu0 %v3758, 36
      %v3806 = vpop.permute.xlu0 %3805
      %3811 = vrot.lane.b32.xlu0 %v3759, 42
      %v3812 = vpop.permute.xlu0 %3811
      %3813 = vrot.lane.b32.xlu0 %v3760, 42
      %v3814 = vpop.permute.xlu0 %3813
      %vm3817 = vcmask 48128
      %v3818 = vsel %vm3817, %v3745, %v3764
      %v3819 = vsel %vm3817, %v3746, %v3766
      %vm3820 = vcmask 97280
      %v3821 = vsel %vm3820, %v3818, %v3772
      %v3822 = vsel %vm3820, %v3819, %v3774
      %vm3823 = vcmask 146432
      %v3824 = vsel %vm3823, %v3821, %v3780
      %v3825 = vsel %vm3823, %v3822, %v3782
      %vm3826 = vcmask 195584
      %v3827 = vsel %vm3826, %v3824, %v3788
      %v3828 = vsel %vm3826, %v3825, %v3790
      %vm3829 = vcmask 244736
      %v3830 = vsel %vm3829, %v3827, %v3796
      %v3831 = vsel %vm3829, %v3828, %v3798
      %vm3832 = vcmask 293888
      %v3833 = vsel %vm3832, %v3830, %v3804
      %v3834 = vsel %vm3832, %v3831, %v3806
      %vm3835 = vcmask 343040
      %v3836 = vsel %vm3835, %v3833, %v3812
      %v3837 = vsel %vm3835, %v3834, %v3814
      %v3838 = vpack.c.bf16 %v3837, %v3836
      %s3839 = scalar_lea.vmem %s2, 144
      %v3840 = vld [vmem:[%s3839] sm:$0xf]
      %v3841 = vld [vmem:[%s3839 + $0x4] sm:$0xf]
      %v3842 = vld [vmem:[%s3839 + $0x8] sm:$0xf]
      %v3843 = vld [vmem:[%s3839 + $0xc] sm:$0xf]
      %v3844 = vld [vmem:[%s3839 + $0x10] sm:$0xf]
      %v3845 = vld [vmem:[%s3839 + $0x14] sm:$0xf]
      %s3846 = scalar_lea.vmem %s3, 6
      %v3847 = vld [vmem:[%s3846] sm:$0x1]
      %v3849 = vlaneseq
      %v3850 = vshrl.u32 %v3849, 7
      %v3851 = vsub.s32 0, %v3850
      %v3852 = vrot.slane %v3847, %v3851
      %v3860 = vunpack.c.l.b16 %v3840
      %v3861 = vunpack.c.l.b16 %v3841
      %v3862 = vunpack.c.l.b16 %v3842
      %v3863 = vunpack.c.l.b16 %v3843
      %v3864 = vunpack.c.l.b16 %v3844
      %v3865 = vunpack.c.l.b16 %v3845
      %v3866 = vpack.c.b16 %v3861, %v3860
      %v3867 = vpack.c.b16 %v3863, %v3862
      %v3868 = vpack.c.b16 %v3865, %v3864
      %vm3872 = vcmask 392192
      %v3874 = vsel %vm3872, %v3838, 0
      %3876 = vmatprep.subr.bf16.mxu0 0
      %3877 = vmatpush1.bf16.msra.mxu0 %v3866
      %3878 = vmatprep.subr.bf16.mxu0 0
      %3879 = vmatpush1.bf16.msra.mxu0 %v3867
      %3880 = vmatprep.subr.bf16.mxu0 0
      %3881 = vmatpush1.bf16.msra.mxu0 %v3868
      %3882 = vmatprep.subr.bf16.mxu0 0
      %3883 = vmatpush1.bf16.msra.mxu0 0
      %3884 = vmatprep.subr.bf16.mxu0 0
      %3885 = vmatpush1.bf16.msra.mxu0 0
      %3886 = vmatprep.subr.bf16.mxu0 0
      %3887 = vmatpush1.bf16.msra.mxu0 0
      %3888 = vmatprep.subr.bf16.mxu0 0
      %3889 = vmatpush1.bf16.msra.mxu0 0
      %3890 = vmatprep.subr.bf16.mxu0 0
      %3891 = vmatpush1.bf16.msra.mxu0 0
      %3892 = vmatprep.subr.bf16.mxu0 0
      %3893 = vmatpush1.bf16.msra.mxu0 0
      %3894 = vmatprep.subr.bf16.mxu0 0
      %3895 = vmatpush1.bf16.msra.mxu0 0
      %3896 = vmatprep.subr.bf16.mxu0 0
      %3897 = vmatpush1.bf16.msra.mxu0 0
      %3898 = vmatprep.subr.bf16.mxu0 0
      %3899 = vmatpush1.bf16.msra.mxu0 0
      %3900 = vmatprep.subr.bf16.mxu0 0
      %3901 = vmatpush1.bf16.msra.mxu0 0
      %3902 = vmatprep.subr.bf16.mxu0 0
      %3903 = vmatpush1.bf16.msra.mxu0 0
      %3904 = vmatprep.subr.bf16.mxu0 0
      %3905 = vmatpush1.bf16.msra.mxu0 0
      %3906 = vmatprep.subr.bf16.mxu0 0
      %3907 = vmatpush1.bf16.msra.mxu0 0
      %3908 = vmatprep.mubr.bf16.mxu0 0
      %3909 = vmatmul.mubr.bf16.gmra.mrb[0].mxu0 %v3874
      %v3910 = vpop.f32.mrb[0].mxu0
      %v3911 = vadd.f32 %v3852, %v3910
      %v3912 = vpop.f32.mrb[0].mxu0
      %v3913 = vpop.f32.mrb[0].mxu0
      %v3914 = vadd.f32 %v3852, %v3913
      %v3915 = vpop.f32.mrb[0].mxu0
      %3916 = vdwg.mxu0
      %v3917 = vmax.f32 %v3911, 0.0
      %v3918 = vmax.f32 %v3914, 0.0
      %v3919 = vpack.c.bf16 %v3918, %v3917
      %s3920 = scalar_lea.vmem %s2, 168
      %v3921 = vld [vmem:[%s3920] sm:$0xf]
      %v3922 = vld [vmem:[%s3920 + $0x4] sm:$0xf]
      %v3923 = vld [vmem:[%s3920 + $0x8] sm:$0xf]
      %v3924 = vld [vmem:[%s3920 + $0xc] sm:$0xf]
      %s3925 = scalar_lea.vmem %s3, 7
      %v3926 = vld [vmem:[%s3925] sm:$0x1]
      %v3928 = vlaneseq
      %v3929 = vshrl.u32 %v3928, 7
      %v3930 = vsub.s32 0, %v3929
      %v3931 = vrot.slane %v3926, %v3930
      %v3937 = vunpack.c.l.b16 %v3921
      %v3938 = vunpack.c.l.b16 %v3922
      %v3939 = vunpack.c.l.b16 %v3923
      %v3940 = vunpack.c.l.b16 %v3924
      %v3941 = vpack.c.b16 %v3938, %v3937
      %v3942 = vpack.c.b16 %v3940, %v3939
      %v3946 = vsel %vm1471, %v3919, 0
      %3948 = vmatprep.subr.bf16.mxu0 0
      %3949 = vmatpush1.bf16.msra.mxu0 %v3941
      %3950 = vmatprep.subr.bf16.mxu0 0
      %3951 = vmatpush1.bf16.msra.mxu0 %v3942
      %3952 = vmatprep.subr.bf16.mxu0 0
      %3953 = vmatpush1.bf16.msra.mxu0 0
      %3954 = vmatprep.subr.bf16.mxu0 0
      %3955 = vmatpush1.bf16.msra.mxu0 0
      %3956 = vmatprep.subr.bf16.mxu0 0
      %3957 = vmatpush1.bf16.msra.mxu0 0
      %3958 = vmatprep.subr.bf16.mxu0 0
      %3959 = vmatpush1.bf16.msra.mxu0 0
      %3960 = vmatprep.subr.bf16.mxu0 0
      %3961 = vmatpush1.bf16.msra.mxu0 0
      %3962 = vmatprep.subr.bf16.mxu0 0
      %3963 = vmatpush1.bf16.msra.mxu0 0
      %3964 = vmatprep.subr.bf16.mxu0 0
      %3965 = vmatpush1.bf16.msra.mxu0 0
      %3966 = vmatprep.subr.bf16.mxu0 0
      %3967 = vmatpush1.bf16.msra.mxu0 0
      %3968 = vmatprep.subr.bf16.mxu0 0
      %3969 = vmatpush1.bf16.msra.mxu0 0
      %3970 = vmatprep.subr.bf16.mxu0 0
      %3971 = vmatpush1.bf16.msra.mxu0 0
      %3972 = vmatprep.subr.bf16.mxu0 0
      %3973 = vmatpush1.bf16.msra.mxu0 0
      %3974 = vmatprep.subr.bf16.mxu0 0
      %3975 = vmatpush1.bf16.msra.mxu0 0
      %3976 = vmatprep.subr.bf16.mxu0 0
      %3977 = vmatpush1.bf16.msra.mxu0 0
      %3978 = vmatprep.subr.bf16.mxu0 0
      %3979 = vmatpush1.bf16.msra.mxu0 0
      %3980 = vmatprep.mubr.bf16.mxu0 0
      %3981 = vmatmul.mubr.bf16.gmra.mrb[0].mxu0 %v3946
      %v3982 = vpop.f32.mrb[0].mxu0
      %v3983 = vadd.f32 %v3931, %v3982
      %v3984 = vpop.f32.mrb[0].mxu0
      %v3985 = vpop.f32.mrb[0].mxu0
      %v3986 = vadd.f32 %v3931, %v3985
      %v3987 = vpop.f32.mrb[0].mxu0
      %3988 = vdwg.mxu0
      %v3989 = vmax.f32 %v3983, 0.0
      %v3990 = vmax.f32 %v3986, 0.0
      %v3991 = vpack.c.bf16 %v3990, %v3989
      %s3992 = scalar_lea.vmem %s2, 192
      %v3993 = vld [vmem:[%s3992] sm:$0xf]
      %v3994 = vld [vmem:[%s3992 + $0x4] sm:$0xf]
      %s3995 = scalar_lea.vmem %s3, 8
      %v3996 = vld [vmem:[%s3995] sm:$0x1]
      %v3998 = vlaneseq
      %v3999 = vshrl.u32 %v3998, 7
      %v4000 = vsub.s32 0, %v3999
      %v4001 = vrot.slane %v3996, %v4000
      %v4005 = vunpack.c.l.b16 %v3993
      %v4006 = vunpack.c.l.b16 %v3994
      %v4007 = vpack.c.b16 %v4006, %v4005
      %v4010 = vsel %vm2306, %v3991, 0
      %4012 = vmatprep.subr.bf16.mxu0 0
      %4013 = vmatpush1.bf16.msra.mxu0 %v4007
      %4014 = vmatprep.subr.bf16.mxu0 0
      %4015 = vmatpush1.bf16.msra.mxu0 0
      %4016 = vmatprep.subr.bf16.mxu0 0
      %4017 = vmatpush1.bf16.msra.mxu0 0
      %4018 = vmatprep.subr.bf16.mxu0 0
      %4019 = vmatpush1.bf16.msra.mxu0 0
      %4020 = vmatprep.subr.bf16.mxu0 0
      %4021 = vmatpush1.bf16.msra.mxu0 0
      %4022 = vmatprep.subr.bf16.mxu0 0
      %4023 = vmatpush1.bf16.msra.mxu0 0
      %4024 = vmatprep.subr.bf16.mxu0 0
      %4025 = vmatpush1.bf16.msra.mxu0 0
      %4026 = vmatprep.subr.bf16.mxu0 0
      %4027 = vmatpush1.bf16.msra.mxu0 0
      %4028 = vmatprep.subr.bf16.mxu0 0
      %4029 = vmatpush1.bf16.msra.mxu0 0
      %4030 = vmatprep.subr.bf16.mxu0 0
      %4031 = vmatpush1.bf16.msra.mxu0 0
      %4032 = vmatprep.subr.bf16.mxu0 0
      %4033 = vmatpush1.bf16.msra.mxu0 0
      %4034 = vmatprep.subr.bf16.mxu0 0
      %4035 = vmatpush1.bf16.msra.mxu0 0
      %4036 = vmatprep.subr.bf16.mxu0 0
      %4037 = vmatpush1.bf16.msra.mxu0 0
      %4038 = vmatprep.subr.bf16.mxu0 0
      %4039 = vmatpush1.bf16.msra.mxu0 0
      %4040 = vmatprep.subr.bf16.mxu0 0
      %4041 = vmatpush1.bf16.msra.mxu0 0
      %4042 = vmatprep.subr.bf16.mxu0 0
      %4043 = vmatpush1.bf16.msra.mxu0 0
      %4044 = vmatprep.mubr.bf16.mxu0 0
      %4045 = vmatmul.mubr.bf16.gmra.mrb[0].mxu0 %v4010
      %v4046 = vpop.f32.mrb[0].mxu0
      %v4047 = vadd.f32 %v4001, %v4046
      %v4048 = vpop.f32.mrb[0].mxu0
      %v4049 = vpop.f32.mrb[0].mxu0
      %v4050 = vadd.f32 %v4001, %v4049
      %v4051 = vpop.f32.mrb[0].mxu0
      %4052 = vdwg.mxu0
      %vm4053 = vcmask 15360
      %4054 = vst.msk [vmem:[%s221] sm:$0xff] %vm4053, %v4047
      %4055 = vst.msk [vmem:[%s221 + $0x8] sm:$0xff] %vm4053, %v4050
      %s4056 = smul.u32 2, %s15
      %p4057 = scmp.lt.s32.totalorder %s4056, 7
      %s4058 = scalar_select %p4057, %s4056, 7
      %s4059 = smul.addr %s4058, 8
      %s4060 = scalar_lea.vmem %s4, %s4059
      // Predicated region
      $region37: #{tpu_custom_call.1} parent=35 // pred_check
        %p4061 = pneg %p127
      $region38: #{tpu_custom_call.1} parent=35 // pred_check_branch
        %4063 = sbr.rel (%p4061) target = $region40
      $region39: #{tpu_custom_call.1} parent=35 // pred_region
        %s4064 = smul.u32 2, %s15
      $region40: #{tpu_custom_call.1} parent=35 // pred_fallthru
        _
    $region36: #{tpu_custom_call.1} parent=5 // pred_fallthru
      _
    %p4065 = scmp.le.s32.totalorder 2, %s10
    // Predicated region
    $region41: #{tpu_custom_call.1} parent=5 // pred_check
      %p4066 = pneg %p4065
    $region42: #{tpu_custom_call.1} parent=5 // pred_check_branch
      %4068 = sbr.rel (%p4066) target = $region44
    $region43: #{tpu_custom_call.1} parent=5 // pred_region
      %s4069 = ssub.s32 %s10, 2
      // Predicated region
      $region45: #{tpu_custom_call.1} parent=43 // pred_check
        %p4070 = pneg %p133
      $region46: #{tpu_custom_call.1} parent=43 // pred_check_branch
        %4072 = sbr.rel (%p4070) target = $region48
      $region47: #{tpu_custom_call.1} parent=43 // pred_region
        %s4073 = smul.u32 2, %s16
        %p4074 = scmp.lt.s32.totalorder %s4073, 7
        %s4075 = scalar_select %p4074, %s4073, 7
        %s4076 = smul.addr %s4075, 8
        %s4077 = scalar_lea.vmem %s4, %s4076
      $region48: #{tpu_custom_call.1} parent=43 // pred_fallthru
        _
    $region44: #{tpu_custom_call.1} parent=5 // pred_fallthru
      _
  $region6: #{tpu_custom_call.1} parent=0 // loop_footer
    %s14 = sadd.s32 1, %s10
  $region7: #{tpu_custom_call.1} parent=0 // loop_footer_branch
    %9 = sbr.rel target = $region3
  $region8: #{tpu_custom_call.1} parent=0 // loop_exit
    _

</llo_original>
